<compile_context>
chip_gen: v6e
topology: v6e:2x2x1
jax: 0.10.0
libtpu: 0.0.40
codegen_flags: <defaults>
</compile_context>

<pallas_src>
import functools

import jax
import jax.numpy as jnp
from jax import lax
from jax.experimental import pallas as pl
from jax.experimental.pallas import tpu as pltpu


def _aspp_kernel(xp_ref, w_ref, b_ref, out_ref, acc_ref, *,
                 dilations, pad, band_h, out_w):
    """One (batch, H-band, Cin-tile) grid step.

    xp_ref : (1, Hp, Wp, Ct)        zero-padded input, one Cin tile (VMEM,
                                    resident across the band axis)
    w_ref  : (1, B*9*Ct, Cout_pad)  fused tap weights for this Cin tile
    b_ref  : (1, Cout_pad)          summed branch biases (f32)
    out_ref: (1, band_h, W, Cout_pad)
    acc_ref: (band_h*W, Cout_pad)   f32 VMEM accumulator (resident across Cin tiles)
    """
    h = pl.program_id(1)
    k = pl.program_id(2)
    nk = pl.num_programs(2)
    row0 = h * band_h                      # band start row (output coords)

    ct = xp_ref.shape[-1]

    # Gather the 9*B shifted taps for this Cin tile and fuse them along the
    # contraction dim -> one deep-K MXU matmul instead of 9*B shallow ones.
    taps = []
    for b, d in enumerate(dilations):      # static python loops -> unrolled
        for ky in range(3):
            oy = pad + (ky - 1) * d        # static offsets (padding == dilation)
            for kx in range(3):
                ox = pad + (kx - 1) * d
                taps.append(
                    xp_ref[0, pl.ds(row0 + oy, band_h), pl.ds(ox, out_w), :])
    lhs = jnp.concatenate(taps, axis=-1)                 # (band_h, W, 9*B*Ct)
    lhs = lhs.reshape(band_h * out_w, len(taps) * ct)    # (band_h*W, K)

    partial = jnp.dot(lhs, w_ref[0],
                      preferred_element_type=jnp.float32)  # (band_h*W, Cout_pad)

    @pl.when(k == 0)
    def _init():
        # Bias-initialized accumulator (saves a separate full-tile bias pass).
        acc_ref[...] = partial + b_ref[...]

    @pl.when(k > 0)
    def _accumulate():
        acc_ref[...] = acc_ref[...] + partial

    @pl.when(k == nk - 1)
    def _finalize():
        out_ref[0] = acc_ref[...].reshape(band_h, out_w, -1).astype(out_ref.dtype)


def _round_up(x, m):
    return (x + m - 1) // m * m


def _largest_divisor_leq(n, cap):
    for d in range(min(n, cap), 0, -1):
        if n % d == 0:
            return d
    return n


def aspp_classifier_v2_nhwc(x_nhwc, weights, biases, dilations, paddings, *,
                            band_h=None, cin_tile=128,
                            compute_dtype=jnp.float32,
                            vmem_limit_bytes=None):
    """x_nhwc: (N, H, W, Cin).  weights: (B, 3, 3, Cin, Cout) HWIO per branch.
    biases: (B, Cout).  Returns (N, H, W, Cout) float32."""
    assert tuple(dilations) == tuple(paddings), "module uses padding == dilation"
    N, H, W, Cin = x_nhwc.shape
    B, kh, kw_, _, Cout = weights.shape
    assert (kh, kw_) == (3, 3)
    P = max(paddings)

    # ---- layout prep (plain-JAX glue) ------------------------------------
    Cout_p = _round_up(Cout, 128)               # lane-dense output
    Ct = Cin if Cin <= cin_tile else cin_tile   # Cin reduction tile
    Cin_p = _round_up(Cin, Ct)
    nk = Cin_p // Ct
    TH = band_h if band_h is not None else _largest_divisor_leq(H, 32)
    assert H % TH == 0, "band_h must divide H"
    n_bands = H // TH

    # TODO(synk): the +/-P spatial halo is still an HBM-level jnp.pad; for very
    # large Cin it could be folded into the kernel with masked edge loads.
    xp = jnp.pad(x_nhwc, ((0, 0), (P, P), (P, P), (0, Cin_p - Cin)))
    xp = xp.astype(compute_dtype)
    Hp, Wp = H + 2 * P, W + 2 * P

    # Fused tap weights: (nk, B*9*Ct, Cout_p); K ordering = (b, ky, kx, c),
    # matching the tap concatenation order inside the kernel.
    w = jnp.pad(weights, ((0, 0), (0, 0), (0, 0),
                          (0, Cin_p - Cin), (0, Cout_p - Cout)))
    w = w.reshape(B, 3, 3, nk, Ct, Cout_p)
    w = jnp.transpose(w, (3, 0, 1, 2, 4, 5)).reshape(nk, B * 9 * Ct, Cout_p)
    w = w.astype(compute_dtype)

    bias_sum = jnp.sum(biases.astype(jnp.float32), axis=0)
    bias_sum = jnp.pad(bias_sum, (0, Cout_p - Cout)).reshape(1, Cout_p)

    kernel = functools.partial(_aspp_kernel, dilations=tuple(dilations),
                               pad=P, band_h=TH, out_w=W)

    flops = 2 * N * H * W * (B * 9 * Cin_p) * Cout_p
    bytes_accessed = (xp.size * xp.dtype.itemsize
                      + w.size * w.dtype.itemsize
                      + N * H * W * Cout_p * 4)

    out = pl.pallas_call(
        kernel,
        out_shape=jax.ShapeDtypeStruct((N, H, W, Cout_p), jnp.float32),
        grid_spec=pltpu.PrefetchScalarGridSpec(
            num_scalar_prefetch=0,
            grid=(N, n_bands, nk),
            in_specs=[
                # Full padded image for one Cin tile; index_map ignores the
                # band axis so the block stays resident across bands.
                pl.BlockSpec((1, Hp, Wp, Ct), lambda n, h, k: (n, 0, 0, k)),
                pl.BlockSpec((1, B * 9 * Ct, Cout_p), lambda n, h, k: (k, 0, 0)),
                pl.BlockSpec((1, Cout_p), lambda n, h, k: (0, 0)),
            ],
            out_specs=pl.BlockSpec((1, TH, W, Cout_p),
                                   lambda n, h, k: (n, h, 0, 0)),
            scratch_shapes=[pltpu.VMEM((TH * W, Cout_p), jnp.float32)],
        ),
        compiler_params=pltpu.CompilerParams(
            dimension_semantics=("parallel", "parallel", "arbitrary"),
            vmem_limit_bytes=vmem_limit_bytes),
        cost_estimate=pl.CostEstimate(flops=flops, transcendentals=0,
                                      bytes_accessed=bytes_accessed),
    )(xp, w, bias_sum)

    return out[..., :Cout]


def _bilinear_align_corners(x_nhwc, size):
    """Plain-JAX glue equivalent of F.interpolate(mode='bilinear',
    align_corners=True) for the optional `size` argument."""
    N, H, W, C = x_nhwc.shape
    oh, ow = size
    ys = jnp.linspace(0.0, H - 1.0, oh) if oh > 1 else jnp.zeros((oh,))
    xs = jnp.linspace(0.0, W - 1.0, ow) if ow > 1 else jnp.zeros((ow,))
    y0 = jnp.clip(jnp.floor(ys).astype(jnp.int32), 0, H - 1)
    x0 = jnp.clip(jnp.floor(xs).astype(jnp.int32), 0, W - 1)
    y1 = jnp.clip(y0 + 1, 0, H - 1)
    x1 = jnp.clip(x0 + 1, 0, W - 1)
    wy = (ys - y0.astype(ys.dtype))[None, :, None, None]
    wx = (xs - x0.astype(xs.dtype))[None, None, :, None]
    g = lambda yi, xi: x_nhwc[:, yi, :, :][:, :, xi, :]
    top = g(y0, x0) * (1 - wx) + g(y0, x1) * wx
    bot = g(y1, x0) * (1 - wx) + g(y1, x1) * wx
    return top * (1 - wy) + bot * wy


def aspp_classifier_v2(x_nchw, weights, biases, dilations, paddings,
                       size=None, **kwargs):
    """Public API matching the PyTorch module: NCHW in, NCHW out."""
    x_nhwc = jnp.transpose(x_nchw, (0, 2, 3, 1))
    out = aspp_classifier_v2_nhwc(x_nhwc, weights, biases, dilations, paddings,
                                  **kwargs)
    if size is not None:
        out = _bilinear_align_corners(out, size)
    return jnp.transpose(out, (0, 3, 1, 2))


def _reference_nhwc(x_nhwc, weights, biases, dilations, paddings):
    """Pure-JAX reference (lax conv, f32 accumulation) for validation."""
    out = None
    for b in range(weights.shape[0]):
        d, p = dilations[b], paddings[b]
        o = lax.conv_general_dilated(
            x_nhwc, weights[b],
            window_strides=(1, 1),
            padding=((p, p), (p, p)),
            rhs_dilation=(d, d),
            dimension_numbers=("NHWC", "HWIO", "NHWC"),
            preferred_element_type=jnp.float32,
        ) + biases[b][None, None, None, :].astype(jnp.float32)
        out = o if out is None else out + o
    return out


if __name__ == "__main__":
    dilation_series = [6, 12, 18, 24]
    padding_series = [6, 12, 18, 24]
    Bn = len(dilation_series)

    def make_inputs(key, n, cin, h, w, cout):
        kx, kweights, kb = jax.random.split(key, 3)
        # PyTorch stores (Cout, Cin, 3, 3); build directly in HWIO, N(0, 0.01)
        # init as in the module's __init__.
        weights = 0.01 * jax.random.normal(
            kweights, (Bn, 3, 3, cin, cout), dtype=jnp.float32)
        biases = 0.1 * jax.random.normal(kb, (Bn, cout), dtype=jnp.float32)
        x = jax.random.normal(kx, (n, cin, h, w), dtype=jnp.float32)  # NCHW
        return x, weights, biases

    root = jax.random.PRNGKey(0)
    k1, k2 = jax.random.split(root)

    # ---- case 1: small config, f32, exercises H-band tiling (grid 2x2x1) ----
    N, H, W, Cin, Cout = 2, 16, 16, 8, 5
    x1, w1, b1 = make_inputs(k1, N, Cin, H, W, Cout)
    out1 = aspp_classifier_v2(x1, w1, b1, dilation_series, padding_series,
                              band_h=8)
    out1 = jax.block_until_ready(out1)
    assert out1.shape == (N, Cout, H, W)
    ref1 = jnp.transpose(
        _reference_nhwc(jnp.transpose(x1, (0, 2, 3, 1)), w1, b1,
                        dilation_series, padding_series), (0, 3, 1, 2))
    assert jnp.allclose(out1, ref1, atol=1e-4, rtol=1e-4), "case1 mismatch"

    # ---- case 2: Cin=256 -> two 128-deep Cin reduction tiles, bf16 matmul ----
    N, H, W, Cin, Cout = 1, 16, 16, 256, 5
    x2, w2, b2 = make_inputs(k2, N, Cin, H, W, Cout)
    out2 = aspp_classifier_v2(x2, w2, b2, dilation_series, padding_series,
                              band_h=8, cin_tile=128,
                              compute_dtype=jnp.bfloat16)
    out2 = jax.block_until_ready(out2)
    assert out2.shape == (N, Cout, H, W)
    # Reference with the same bf16 operand rounding (f32 accumulation).
    ref2 = jnp.transpose(
        _reference_nhwc(jnp.transpose(x2, (0, 2, 3, 1)).astype(jnp.bfloat16),
                        w2.astype(jnp.bfloat16), b2,
                        dilation_series, padding_series), (0, 3, 1, 2))
    assert jnp.allclose(out2, ref2, atol=1e-2, rtol=1e-2), "case2 mismatch"

    print("KERNEL_OK")
</pallas_src>

<mosaic_0001>
module attributes {stable_mosaic.version = 11 : i64} {
  func.func @_aspp_kernel(%arg0: i32, %arg1: i32, %arg2: i32, %arg3: memref<1x64x64x8xf32, #tpu.memory_space<vmem>>, %arg4: memref<1x288x128xf32, #tpu.memory_space<vmem>>, %arg5: memref<1x128xf32, #tpu.memory_space<vmem>>, %arg6: memref<1x8x16x128xf32, #tpu.memory_space<vmem>>, %arg7: memref<128x128xf32, #tpu.memory_space<vmem>>) attributes {dimension_semantics = [#tpu.dimension_semantics<parallel>, #tpu.dimension_semantics<parallel>, #tpu.dimension_semantics<arbitrary>], iteration_bounds = array<i64: 2, 2, 1>, scalar_prefetch = 0 : i64, scratch_operands = 1 : i64, tpu.core_type = #tpu.core_type<tc>, window_params = [{transform_indices = @transform_0, window_bounds = array<i64: 1, 64, 64, 8>}, {transform_indices = @transform_1, window_bounds = array<i64: 1, 288, 128>}, {pipeline_mode = #tpu.pipeline_mode<synchronous>, transform_indices = @transform_2, window_bounds = array<i64: 1, 128>}, {transform_indices = @transform_3, window_bounds = array<i64: 1, 8, 16, 128>}]} {
    %c8_i32 = arith.constant 8 : i32
    %0 = arith.muli %arg1, %c8_i32 : i32
    %c18_i32 = arith.constant 18 : i32
    %1 = arith.addi %0, %c18_i32 : i32
    %c0 = arith.constant 0 : index
    %2 = arith.index_cast %1 : i32 to index
    %c18 = arith.constant 18 : index
    %c0_0 = arith.constant 0 : index
    %3 = vector.load %arg3[%c0, %2, %c18, %c0_0] : memref<1x64x64x8xf32, #tpu.memory_space<vmem>>, vector<1x8x16x8xf32>
    %4 = vector.shape_cast %3 : vector<1x8x16x8xf32> to vector<8x16x8xf32>
    %c18_i32_1 = arith.constant 18 : i32
    %5 = arith.addi %0, %c18_i32_1 : i32
    %c0_2 = arith.constant 0 : index
    %6 = arith.index_cast %5 : i32 to index
    %c24 = arith.constant 24 : index
    %c0_3 = arith.constant 0 : index
    %7 = vector.load %arg3[%c0_2, %6, %c24, %c0_3] : memref<1x64x64x8xf32, #tpu.memory_space<vmem>>, vector<1x8x16x8xf32>
    %8 = vector.shape_cast %7 : vector<1x8x16x8xf32> to vector<8x16x8xf32>
    %c18_i32_4 = arith.constant 18 : i32
    %9 = arith.addi %0, %c18_i32_4 : i32
    %c0_5 = arith.constant 0 : index
    %10 = arith.index_cast %9 : i32 to index
    %c30 = arith.constant 30 : index
    %c0_6 = arith.constant 0 : index
    %11 = vector.load %arg3[%c0_5, %10, %c30, %c0_6] : memref<1x64x64x8xf32, #tpu.memory_space<vmem>>, vector<1x8x16x8xf32>
    %12 = vector.shape_cast %11 : vector<1x8x16x8xf32> to vector<8x16x8xf32>
    %c24_i32 = arith.constant 24 : i32
    %13 = arith.addi %0, %c24_i32 : i32
    %c0_7 = arith.constant 0 : index
    %14 = arith.index_cast %13 : i32 to index
    %c18_8 = arith.constant 18 : index
    %c0_9 = arith.constant 0 : index
    %15 = vector.load %arg3[%c0_7, %14, %c18_8, %c0_9] : memref<1x64x64x8xf32, #tpu.memory_space<vmem>>, vector<1x8x16x8xf32>
    %16 = vector.shape_cast %15 : vector<1x8x16x8xf32> to vector<8x16x8xf32>
    %c24_i32_10 = arith.constant 24 : i32
    %17 = arith.addi %0, %c24_i32_10 : i32
    %c0_11 = arith.constant 0 : index
    %18 = arith.index_cast %17 : i32 to index
    %c24_12 = arith.constant 24 : index
    %c0_13 = arith.constant 0 : index
    %19 = vector.load %arg3[%c0_11, %18, %c24_12, %c0_13] : memref<1x64x64x8xf32, #tpu.memory_space<vmem>>, vector<1x8x16x8xf32>
    %20 = vector.shape_cast %19 : vector<1x8x16x8xf32> to vector<8x16x8xf32>
    %c24_i32_14 = arith.constant 24 : i32
    %21 = arith.addi %0, %c24_i32_14 : i32
    %c0_15 = arith.constant 0 : index
    %22 = arith.index_cast %21 : i32 to index
    %c30_16 = arith.constant 30 : index
    %c0_17 = arith.constant 0 : index
    %23 = vector.load %arg3[%c0_15, %22, %c30_16, %c0_17] : memref<1x64x64x8xf32, #tpu.memory_space<vmem>>, vector<1x8x16x8xf32>
    %24 = vector.shape_cast %23 : vector<1x8x16x8xf32> to vector<8x16x8xf32>
    %c30_i32 = arith.constant 30 : i32
    %25 = arith.addi %0, %c30_i32 : i32
    %c0_18 = arith.constant 0 : index
    %26 = arith.index_cast %25 : i32 to index
    %c18_19 = arith.constant 18 : index
    %c0_20 = arith.constant 0 : index
    %27 = vector.load %arg3[%c0_18, %26, %c18_19, %c0_20] : memref<1x64x64x8xf32, #tpu.memory_space<vmem>>, vector<1x8x16x8xf32>
    %28 = vector.shape_cast %27 : vector<1x8x16x8xf32> to vector<8x16x8xf32>
    %c30_i32_21 = arith.constant 30 : i32
    %29 = arith.addi %0, %c30_i32_21 : i32
    %c0_22 = arith.constant 0 : index
    %30 = arith.index_cast %29 : i32 to index
    %c24_23 = arith.constant 24 : index
    %c0_24 = arith.constant 0 : index
    %31 = vector.load %arg3[%c0_22, %30, %c24_23, %c0_24] : memref<1x64x64x8xf32, #tpu.memory_space<vmem>>, vector<1x8x16x8xf32>
    %32 = vector.shape_cast %31 : vector<1x8x16x8xf32> to vector<8x16x8xf32>
    %c30_i32_25 = arith.constant 30 : i32
    %33 = arith.addi %0, %c30_i32_25 : i32
    %c0_26 = arith.constant 0 : index
    %34 = arith.index_cast %33 : i32 to index
    %c30_27 = arith.constant 30 : index
    %c0_28 = arith.constant 0 : index
    %35 = vector.load %arg3[%c0_26, %34, %c30_27, %c0_28] : memref<1x64x64x8xf32, #tpu.memory_space<vmem>>, vector<1x8x16x8xf32>
    %36 = vector.shape_cast %35 : vector<1x8x16x8xf32> to vector<8x16x8xf32>
    %c12_i32 = arith.constant 12 : i32
    %37 = arith.addi %0, %c12_i32 : i32
    %c0_29 = arith.constant 0 : index
    %38 = arith.index_cast %37 : i32 to index
    %c12 = arith.constant 12 : index
    %c0_30 = arith.constant 0 : index
    %39 = vector.load %arg3[%c0_29, %38, %c12, %c0_30] : memref<1x64x64x8xf32, #tpu.memory_space<vmem>>, vector<1x8x16x8xf32>
    %40 = vector.shape_cast %39 : vector<1x8x16x8xf32> to vector<8x16x8xf32>
    %c12_i32_31 = arith.constant 12 : i32
    %41 = arith.addi %0, %c12_i32_31 : i32
    %c0_32 = arith.constant 0 : index
    %42 = arith.index_cast %41 : i32 to index
    %c24_33 = arith.constant 24 : index
    %c0_34 = arith.constant 0 : index
    %43 = vector.load %arg3[%c0_32, %42, %c24_33, %c0_34] : memref<1x64x64x8xf32, #tpu.memory_space<vmem>>, vector<1x8x16x8xf32>
    %44 = vector.shape_cast %43 : vector<1x8x16x8xf32> to vector<8x16x8xf32>
    %c12_i32_35 = arith.constant 12 : i32
    %45 = arith.addi %0, %c12_i32_35 : i32
    %c0_36 = arith.constant 0 : index
    %46 = arith.index_cast %45 : i32 to index
    %c36 = arith.constant 36 : index
    %c0_37 = arith.constant 0 : index
    %47 = vector.load %arg3[%c0_36, %46, %c36, %c0_37] : memref<1x64x64x8xf32, #tpu.memory_space<vmem>>, vector<1x8x16x8xf32>
    %48 = vector.shape_cast %47 : vector<1x8x16x8xf32> to vector<8x16x8xf32>
    %c24_i32_38 = arith.constant 24 : i32
    %49 = arith.addi %0, %c24_i32_38 : i32
    %c0_39 = arith.constant 0 : index
    %50 = arith.index_cast %49 : i32 to index
    %c12_40 = arith.constant 12 : index
    %c0_41 = arith.constant 0 : index
    %51 = vector.load %arg3[%c0_39, %50, %c12_40, %c0_41] : memref<1x64x64x8xf32, #tpu.memory_space<vmem>>, vector<1x8x16x8xf32>
    %52 = vector.shape_cast %51 : vector<1x8x16x8xf32> to vector<8x16x8xf32>
    %c24_i32_42 = arith.constant 24 : i32
    %53 = arith.addi %0, %c24_i32_42 : i32
    %c0_43 = arith.constant 0 : index
    %54 = arith.index_cast %53 : i32 to index
    %c24_44 = arith.constant 24 : index
    %c0_45 = arith.constant 0 : index
    %55 = vector.load %arg3[%c0_43, %54, %c24_44, %c0_45] : memref<1x64x64x8xf32, #tpu.memory_space<vmem>>, vector<1x8x16x8xf32>
    %56 = vector.shape_cast %55 : vector<1x8x16x8xf32> to vector<8x16x8xf32>
    %c24_i32_46 = arith.constant 24 : i32
    %57 = arith.addi %0, %c24_i32_46 : i32
    %c0_47 = arith.constant 0 : index
    %58 = arith.index_cast %57 : i32 to index
    %c36_48 = arith.constant 36 : index
    %c0_49 = arith.constant 0 : index
    %59 = vector.load %arg3[%c0_47, %58, %c36_48, %c0_49] : memref<1x64x64x8xf32, #tpu.memory_space<vmem>>, vector<1x8x16x8xf32>
    %60 = vector.shape_cast %59 : vector<1x8x16x8xf32> to vector<8x16x8xf32>
    %c36_i32 = arith.constant 36 : i32
    %61 = arith.addi %0, %c36_i32 : i32
    %c0_50 = arith.constant 0 : index
    %62 = arith.index_cast %61 : i32 to index
    %c12_51 = arith.constant 12 : index
    %c0_52 = arith.constant 0 : index
    %63 = vector.load %arg3[%c0_50, %62, %c12_51, %c0_52] : memref<1x64x64x8xf32, #tpu.memory_space<vmem>>, vector<1x8x16x8xf32>
    %64 = vector.shape_cast %63 : vector<1x8x16x8xf32> to vector<8x16x8xf32>
    %c36_i32_53 = arith.constant 36 : i32
    %65 = arith.addi %0, %c36_i32_53 : i32
    %c0_54 = arith.constant 0 : index
    %66 = arith.index_cast %65 : i32 to index
    %c24_55 = arith.constant 24 : index
    %c0_56 = arith.constant 0 : index
    %67 = vector.load %arg3[%c0_54, %66, %c24_55, %c0_56] : memref<1x64x64x8xf32, #tpu.memory_space<vmem>>, vector<1x8x16x8xf32>
    %68 = vector.shape_cast %67 : vector<1x8x16x8xf32> to vector<8x16x8xf32>
    %c36_i32_57 = arith.constant 36 : i32
    %69 = arith.addi %0, %c36_i32_57 : i32
    %c0_58 = arith.constant 0 : index
    %70 = arith.index_cast %69 : i32 to index
    %c36_59 = arith.constant 36 : index
    %c0_60 = arith.constant 0 : index
    %71 = vector.load %arg3[%c0_58, %70, %c36_59, %c0_60] : memref<1x64x64x8xf32, #tpu.memory_space<vmem>>, vector<1x8x16x8xf32>
    %72 = vector.shape_cast %71 : vector<1x8x16x8xf32> to vector<8x16x8xf32>
    %c6_i32 = arith.constant 6 : i32
    %73 = arith.addi %0, %c6_i32 : i32
    %c0_61 = arith.constant 0 : index
    %74 = arith.index_cast %73 : i32 to index
    %c6 = arith.constant 6 : index
    %c0_62 = arith.constant 0 : index
    %75 = vector.load %arg3[%c0_61, %74, %c6, %c0_62] : memref<1x64x64x8xf32, #tpu.memory_space<vmem>>, vector<1x8x16x8xf32>
    %76 = vector.shape_cast %75 : vector<1x8x16x8xf32> to vector<8x16x8xf32>
    %c6_i32_63 = arith.constant 6 : i32
    %77 = arith.addi %0, %c6_i32_63 : i32
    %c0_64 = arith.constant 0 : index
    %78 = arith.index_cast %77 : i32 to index
    %c24_65 = arith.constant 24 : index
    %c0_66 = arith.constant 0 : index
    %79 = vector.load %arg3[%c0_64, %78, %c24_65, %c0_66] : memref<1x64x64x8xf32, #tpu.memory_space<vmem>>, vector<1x8x16x8xf32>
    %80 = vector.shape_cast %79 : vector<1x8x16x8xf32> to vector<8x16x8xf32>
    %c6_i32_67 = arith.constant 6 : i32
    %81 = arith.addi %0, %c6_i32_67 : i32
    %c0_68 = arith.constant 0 : index
    %82 = arith.index_cast %81 : i32 to index
    %c42 = arith.constant 42 : index
    %c0_69 = arith.constant 0 : index
    %83 = vector.load %arg3[%c0_68, %82, %c42, %c0_69] : memref<1x64x64x8xf32, #tpu.memory_space<vmem>>, vector<1x8x16x8xf32>
    %84 = vector.shape_cast %83 : vector<1x8x16x8xf32> to vector<8x16x8xf32>
    %c24_i32_70 = arith.constant 24 : i32
    %85 = arith.addi %0, %c24_i32_70 : i32
    %c0_71 = arith.constant 0 : index
    %86 = arith.index_cast %85 : i32 to index
    %c6_72 = arith.constant 6 : index
    %c0_73 = arith.constant 0 : index
    %87 = vector.load %arg3[%c0_71, %86, %c6_72, %c0_73] : memref<1x64x64x8xf32, #tpu.memory_space<vmem>>, vector<1x8x16x8xf32>
    %88 = vector.shape_cast %87 : vector<1x8x16x8xf32> to vector<8x16x8xf32>
    %c24_i32_74 = arith.constant 24 : i32
    %89 = arith.addi %0, %c24_i32_74 : i32
    %c0_75 = arith.constant 0 : index
    %90 = arith.index_cast %89 : i32 to index
    %c24_76 = arith.constant 24 : index
    %c0_77 = arith.constant 0 : index
    %91 = vector.load %arg3[%c0_75, %90, %c24_76, %c0_77] : memref<1x64x64x8xf32, #tpu.memory_space<vmem>>, vector<1x8x16x8xf32>
    %92 = vector.shape_cast %91 : vector<1x8x16x8xf32> to vector<8x16x8xf32>
    %c24_i32_78 = arith.constant 24 : i32
    %93 = arith.addi %0, %c24_i32_78 : i32
    %c0_79 = arith.constant 0 : index
    %94 = arith.index_cast %93 : i32 to index
    %c42_80 = arith.constant 42 : index
    %c0_81 = arith.constant 0 : index
    %95 = vector.load %arg3[%c0_79, %94, %c42_80, %c0_81] : memref<1x64x64x8xf32, #tpu.memory_space<vmem>>, vector<1x8x16x8xf32>
    %96 = vector.shape_cast %95 : vector<1x8x16x8xf32> to vector<8x16x8xf32>
    %c42_i32 = arith.constant 42 : i32
    %97 = arith.addi %0, %c42_i32 : i32
    %c0_82 = arith.constant 0 : index
    %98 = arith.index_cast %97 : i32 to index
    %c6_83 = arith.constant 6 : index
    %c0_84 = arith.constant 0 : index
    %99 = vector.load %arg3[%c0_82, %98, %c6_83, %c0_84] : memref<1x64x64x8xf32, #tpu.memory_space<vmem>>, vector<1x8x16x8xf32>
    %100 = vector.shape_cast %99 : vector<1x8x16x8xf32> to vector<8x16x8xf32>
    %c42_i32_85 = arith.constant 42 : i32
    %101 = arith.addi %0, %c42_i32_85 : i32
    %c0_86 = arith.constant 0 : index
    %102 = arith.index_cast %101 : i32 to index
    %c24_87 = arith.constant 24 : index
    %c0_88 = arith.constant 0 : index
    %103 = vector.load %arg3[%c0_86, %102, %c24_87, %c0_88] : memref<1x64x64x8xf32, #tpu.memory_space<vmem>>, vector<1x8x16x8xf32>
    %104 = vector.shape_cast %103 : vector<1x8x16x8xf32> to vector<8x16x8xf32>
    %c42_i32_89 = arith.constant 42 : i32
    %105 = arith.addi %0, %c42_i32_89 : i32
    %c0_90 = arith.constant 0 : index
    %106 = arith.index_cast %105 : i32 to index
    %c42_91 = arith.constant 42 : index
    %c0_92 = arith.constant 0 : index
    %107 = vector.load %arg3[%c0_90, %106, %c42_91, %c0_92] : memref<1x64x64x8xf32, #tpu.memory_space<vmem>>, vector<1x8x16x8xf32>
    %108 = vector.shape_cast %107 : vector<1x8x16x8xf32> to vector<8x16x8xf32>
    %c0_i32 = arith.constant 0 : i32
    %109 = arith.addi %0, %c0_i32 : i32
    %c0_93 = arith.constant 0 : index
    %110 = arith.index_cast %109 : i32 to index
    %c0_94 = arith.constant 0 : index
    %c0_95 = arith.constant 0 : index
    %111 = vector.load %arg3[%c0_93, %110, %c0_94, %c0_95] : memref<1x64x64x8xf32, #tpu.memory_space<vmem>>, vector<1x8x16x8xf32>
    %112 = vector.shape_cast %111 : vector<1x8x16x8xf32> to vector<8x16x8xf32>
    %c0_i32_96 = arith.constant 0 : i32
    %113 = arith.addi %0, %c0_i32_96 : i32
    %c0_97 = arith.constant 0 : index
    %114 = arith.index_cast %113 : i32 to index
    %c24_98 = arith.constant 24 : index
    %c0_99 = arith.constant 0 : index
    %115 = vector.load %arg3[%c0_97, %114, %c24_98, %c0_99] : memref<1x64x64x8xf32, #tpu.memory_space<vmem>>, vector<1x8x16x8xf32>
    %116 = vector.shape_cast %115 : vector<1x8x16x8xf32> to vector<8x16x8xf32>
    %c0_i32_100 = arith.constant 0 : i32
    %117 = arith.addi %0, %c0_i32_100 : i32
    %c0_101 = arith.constant 0 : index
    %118 = arith.index_cast %117 : i32 to index
    %c48 = arith.constant 48 : index
    %c0_102 = arith.constant 0 : index
    %119 = vector.load %arg3[%c0_101, %118, %c48, %c0_102] : memref<1x64x64x8xf32, #tpu.memory_space<vmem>>, vector<1x8x16x8xf32>
    %120 = vector.shape_cast %119 : vector<1x8x16x8xf32> to vector<8x16x8xf32>
    %c24_i32_103 = arith.constant 24 : i32
    %121 = arith.addi %0, %c24_i32_103 : i32
    %c0_104 = arith.constant 0 : index
    %122 = arith.index_cast %121 : i32 to index
    %c0_105 = arith.constant 0 : index
    %c0_106 = arith.constant 0 : index
    %123 = vector.load %arg3[%c0_104, %122, %c0_105, %c0_106] : memref<1x64x64x8xf32, #tpu.memory_space<vmem>>, vector<1x8x16x8xf32>
    %124 = vector.shape_cast %123 : vector<1x8x16x8xf32> to vector<8x16x8xf32>
    %c24_i32_107 = arith.constant 24 : i32
    %125 = arith.addi %0, %c24_i32_107 : i32
    %c0_108 = arith.constant 0 : index
    %126 = arith.index_cast %125 : i32 to index
    %c24_109 = arith.constant 24 : index
    %c0_110 = arith.constant 0 : index
    %127 = vector.load %arg3[%c0_108, %126, %c24_109, %c0_110] : memref<1x64x64x8xf32, #tpu.memory_space<vmem>>, vector<1x8x16x8xf32>
    %128 = vector.shape_cast %127 : vector<1x8x16x8xf32> to vector<8x16x8xf32>
    %c24_i32_111 = arith.constant 24 : i32
    %129 = arith.addi %0, %c24_i32_111 : i32
    %c0_112 = arith.constant 0 : index
    %130 = arith.index_cast %129 : i32 to index
    %c48_113 = arith.constant 48 : index
    %c0_114 = arith.constant 0 : index
    %131 = vector.load %arg3[%c0_112, %130, %c48_113, %c0_114] : memref<1x64x64x8xf32, #tpu.memory_space<vmem>>, vector<1x8x16x8xf32>
    %132 = vector.shape_cast %131 : vector<1x8x16x8xf32> to vector<8x16x8xf32>
    %c48_i32 = arith.constant 48 : i32
    %133 = arith.addi %0, %c48_i32 : i32
    %c0_115 = arith.constant 0 : index
    %134 = arith.index_cast %133 : i32 to index
    %c0_116 = arith.constant 0 : index
    %c0_117 = arith.constant 0 : index
    %135 = vector.load %arg3[%c0_115, %134, %c0_116, %c0_117] : memref<1x64x64x8xf32, #tpu.memory_space<vmem>>, vector<1x8x16x8xf32>
    %136 = vector.shape_cast %135 : vector<1x8x16x8xf32> to vector<8x16x8xf32>
    %c48_i32_118 = arith.constant 48 : i32
    %137 = arith.addi %0, %c48_i32_118 : i32
    %c0_119 = arith.constant 0 : index
    %138 = arith.index_cast %137 : i32 to index
    %c24_120 = arith.constant 24 : index
    %c0_121 = arith.constant 0 : index
    %139 = vector.load %arg3[%c0_119, %138, %c24_120, %c0_121] : memref<1x64x64x8xf32, #tpu.memory_space<vmem>>, vector<1x8x16x8xf32>
    %140 = vector.shape_cast %139 : vector<1x8x16x8xf32> to vector<8x16x8xf32>
    %c48_i32_122 = arith.constant 48 : i32
    %141 = arith.addi %0, %c48_i32_122 : i32
    %c0_123 = arith.constant 0 : index
    %142 = arith.index_cast %141 : i32 to index
    %c48_124 = arith.constant 48 : index
    %c0_125 = arith.constant 0 : index
    %143 = vector.load %arg3[%c0_123, %142, %c48_124, %c0_125] : memref<1x64x64x8xf32, #tpu.memory_space<vmem>>, vector<1x8x16x8xf32>
    %144 = vector.shape_cast %143 : vector<1x8x16x8xf32> to vector<8x16x8xf32>
    %145 = tpu.concatenate %4, %8, %12, %16, %20, %24, %28, %32, %36, %40, %44, %48, %52, %56, %60, %64 in 2 : vector<8x16x8xf32>, vector<8x16x8xf32>, vector<8x16x8xf32>, vector<8x16x8xf32>, vector<8x16x8xf32>, vector<8x16x8xf32>, vector<8x16x8xf32>, vector<8x16x8xf32>, vector<8x16x8xf32>, vector<8x16x8xf32>, vector<8x16x8xf32>, vector<8x16x8xf32>, vector<8x16x8xf32>, vector<8x16x8xf32>, vector<8x16x8xf32>, vector<8x16x8xf32> -> vector<8x16x128xf32>
    %146 = tpu.concatenate %68, %72, %76, %80, %84, %88, %92, %96, %100, %104, %108, %112, %116, %120, %124, %128 in 2 : vector<8x16x8xf32>, vector<8x16x8xf32>, vector<8x16x8xf32>, vector<8x16x8xf32>, vector<8x16x8xf32>, vector<8x16x8xf32>, vector<8x16x8xf32>, vector<8x16x8xf32>, vector<8x16x8xf32>, vector<8x16x8xf32>, vector<8x16x8xf32>, vector<8x16x8xf32>, vector<8x16x8xf32>, vector<8x16x8xf32>, vector<8x16x8xf32>, vector<8x16x8xf32> -> vector<8x16x128xf32>
    %147 = tpu.concatenate %132, %136, %140, %144 in 2 : vector<8x16x8xf32>, vector<8x16x8xf32>, vector<8x16x8xf32>, vector<8x16x8xf32> -> vector<8x16x32xf32>
    %148 = tpu.concatenate %145, %146, %147 in 2 : vector<8x16x128xf32>, vector<8x16x128xf32>, vector<8x16x32xf32> -> vector<8x16x288xf32>
    %149 = vector.shape_cast %148 : vector<8x16x288xf32> to vector<128x288xf32>
    %c0_126 = arith.constant 0 : index
    %c0_127 = arith.constant 0 : index
    %c0_128 = arith.constant 0 : index
    %150 = vector.load %arg4[%c0_126, %c0_127, %c0_128] : memref<1x288x128xf32, #tpu.memory_space<vmem>>, vector<1x288x128xf32>
    %151 = vector.shape_cast %150 : vector<1x288x128xf32> to vector<288x128xf32>
    %cst = arith.constant dense<0.000000e+00> : vector<128x128xf32>
    %152 = tpu.matmul %149, %151, %cst {dimension_numbers = #tpu.dot_dimension_numbers<[1], [0], [0], [1], [0, 0, 1, 1], [], []>} : vector<128x288xf32>, vector<288x128xf32>, vector<128x128xf32> -> vector<128x128xf32>
    %c0_i32_129 = arith.constant 0 : i32
    %153 = arith.cmpi eq, %arg2, %c0_i32_129 : i32
    %154 = arith.extui %153 : i1 to i32
    %c0_i32_130 = arith.constant 0 : i32
    %155 = arith.cmpi ne, %154, %c0_i32_130 : i32
    scf.if %155 {
      %c0_135 = arith.constant 0 : index
      %c0_136 = arith.constant 0 : index
      %162 = vector.load %arg5[%c0_135, %c0_136] : memref<1x128xf32, #tpu.memory_space<vmem>>, vector<1x128xf32>
      %163 = vector.broadcast %162 : vector<1x128xf32> to vector<128x128xf32>
      %164 = arith.addf %152, %163 : vector<128x128xf32>
      %c0_137 = arith.constant 0 : index
      %c0_138 = arith.constant 0 : index
      %165 = vector.load %arg7[%c0_137, %c0_138] : memref<128x128xf32, #tpu.memory_space<vmem>>, vector<128x128xf32>
      tpu.vector_store %arg7[%c0_137, %c0_138], %164 {strides = array<i32>} : memref<128x128xf32, #tpu.memory_space<vmem>>, vector<128x128xf32>,
    } else {
    }
    %c0_i32_131 = arith.constant 0 : i32
    %156 = arith.cmpi sgt, %arg2, %c0_i32_131 : i32
    %157 = arith.extui %156 : i1 to i32
    %c0_i32_132 = arith.constant 0 : i32
    %158 = arith.cmpi ne, %157, %c0_i32_132 : i32
    scf.if %158 {
      %c0_135 = arith.constant 0 : index
      %c0_136 = arith.constant 0 : index
      %162 = vector.load %arg7[%c0_135, %c0_136] : memref<128x128xf32, #tpu.memory_space<vmem>>, vector<128x128xf32>
      %163 = arith.addf %162, %152 : vector<128x128xf32>
      %c0_137 = arith.constant 0 : index
      %c0_138 = arith.constant 0 : index
      %164 = vector.load %arg7[%c0_137, %c0_138] : memref<128x128xf32, #tpu.memory_space<vmem>>, vector<128x128xf32>
      tpu.vector_store %arg7[%c0_137, %c0_138], %163 {strides = array<i32>} : memref<128x128xf32, #tpu.memory_space<vmem>>, vector<128x128xf32>,
    } else {
    }
    %c0_i32_133 = arith.constant 0 : i32
    %159 = arith.cmpi eq, %arg2, %c0_i32_133 : i32
    %160 = arith.extui %159 : i1 to i32
    %c0_i32_134 = arith.constant 0 : i32
    %161 = arith.cmpi ne, %160, %c0_i32_134 : i32
    scf.if %161 {
      %c0_135 = arith.constant 0 : index
      %c0_136 = arith.constant 0 : index
      %162 = vector.load %arg7[%c0_135, %c0_136] : memref<128x128xf32, #tpu.memory_space<vmem>>, vector<128x128xf32>
      %163 = vector.shape_cast %162 : vector<128x128xf32> to vector<8x16x128xf32>
      %c0_137 = arith.constant 0 : index
      %c0_138 = arith.constant 0 : index
      %c0_139 = arith.constant 0 : index
      %c0_140 = arith.constant 0 : index
      %164 = vector.load %arg6[%c0_137, %c0_138, %c0_139, %c0_140] : memref<1x8x16x128xf32, #tpu.memory_space<vmem>>, vector<1x8x16x128xf32>
      %165 = vector.shape_cast %164 : vector<1x8x16x128xf32> to vector<8x16x128xf32>
      %166 = vector.shape_cast %163 : vector<8x16x128xf32> to vector<1x8x16x128xf32>
      tpu.vector_store %arg6[%c0_137, %c0_138, %c0_139, %c0_140], %166 {strides = array<i32>} : memref<1x8x16x128xf32, #tpu.memory_space<vmem>>, vector<1x8x16x128xf32>,
    } else {
    }
    return
  }
  func.func @transform_0(%arg0: i32, %arg1: i32, %arg2: i32) -> (i32, i32, i32, i32) {
    %c0_i32 = arith.constant 0 : i32
    %c0_i32_0 = arith.constant 0 : i32
    %c0_i32_1 = arith.constant 0 : i32
    return %arg0, %c0_i32, %c0_i32_0, %arg2 : i32, i32, i32, i32
  }
  func.func @transform_1(%arg0: i32, %arg1: i32, %arg2: i32) -> (i32, i32, i32) {
    %c0_i32 = arith.constant 0 : i32
    %c0_i32_0 = arith.constant 0 : i32
    %c0_i32_1 = arith.constant 0 : i32
    return %arg2, %c0_i32, %c0_i32_0 : i32, i32, i32
  }
  func.func @transform_2(%arg0: i32, %arg1: i32, %arg2: i32) -> (i32, i32) {
    %c0_i32 = arith.constant 0 : i32
    %c0_i32_0 = arith.constant 0 : i32
    %c0_i32_1 = arith.constant 0 : i32
    return %c0_i32, %c0_i32_0 : i32, i32
  }
  func.func @transform_3(%arg0: i32, %arg1: i32, %arg2: i32) -> (i32, i32, i32, i32) {
    %c0_i32 = arith.constant 0 : i32
    %c0_i32_0 = arith.constant 0 : i32
    %c0_i32_1 = arith.constant 0 : i32
    return %arg0, %arg1, %c0_i32, %c0_i32_0 : i32, i32, i32, i32
  }
}

</mosaic_0001>

<llo_original>
// kernel: tpu_custom_call.1
$region0: #{tpu_custom_call.1}
  #allocation0 [shape = 'u32[]', space=smem, size = 0x4, offset = 0x4, fixed_abs, tag = 'smem constant byte address 0x4 - core index']
  #allocation1 [shape = 'u32[144,128]{1,0:T(1,128)}', space=vmem, size = 0x12000, scoped, tag = 'internal scratch']
  #allocation2 [shape = 'f32[128,128]{1,0:T(8,128)}', space=vmem, size = 0x10000, scoped, tag = 'scratch operand']
  %s0 = inlined_call_operand.vmem [shape: f32[2,64,64,8], index: 0, kind: input, shape index: {}]
  %s1 = inlined_call_operand.vmem [shape: f32[1,288,128], index: 1, kind: input, shape index: {}]
  %s2 = inlined_call_operand.vmem [shape: f32[1,128], index: 2, kind: input, shape index: {}]
  %s3 = inlined_call_operand.hbm [shape: f32[2,16,16,128], index: 3, kind: output, shape index: {}]
  %s4 = sld [smem:[#allocation0]]
  $region57: #{tpu_custom_call.1} parent=0
    _
  %s6 = ssub.s32 1, %s4
  %s7 = scalar_select 0, %s6, %s4
  $region1: #{tpu_custom_call.1} parent=0
    #allocation3 [shape = 'u8[131072]{0}', space=vmem, size = 0x20000, scoped, tag = 'output window, operand 0']
    #allocation4 [shape = 's32[2]{0}', space=sflag, size = 0x8, scoped, tag = 'scoped memory for tpu_custom_call.1']
    %8 = vsyncpa [#allocation4], 0
    %s9 = scalar_lea.sflag [#allocation4], 1
    %10 = vsyncpa %s9, 0
    loop: start=0, step=1, limit=6
    $region2: #{tpu_custom_call.1} parent=1 // loop_pre_header
      _
    $region3: #{tpu_custom_call.1} parent=1 // loop_header
      %s12 = sphi 0, %s16
      %p13 = scmp.ge.s32.totalorder %s12, 6
      %s19 = sphi 0, %s38
      %s20 = sphi 0, %s34
      %s21 = sphi 0, %s30
      %s22 = sphi 0, %s19
      %s23 = sphi 0, %s20
      %s24 = sphi 0, %s21
      %s25 = sphi 0, %s22
      %s26 = sphi 0, %s23
      %s27 = sphi 0, %s24
      %s43 = sphi 0, %s45
      %s46 = sphi 0, %s43
      %s47 = sphi 0, %s46
      %s63 = sphi 0, %s47
      %s69 = sphi 0, %s71
      %s72 = sphi 0, %s69
      %s73 = sphi 0, %s72
      %s89 = sphi 0, %s73
      %s93 = sphi 0, %s93
      %s95 = sphi 0, %s93
      %s96 = sphi 0, %s95
      %s110 = sphi 0, %s96
      %s118 = sphi 0, %s120
      %s121 = sphi 0, %s118
      %s122 = sphi 0, %s121
      %s138 = sphi 0, %s122
    $region4: #{tpu_custom_call.1} parent=1 // loop_header_branch
      %15 = sbr.rel (%p13) target = $region8
    $region5: #{tpu_custom_call.1} parent=1 // loop_body
      %s17 = ssub.s32 %s12, 1
      %s18 = ssub.s32 %s12, 2
      %s28 = sadd.s32 1, %s21
      %p29 = scmp.ge.s32.totalorder %s28, 1
      %s30 = scalar_select %p29, 0, %s28
      %s31 = sadd.s32 1, %s20
      %s32 = scalar_select %p29, %s31, %s20
      %p33 = scmp.ge.s32.totalorder %s32, 2
      %s34 = scalar_select %p33, 0, %s32
      %s35 = sadd.s32 1, %s19
      %s36 = scalar_select %p33, %s35, %s19
      %p37 = scmp.ge.s32.totalorder %s36, 2
      %s38 = scalar_select %p37, 0, %s36
      %s39 = ssub.s32 %s19, %s38
      %s40 = ssub.s32 %s21, %s30
      %s41 = sor.u32 %s39, %s40
      %p42 = scmp.eq.s32.totalorder %s41, 0
      %s44 = sadd.s32 %s43, 1
      %s45 = scalar_select %p42, %s43, %s44
      %p48 = pneg %p42
      %p49 = scmp.eq.s32.totalorder %s12, 3
      %p50 = por %p48, %p49
      %p51 = scmp.ne.s32.totalorder %s43, %s46
      %p52 = scmp.eq.s32.totalorder %s12, 0
      %p53 = por %p51, %p52
      %p54 = scmp.ne.s32.totalorder %s43, %s46
      %p55 = scmp.eq.s32.totalorder %s17, 3
      %p56 = por %p54, %p55
      %p57 = scmp.ne.s32.totalorder %s46, %s47
      %p58 = scmp.eq.s32.totalorder %s17, 0
      %p59 = por %p57, %p58
      %p60 = scmp.ne.s32.totalorder %s46, %s47
      %p61 = scmp.eq.s32.totalorder %s18, 3
      %p62 = por %p60, %p61
      %p64 = scmp.ne.s32.totalorder %s47, %s63
      %p65 = scmp.eq.s32.totalorder %s18, 0
      %p66 = por %p64, %p65
      %s67 = ssub.s32 %s21, %s30
      %p68 = scmp.eq.s32.totalorder %s67, 0
      %s70 = sadd.s32 %s69, 1
      %s71 = scalar_select %p68, %s69, %s70
      %p74 = pneg %p68
      %p75 = scmp.eq.s32.totalorder %s12, 3
      %p76 = por %p74, %p75
      %p77 = scmp.ne.s32.totalorder %s69, %s72
      %p78 = scmp.eq.s32.totalorder %s12, 0
      %p79 = por %p77, %p78
      %p80 = scmp.ne.s32.totalorder %s69, %s72
      %p81 = scmp.eq.s32.totalorder %s17, 3
      %p82 = por %p80, %p81
      %p83 = scmp.ne.s32.totalorder %s72, %s73
      %p84 = scmp.eq.s32.totalorder %s17, 0
      %p85 = por %p83, %p84
      %p86 = scmp.ne.s32.totalorder %s72, %s73
      %p87 = scmp.eq.s32.totalorder %s18, 3
      %p88 = por %p86, %p87
      %p90 = scmp.ne.s32.totalorder %s73, %s89
      %p91 = scmp.eq.s32.totalorder %s18, 0
      %p92 = por %p90, %p91
      %s94 = sadd.s32 %s93, 1
      %p97 = scmp.eq.s32.totalorder %s12, 3
      %p98 = scmp.ne.s32.totalorder %s93, %s95
      %p99 = scmp.eq.s32.totalorder %s12, 0
      %p100 = por %p98, %p99
      %p101 = scmp.ne.s32.totalorder %s93, %s95
      %p102 = scmp.eq.s32.totalorder %s17, 3
      %p103 = por %p101, %p102
      %p104 = scmp.ne.s32.totalorder %s95, %s96
      %p105 = scmp.eq.s32.totalorder %s17, 0
      %p106 = por %p104, %p105
      %p107 = scmp.ne.s32.totalorder %s95, %s96
      %p108 = scmp.eq.s32.totalorder %s18, 3
      %p109 = por %p107, %p108
      %p111 = scmp.ne.s32.totalorder %s96, %s110
      %p112 = scmp.eq.s32.totalorder %s18, 0
      %p113 = por %p111, %p112
      %s114 = ssub.s32 %s19, %s38
      %s115 = ssub.s32 %s20, %s34
      %s116 = sor.u32 %s114, %s115
      %p117 = scmp.eq.s32.totalorder %s116, 0
      %s119 = sadd.s32 %s118, 1
      %s120 = scalar_select %p117, %s118, %s119
      %p123 = pneg %p117
      %p124 = scmp.eq.s32.totalorder %s12, 3
      %p125 = por %p123, %p124
      %p126 = scmp.ne.s32.totalorder %s118, %s121
      %p127 = scmp.eq.s32.totalorder %s12, 0
      %p128 = por %p126, %p127
      %p129 = scmp.ne.s32.totalorder %s118, %s121
      %p130 = scmp.eq.s32.totalorder %s17, 3
      %p131 = por %p129, %p130
      %p132 = scmp.ne.s32.totalorder %s121, %s122
      %p133 = scmp.eq.s32.totalorder %s17, 0
      %p134 = por %p132, %p133
      %p135 = scmp.ne.s32.totalorder %s121, %s122
      %p136 = scmp.eq.s32.totalorder %s18, 3
      %p137 = por %p135, %p136
      %p139 = scmp.ne.s32.totalorder %s122, %s138
      %p140 = scmp.eq.s32.totalorder %s18, 0
      %p141 = por %p139, %p140
      %p142 = scmp.le.s32.totalorder 1, %s12
      %p143 = scmp.lt.s32.totalorder %s12, 5
      %p144 = pnand %p142, %p143
      %p145 = pneg %p144
      // Predicated region
      $region9: #{tpu_custom_call.1} parent=5 // pred_check
        _
      $region10: #{tpu_custom_call.1} parent=5 // pred_check_branch
        %147 = sbr.rel (%p144) target = $region12
      $region11: #{tpu_custom_call.1} parent=5 // pred_region
        %s148 = ssub.s32 %s12, 1
        // Predicated region
        $region13: #{tpu_custom_call.1} parent=11 // pred_check
          %p149 = pneg %p85
        $region14: #{tpu_custom_call.1} parent=11 // pred_check_branch
          %151 = sbr.rel (%p149) target = $region16
        $region15: #{tpu_custom_call.1} parent=11 // pred_region
          %p152 = scmp.lt.s32.totalorder %s24, 0
          %s153 = scalar_select %p152, %s24, 0
          %s154 = smul.addr %s153, 36
          %s155 = smul.addr %s154, 8
          %s156 = scalar_lea.vmem %s1, %s155
        $region16: #{tpu_custom_call.1} parent=11 // pred_fallthru
          _
        // Predicated region
        $region17: #{tpu_custom_call.1} parent=11 // pred_check
          %p157 = pneg %p106
        $region18: #{tpu_custom_call.1} parent=11 // pred_check_branch
          %159 = sbr.rel (%p157) target = $region20
        $region19: #{tpu_custom_call.1} parent=11 // pred_region
          _
        $region20: #{tpu_custom_call.1} parent=11 // pred_fallthru
          _
      $region12: #{tpu_custom_call.1} parent=5 // pred_fallthru
        _
      %p160 = scmp.lt.s32.totalorder %s12, 4
      // Predicated region
      $region21: #{tpu_custom_call.1} parent=5 // pred_check
        %p161 = pneg %p160
      $region22: #{tpu_custom_call.1} parent=5 // pred_check_branch
        %163 = sbr.rel (%p161) target = $region24
      $region23: #{tpu_custom_call.1} parent=5 // pred_region
        // Predicated region
        $region25: #{tpu_custom_call.1} parent=23 // pred_check
          %p164 = pneg %p53
        $region26: #{tpu_custom_call.1} parent=23 // pred_check_branch
          %166 = sbr.rel (%p164) target = $region28
        $region27: #{tpu_custom_call.1} parent=23 // pred_region
          %p167 = scmp.lt.s32.totalorder %s19, 1
          %s168 = scalar_select %p167, %s19, 1
          %p169 = scmp.lt.s32.totalorder %s21, 0
          %s170 = scalar_select %p169, %s21, 0
          %s171 = smul.addr %s168, 512
          %s172 = sadd.s32 %s170, %s171
          %s173 = smul.addr %s172, 8
          %s174 = scalar_lea.vmem %s0, %s173
        $region28: #{tpu_custom_call.1} parent=23 // pred_fallthru
          _
      $region24: #{tpu_custom_call.1} parent=5 // pred_fallthru
        _
      %p175 = scmp.le.s32.totalorder 1, %s12
      %p176 = scmp.lt.s32.totalorder %s12, 5
      %p177 = pnand %p175, %p176
      %p178 = pneg %p177
      // Predicated region
      $region29: #{tpu_custom_call.1} parent=5 // pred_check
        _
      $region30: #{tpu_custom_call.1} parent=5 // pred_check_branch
        %180 = sbr.rel (%p177) target = $region32
      $region31: #{tpu_custom_call.1} parent=5 // pred_region
        %s181 = ssub.s32 %s12, 1
        %p182 = scmp.lt.s32.totalorder %s22, 1
        %s183 = scalar_select %p182, %s22, 1
        %p184 = scmp.lt.s32.totalorder %s24, 0
        %s185 = scalar_select %p184, %s24, 0
        %s186 = smul.addr %s183, 512
        %s187 = sadd.s32 %s185, %s186
        %s188 = smul.addr %s187, 8
        %s189 = scalar_lea.vmem %s0, %s188
        %p190 = pneg %p59
        %p191 = pneg %p56
        %p192 = scmp.lt.s32.totalorder %s24, 0
        %s193 = scalar_select %p192, %s24, 0
        %s194 = smul.addr %s193, 36
        %s195 = smul.addr %s194, 8
        %s196 = scalar_lea.vmem %s1, %s195
        %p197 = pneg %p85
        %p198 = pneg %p82
        %p199 = pneg %p106
        %p200 = pneg %p103
        %p201 = pneg %p134
        %p202 = pneg %p131
        %s203 = sand.u32 %s121, 1
        %s204 = scalar_lea.sflag [#allocation4], %s203
        %s205 = sand.u32 %s121, 1
        %s206 = smul.addr %s205, 128
        %s207 = scalar_lea.vmem [#allocation3], %s206
        %p208 = scmp.lt.s32.totalorder %s22, 1
        %s209 = scalar_select %p208, %s22, 1
        %p210 = scmp.lt.s32.totalorder %s24, 0
        %s211 = scalar_select %p210, %s24, 0
        %s212 = smul.addr %s209, 512
        %s213 = sadd.s32 %s211, %s212
        %s214 = smul.addr %s213, 8
        %s215 = scalar_lea.vmem %s0, %s214
        %p216 = scmp.lt.s32.totalorder %s24, 0
        %s217 = scalar_select %p216, %s24, 0
        %s218 = smul.addr %s217, 36
        %s219 = smul.addr %s218, 8
        %s220 = scalar_lea.vmem %s1, %s219
        %s221 = smul.u32 8, %s23
        %s222 = smul.u32 %s23, 8
        %s223 = sadd.s32 %s222, 18
        %s224 = smul.u32 %s223, 64
        %s225 = scalar_lea.vmem %s215, %s224
        %v226 = vld [vmem:[%s225 + $0x12] sm:$0xff]
        %v227 = vld [vmem:[%s225 + $0x1a] sm:$0xff]
        %v228 = vld [vmem:[%s225 + $0x52] sm:$0xff]
        %v229 = vld [vmem:[%s225 + $0x5a] sm:$0xff]
        %v230 = vld [vmem:[%s225 + $0x92] sm:$0xff]
        %v231 = vld [vmem:[%s225 + $0x9a] sm:$0xff]
        %v232 = vld [vmem:[%s225 + $0xd2] sm:$0xff]
        %v233 = vld [vmem:[%s225 + $0xda] sm:$0xff]
        %v234 = vld [vmem:[%s225 + $0x112] sm:$0xff]
        %v235 = vld [vmem:[%s225 + $0x11a] sm:$0xff]
        %v236 = vld [vmem:[%s225 + $0x152] sm:$0xff]
        %v237 = vld [vmem:[%s225 + $0x15a] sm:$0xff]
        %v238 = vld [vmem:[%s225 + $0x192] sm:$0xff]
        %v239 = vld [vmem:[%s225 + $0x19a] sm:$0xff]
        %v240 = vld [vmem:[%s225 + $0x1d2] sm:$0xff]
        %v241 = vld [vmem:[%s225 + $0x1da] sm:$0xff]
        %v242 = vld [vmem:[%s225 + $0x18] sm:$0xff]
        %v243 = vld [vmem:[%s225 + $0x20] sm:$0xff]
        %v244 = vld [vmem:[%s225 + $0x58] sm:$0xff]
        %v245 = vld [vmem:[%s225 + $0x60] sm:$0xff]
        %v246 = vld [vmem:[%s225 + $0x98] sm:$0xff]
        %v247 = vld [vmem:[%s225 + $0xa0] sm:$0xff]
        %v248 = vld [vmem:[%s225 + $0xd8] sm:$0xff]
        %v249 = vld [vmem:[%s225 + $0xe0] sm:$0xff]
        %v250 = vld [vmem:[%s225 + $0x118] sm:$0xff]
        %v251 = vld [vmem:[%s225 + $0x120] sm:$0xff]
        %v252 = vld [vmem:[%s225 + $0x158] sm:$0xff]
        %v253 = vld [vmem:[%s225 + $0x160] sm:$0xff]
        %v254 = vld [vmem:[%s225 + $0x198] sm:$0xff]
        %v255 = vld [vmem:[%s225 + $0x1a0] sm:$0xff]
        %v256 = vld [vmem:[%s225 + $0x1d8] sm:$0xff]
        %v257 = vld [vmem:[%s225 + $0x1e0] sm:$0xff]
        %v258 = vld [vmem:[%s225 + $0x1e] sm:$0xff]
        %v259 = vld [vmem:[%s225 + $0x26] sm:$0xff]
        %v260 = vld [vmem:[%s225 + $0x5e] sm:$0xff]
        %v261 = vld [vmem:[%s225 + $0x66] sm:$0xff]
        %v262 = vld [vmem:[%s225 + $0x9e] sm:$0xff]
        %v263 = vld [vmem:[%s225 + $0xa6] sm:$0xff]
        %v264 = vld [vmem:[%s225 + $0xde] sm:$0xff]
        %v265 = vld [vmem:[%s225 + $0xe6] sm:$0xff]
        %v266 = vld [vmem:[%s225 + $0x11e] sm:$0xff]
        %v267 = vld [vmem:[%s225 + $0x126] sm:$0xff]
        %v268 = vld [vmem:[%s225 + $0x15e] sm:$0xff]
        %v269 = vld [vmem:[%s225 + $0x166] sm:$0xff]
        %v270 = vld [vmem:[%s225 + $0x19e] sm:$0xff]
        %v271 = vld [vmem:[%s225 + $0x1a6] sm:$0xff]
        %v272 = vld [vmem:[%s225 + $0x1de] sm:$0xff]
        %v273 = vld [vmem:[%s225 + $0x1e6] sm:$0xff]
        %s274 = sadd.s32 %s222, 24
        %s275 = smul.u32 %s274, 64
        %s276 = scalar_lea.vmem %s215, %s275
        %v277 = vld [vmem:[%s276 + $0x12] sm:$0xff]
        %v278 = vld [vmem:[%s276 + $0x1a] sm:$0xff]
        %v279 = vld [vmem:[%s276 + $0x52] sm:$0xff]
        %v280 = vld [vmem:[%s276 + $0x5a] sm:$0xff]
        %v281 = vld [vmem:[%s276 + $0x92] sm:$0xff]
        %v282 = vld [vmem:[%s276 + $0x9a] sm:$0xff]
        %v283 = vld [vmem:[%s276 + $0xd2] sm:$0xff]
        %v284 = vld [vmem:[%s276 + $0xda] sm:$0xff]
        %v285 = vld [vmem:[%s276 + $0x112] sm:$0xff]
        %v286 = vld [vmem:[%s276 + $0x11a] sm:$0xff]
        %v287 = vld [vmem:[%s276 + $0x152] sm:$0xff]
        %v288 = vld [vmem:[%s276 + $0x15a] sm:$0xff]
        %v289 = vld [vmem:[%s276 + $0x192] sm:$0xff]
        %v290 = vld [vmem:[%s276 + $0x19a] sm:$0xff]
        %v291 = vld [vmem:[%s276 + $0x1d2] sm:$0xff]
        %v292 = vld [vmem:[%s276 + $0x1da] sm:$0xff]
        %v293 = vld [vmem:[%s276 + $0x18] sm:$0xff]
        %v294 = vld [vmem:[%s276 + $0x20] sm:$0xff]
        %v295 = vld [vmem:[%s276 + $0x58] sm:$0xff]
        %v296 = vld [vmem:[%s276 + $0x60] sm:$0xff]
        %v297 = vld [vmem:[%s276 + $0x98] sm:$0xff]
        %v298 = vld [vmem:[%s276 + $0xa0] sm:$0xff]
        %v299 = vld [vmem:[%s276 + $0xd8] sm:$0xff]
        %v300 = vld [vmem:[%s276 + $0xe0] sm:$0xff]
        %v301 = vld [vmem:[%s276 + $0x118] sm:$0xff]
        %v302 = vld [vmem:[%s276 + $0x120] sm:$0xff]
        %v303 = vld [vmem:[%s276 + $0x158] sm:$0xff]
        %v304 = vld [vmem:[%s276 + $0x160] sm:$0xff]
        %v305 = vld [vmem:[%s276 + $0x198] sm:$0xff]
        %v306 = vld [vmem:[%s276 + $0x1a0] sm:$0xff]
        %v307 = vld [vmem:[%s276 + $0x1d8] sm:$0xff]
        %v308 = vld [vmem:[%s276 + $0x1e0] sm:$0xff]
        %v309 = vld [vmem:[%s276 + $0x1e] sm:$0xff]
        %v310 = vld [vmem:[%s276 + $0x26] sm:$0xff]
        %v311 = vld [vmem:[%s276 + $0x5e] sm:$0xff]
        %v312 = vld [vmem:[%s276 + $0x66] sm:$0xff]
        %v313 = vld [vmem:[%s276 + $0x9e] sm:$0xff]
        %v314 = vld [vmem:[%s276 + $0xa6] sm:$0xff]
        %v315 = vld [vmem:[%s276 + $0xde] sm:$0xff]
        %v316 = vld [vmem:[%s276 + $0xe6] sm:$0xff]
        %v317 = vld [vmem:[%s276 + $0x11e] sm:$0xff]
        %v318 = vld [vmem:[%s276 + $0x126] sm:$0xff]
        %v319 = vld [vmem:[%s276 + $0x15e] sm:$0xff]
        %v320 = vld [vmem:[%s276 + $0x166] sm:$0xff]
        %v321 = vld [vmem:[%s276 + $0x19e] sm:$0xff]
        %v322 = vld [vmem:[%s276 + $0x1a6] sm:$0xff]
        %v323 = vld [vmem:[%s276 + $0x1de] sm:$0xff]
        %v324 = vld [vmem:[%s276 + $0x1e6] sm:$0xff]
        %s325 = sadd.s32 %s222, 30
        %s326 = smul.u32 %s325, 64
        %s327 = scalar_lea.vmem %s215, %s326
        %v328 = vld [vmem:[%s327 + $0x12] sm:$0xff]
        %v329 = vld [vmem:[%s327 + $0x1a] sm:$0xff]
        %v330 = vld [vmem:[%s327 + $0x52] sm:$0xff]
        %v331 = vld [vmem:[%s327 + $0x5a] sm:$0xff]
        %v332 = vld [vmem:[%s327 + $0x92] sm:$0xff]
        %v333 = vld [vmem:[%s327 + $0x9a] sm:$0xff]
        %v334 = vld [vmem:[%s327 + $0xd2] sm:$0xff]
        %v335 = vld [vmem:[%s327 + $0xda] sm:$0xff]
        %v336 = vld [vmem:[%s327 + $0x112] sm:$0xff]
        %v337 = vld [vmem:[%s327 + $0x11a] sm:$0xff]
        %v338 = vld [vmem:[%s327 + $0x152] sm:$0xff]
        %v339 = vld [vmem:[%s327 + $0x15a] sm:$0xff]
        %v340 = vld [vmem:[%s327 + $0x192] sm:$0xff]
        %v341 = vld [vmem:[%s327 + $0x19a] sm:$0xff]
        %v342 = vld [vmem:[%s327 + $0x1d2] sm:$0xff]
        %v343 = vld [vmem:[%s327 + $0x1da] sm:$0xff]
        %v344 = vld [vmem:[%s327 + $0x18] sm:$0xff]
        %v345 = vld [vmem:[%s327 + $0x20] sm:$0xff]
        %v346 = vld [vmem:[%s327 + $0x58] sm:$0xff]
        %v347 = vld [vmem:[%s327 + $0x60] sm:$0xff]
        %v348 = vld [vmem:[%s327 + $0x98] sm:$0xff]
        %v349 = vld [vmem:[%s327 + $0xa0] sm:$0xff]
        %v350 = vld [vmem:[%s327 + $0xd8] sm:$0xff]
        %v351 = vld [vmem:[%s327 + $0xe0] sm:$0xff]
        %v352 = vld [vmem:[%s327 + $0x118] sm:$0xff]
        %v353 = vld [vmem:[%s327 + $0x120] sm:$0xff]
        %v354 = vld [vmem:[%s327 + $0x158] sm:$0xff]
        %v355 = vld [vmem:[%s327 + $0x160] sm:$0xff]
        %v356 = vld [vmem:[%s327 + $0x198] sm:$0xff]
        %v357 = vld [vmem:[%s327 + $0x1a0] sm:$0xff]
        %v358 = vld [vmem:[%s327 + $0x1d8] sm:$0xff]
        %v359 = vld [vmem:[%s327 + $0x1e0] sm:$0xff]
        %v360 = vld [vmem:[%s327 + $0x1e] sm:$0xff]
        %v361 = vld [vmem:[%s327 + $0x26] sm:$0xff]
        %v362 = vld [vmem:[%s327 + $0x5e] sm:$0xff]
        %v363 = vld [vmem:[%s327 + $0x66] sm:$0xff]
        %v364 = vld [vmem:[%s327 + $0x9e] sm:$0xff]
        %v365 = vld [vmem:[%s327 + $0xa6] sm:$0xff]
        %v366 = vld [vmem:[%s327 + $0xde] sm:$0xff]
        %v367 = vld [vmem:[%s327 + $0xe6] sm:$0xff]
        %v368 = vld [vmem:[%s327 + $0x11e] sm:$0xff]
        %v369 = vld [vmem:[%s327 + $0x126] sm:$0xff]
        %v370 = vld [vmem:[%s327 + $0x15e] sm:$0xff]
        %v371 = vld [vmem:[%s327 + $0x166] sm:$0xff]
        %v372 = vld [vmem:[%s327 + $0x19e] sm:$0xff]
        %v373 = vld [vmem:[%s327 + $0x1a6] sm:$0xff]
        %v374 = vld [vmem:[%s327 + $0x1de] sm:$0xff]
        %v375 = vld [vmem:[%s327 + $0x1e6] sm:$0xff]
        %s376 = sadd.s32 %s222, 12
        %s377 = smul.u32 %s376, 64
        %s378 = scalar_lea.vmem %s215, %s377
        %v379 = vld [vmem:[%s378 + $0xc] sm:$0xff]
        %v380 = vld [vmem:[%s378 + $0x14] sm:$0xff]
        %v381 = vld [vmem:[%s378 + $0x4c] sm:$0xff]
        %v382 = vld [vmem:[%s378 + $0x54] sm:$0xff]
        %v383 = vld [vmem:[%s378 + $0x8c] sm:$0xff]
        %v384 = vld [vmem:[%s378 + $0x94] sm:$0xff]
        %v385 = vld [vmem:[%s378 + $0xcc] sm:$0xff]
        %v386 = vld [vmem:[%s378 + $0xd4] sm:$0xff]
        %v387 = vld [vmem:[%s378 + $0x10c] sm:$0xff]
        %v388 = vld [vmem:[%s378 + $0x114] sm:$0xff]
        %v389 = vld [vmem:[%s378 + $0x14c] sm:$0xff]
        %v390 = vld [vmem:[%s378 + $0x154] sm:$0xff]
        %v391 = vld [vmem:[%s378 + $0x18c] sm:$0xff]
        %v392 = vld [vmem:[%s378 + $0x194] sm:$0xff]
        %v393 = vld [vmem:[%s378 + $0x1cc] sm:$0xff]
        %v394 = vld [vmem:[%s378 + $0x1d4] sm:$0xff]
        %v395 = vld [vmem:[%s378 + $0x18] sm:$0xff]
        %v396 = vld [vmem:[%s378 + $0x20] sm:$0xff]
        %v397 = vld [vmem:[%s378 + $0x58] sm:$0xff]
        %v398 = vld [vmem:[%s378 + $0x60] sm:$0xff]
        %v399 = vld [vmem:[%s378 + $0x98] sm:$0xff]
        %v400 = vld [vmem:[%s378 + $0xa0] sm:$0xff]
        %v401 = vld [vmem:[%s378 + $0xd8] sm:$0xff]
        %v402 = vld [vmem:[%s378 + $0xe0] sm:$0xff]
        %v403 = vld [vmem:[%s378 + $0x118] sm:$0xff]
        %v404 = vld [vmem:[%s378 + $0x120] sm:$0xff]
        %v405 = vld [vmem:[%s378 + $0x158] sm:$0xff]
        %v406 = vld [vmem:[%s378 + $0x160] sm:$0xff]
        %v407 = vld [vmem:[%s378 + $0x198] sm:$0xff]
        %v408 = vld [vmem:[%s378 + $0x1a0] sm:$0xff]
        %v409 = vld [vmem:[%s378 + $0x1d8] sm:$0xff]
        %v410 = vld [vmem:[%s378 + $0x1e0] sm:$0xff]
        %v411 = vld [vmem:[%s378 + $0x24] sm:$0xff]
        %v412 = vld [vmem:[%s378 + $0x2c] sm:$0xff]
        %v413 = vld [vmem:[%s378 + $0x64] sm:$0xff]
        %v414 = vld [vmem:[%s378 + $0x6c] sm:$0xff]
        %v415 = vld [vmem:[%s378 + $0xa4] sm:$0xff]
        %v416 = vld [vmem:[%s378 + $0xac] sm:$0xff]
        %v417 = vld [vmem:[%s378 + $0xe4] sm:$0xff]
        %v418 = vld [vmem:[%s378 + $0xec] sm:$0xff]
        %v419 = vld [vmem:[%s378 + $0x124] sm:$0xff]
        %v420 = vld [vmem:[%s378 + $0x12c] sm:$0xff]
        %v421 = vld [vmem:[%s378 + $0x164] sm:$0xff]
        %v422 = vld [vmem:[%s378 + $0x16c] sm:$0xff]
        %v423 = vld [vmem:[%s378 + $0x1a4] sm:$0xff]
        %v424 = vld [vmem:[%s378 + $0x1ac] sm:$0xff]
        %v425 = vld [vmem:[%s378 + $0x1e4] sm:$0xff]
        %v426 = vld [vmem:[%s378 + $0x1ec] sm:$0xff]
        %v427 = vld [vmem:[%s276 + $0xc] sm:$0xff]
        %v428 = vld [vmem:[%s276 + $0x14] sm:$0xff]
        %v429 = vld [vmem:[%s276 + $0x4c] sm:$0xff]
        %v430 = vld [vmem:[%s276 + $0x54] sm:$0xff]
        %v431 = vld [vmem:[%s276 + $0x8c] sm:$0xff]
        %v432 = vld [vmem:[%s276 + $0x94] sm:$0xff]
        %v433 = vld [vmem:[%s276 + $0xcc] sm:$0xff]
        %v434 = vld [vmem:[%s276 + $0xd4] sm:$0xff]
        %v435 = vld [vmem:[%s276 + $0x10c] sm:$0xff]
        %v436 = vld [vmem:[%s276 + $0x114] sm:$0xff]
        %v437 = vld [vmem:[%s276 + $0x14c] sm:$0xff]
        %v438 = vld [vmem:[%s276 + $0x154] sm:$0xff]
        %v439 = vld [vmem:[%s276 + $0x18c] sm:$0xff]
        %v440 = vld [vmem:[%s276 + $0x194] sm:$0xff]
        %v441 = vld [vmem:[%s276 + $0x1cc] sm:$0xff]
        %v442 = vld [vmem:[%s276 + $0x1d4] sm:$0xff]
        %v443 = vld [vmem:[%s276 + $0x24] sm:$0xff]
        %v444 = vld [vmem:[%s276 + $0x2c] sm:$0xff]
        %v445 = vld [vmem:[%s276 + $0x64] sm:$0xff]
        %v446 = vld [vmem:[%s276 + $0x6c] sm:$0xff]
        %v447 = vld [vmem:[%s276 + $0xa4] sm:$0xff]
        %v448 = vld [vmem:[%s276 + $0xac] sm:$0xff]
        %v449 = vld [vmem:[%s276 + $0xe4] sm:$0xff]
        %v450 = vld [vmem:[%s276 + $0xec] sm:$0xff]
        %v451 = vld [vmem:[%s276 + $0x124] sm:$0xff]
        %v452 = vld [vmem:[%s276 + $0x12c] sm:$0xff]
        %v453 = vld [vmem:[%s276 + $0x164] sm:$0xff]
        %v454 = vld [vmem:[%s276 + $0x16c] sm:$0xff]
        %v455 = vld [vmem:[%s276 + $0x1a4] sm:$0xff]
        %v456 = vld [vmem:[%s276 + $0x1ac] sm:$0xff]
        %v457 = vld [vmem:[%s276 + $0x1e4] sm:$0xff]
        %v458 = vld [vmem:[%s276 + $0x1ec] sm:$0xff]
        %s459 = sadd.s32 %s222, 36
        %s460 = smul.u32 %s459, 64
        %s461 = scalar_lea.vmem %s215, %s460
        %v462 = vld [vmem:[%s461 + $0xc] sm:$0xff]
        %v463 = vld [vmem:[%s461 + $0x14] sm:$0xff]
        %v464 = vld [vmem:[%s461 + $0x4c] sm:$0xff]
        %v465 = vld [vmem:[%s461 + $0x54] sm:$0xff]
        %v466 = vld [vmem:[%s461 + $0x8c] sm:$0xff]
        %v467 = vld [vmem:[%s461 + $0x94] sm:$0xff]
        %v468 = vld [vmem:[%s461 + $0xcc] sm:$0xff]
        %v469 = vld [vmem:[%s461 + $0xd4] sm:$0xff]
        %v470 = vld [vmem:[%s461 + $0x10c] sm:$0xff]
        %v471 = vld [vmem:[%s461 + $0x114] sm:$0xff]
        %v472 = vld [vmem:[%s461 + $0x14c] sm:$0xff]
        %v473 = vld [vmem:[%s461 + $0x154] sm:$0xff]
        %v474 = vld [vmem:[%s461 + $0x18c] sm:$0xff]
        %v475 = vld [vmem:[%s461 + $0x194] sm:$0xff]
        %v476 = vld [vmem:[%s461 + $0x1cc] sm:$0xff]
        %v477 = vld [vmem:[%s461 + $0x1d4] sm:$0xff]
        %v478 = vld [vmem:[%s461 + $0x18] sm:$0xff]
        %v479 = vld [vmem:[%s461 + $0x20] sm:$0xff]
        %v480 = vld [vmem:[%s461 + $0x58] sm:$0xff]
        %v481 = vld [vmem:[%s461 + $0x60] sm:$0xff]
        %v482 = vld [vmem:[%s461 + $0x98] sm:$0xff]
        %v483 = vld [vmem:[%s461 + $0xa0] sm:$0xff]
        %v484 = vld [vmem:[%s461 + $0xd8] sm:$0xff]
        %v485 = vld [vmem:[%s461 + $0xe0] sm:$0xff]
        %v486 = vld [vmem:[%s461 + $0x118] sm:$0xff]
        %v487 = vld [vmem:[%s461 + $0x120] sm:$0xff]
        %v488 = vld [vmem:[%s461 + $0x158] sm:$0xff]
        %v489 = vld [vmem:[%s461 + $0x160] sm:$0xff]
        %v490 = vld [vmem:[%s461 + $0x198] sm:$0xff]
        %v491 = vld [vmem:[%s461 + $0x1a0] sm:$0xff]
        %v492 = vld [vmem:[%s461 + $0x1d8] sm:$0xff]
        %v493 = vld [vmem:[%s461 + $0x1e0] sm:$0xff]
        %v494 = vld [vmem:[%s461 + $0x24] sm:$0xff]
        %v495 = vld [vmem:[%s461 + $0x2c] sm:$0xff]
        %v496 = vld [vmem:[%s461 + $0x64] sm:$0xff]
        %v497 = vld [vmem:[%s461 + $0x6c] sm:$0xff]
        %v498 = vld [vmem:[%s461 + $0xa4] sm:$0xff]
        %v499 = vld [vmem:[%s461 + $0xac] sm:$0xff]
        %v500 = vld [vmem:[%s461 + $0xe4] sm:$0xff]
        %v501 = vld [vmem:[%s461 + $0xec] sm:$0xff]
        %v502 = vld [vmem:[%s461 + $0x124] sm:$0xff]
        %v503 = vld [vmem:[%s461 + $0x12c] sm:$0xff]
        %v504 = vld [vmem:[%s461 + $0x164] sm:$0xff]
        %v505 = vld [vmem:[%s461 + $0x16c] sm:$0xff]
        %v506 = vld [vmem:[%s461 + $0x1a4] sm:$0xff]
        %v507 = vld [vmem:[%s461 + $0x1ac] sm:$0xff]
        %v508 = vld [vmem:[%s461 + $0x1e4] sm:$0xff]
        %v509 = vld [vmem:[%s461 + $0x1ec] sm:$0xff]
        %s510 = sadd.s32 %s222, 6
        %s511 = smul.u32 %s510, 64
        %s512 = scalar_lea.vmem %s215, %s511
        %v513 = vld [vmem:[%s512 + $0x6] sm:$0xff]
        %v514 = vld [vmem:[%s512 + $0xe] sm:$0xff]
        %v515 = vld [vmem:[%s512 + $0x46] sm:$0xff]
        %v516 = vld [vmem:[%s512 + $0x4e] sm:$0xff]
        %v517 = vld [vmem:[%s512 + $0x86] sm:$0xff]
        %v518 = vld [vmem:[%s512 + $0x8e] sm:$0xff]
        %v519 = vld [vmem:[%s512 + $0xc6] sm:$0xff]
        %v520 = vld [vmem:[%s512 + $0xce] sm:$0xff]
        %v521 = vld [vmem:[%s512 + $0x106] sm:$0xff]
        %v522 = vld [vmem:[%s512 + $0x10e] sm:$0xff]
        %v523 = vld [vmem:[%s512 + $0x146] sm:$0xff]
        %v524 = vld [vmem:[%s512 + $0x14e] sm:$0xff]
        %v525 = vld [vmem:[%s512 + $0x186] sm:$0xff]
        %v526 = vld [vmem:[%s512 + $0x18e] sm:$0xff]
        %v527 = vld [vmem:[%s512 + $0x1c6] sm:$0xff]
        %v528 = vld [vmem:[%s512 + $0x1ce] sm:$0xff]
        %v529 = vld [vmem:[%s512 + $0x18] sm:$0xff]
        %v530 = vld [vmem:[%s512 + $0x20] sm:$0xff]
        %v531 = vld [vmem:[%s512 + $0x58] sm:$0xff]
        %v532 = vld [vmem:[%s512 + $0x60] sm:$0xff]
        %v533 = vld [vmem:[%s512 + $0x98] sm:$0xff]
        %v534 = vld [vmem:[%s512 + $0xa0] sm:$0xff]
        %v535 = vld [vmem:[%s512 + $0xd8] sm:$0xff]
        %v536 = vld [vmem:[%s512 + $0xe0] sm:$0xff]
        %v537 = vld [vmem:[%s512 + $0x118] sm:$0xff]
        %v538 = vld [vmem:[%s512 + $0x120] sm:$0xff]
        %v539 = vld [vmem:[%s512 + $0x158] sm:$0xff]
        %v540 = vld [vmem:[%s512 + $0x160] sm:$0xff]
        %v541 = vld [vmem:[%s512 + $0x198] sm:$0xff]
        %v542 = vld [vmem:[%s512 + $0x1a0] sm:$0xff]
        %v543 = vld [vmem:[%s512 + $0x1d8] sm:$0xff]
        %v544 = vld [vmem:[%s512 + $0x1e0] sm:$0xff]
        %v545 = vld [vmem:[%s512 + $0x2a] sm:$0xff]
        %v546 = vld [vmem:[%s512 + $0x32] sm:$0xff]
        %v547 = vld [vmem:[%s512 + $0x6a] sm:$0xff]
        %v548 = vld [vmem:[%s512 + $0x72] sm:$0xff]
        %v549 = vld [vmem:[%s512 + $0xaa] sm:$0xff]
        %v550 = vld [vmem:[%s512 + $0xb2] sm:$0xff]
        %v551 = vld [vmem:[%s512 + $0xea] sm:$0xff]
        %v552 = vld [vmem:[%s512 + $0xf2] sm:$0xff]
        %v553 = vld [vmem:[%s512 + $0x12a] sm:$0xff]
        %v554 = vld [vmem:[%s512 + $0x132] sm:$0xff]
        %v555 = vld [vmem:[%s512 + $0x16a] sm:$0xff]
        %v556 = vld [vmem:[%s512 + $0x172] sm:$0xff]
        %v557 = vld [vmem:[%s512 + $0x1aa] sm:$0xff]
        %v558 = vld [vmem:[%s512 + $0x1b2] sm:$0xff]
        %v559 = vld [vmem:[%s512 + $0x1ea] sm:$0xff]
        %v560 = vld [vmem:[%s512 + $0x1f2] sm:$0xff]
        %v561 = vld [vmem:[%s276 + $0x6] sm:$0xff]
        %v562 = vld [vmem:[%s276 + $0xe] sm:$0xff]
        %v563 = vld [vmem:[%s276 + $0x46] sm:$0xff]
        %v564 = vld [vmem:[%s276 + $0x4e] sm:$0xff]
        %v565 = vld [vmem:[%s276 + $0x86] sm:$0xff]
        %v566 = vld [vmem:[%s276 + $0x8e] sm:$0xff]
        %v567 = vld [vmem:[%s276 + $0xc6] sm:$0xff]
        %v568 = vld [vmem:[%s276 + $0xce] sm:$0xff]
        %v569 = vld [vmem:[%s276 + $0x106] sm:$0xff]
        %v570 = vld [vmem:[%s276 + $0x10e] sm:$0xff]
        %v571 = vld [vmem:[%s276 + $0x146] sm:$0xff]
        %v572 = vld [vmem:[%s276 + $0x14e] sm:$0xff]
        %v573 = vld [vmem:[%s276 + $0x186] sm:$0xff]
        %v574 = vld [vmem:[%s276 + $0x18e] sm:$0xff]
        %v575 = vld [vmem:[%s276 + $0x1c6] sm:$0xff]
        %v576 = vld [vmem:[%s276 + $0x1ce] sm:$0xff]
        %v577 = vld [vmem:[%s276 + $0x2a] sm:$0xff]
        %v578 = vld [vmem:[%s276 + $0x32] sm:$0xff]
        %v579 = vld [vmem:[%s276 + $0x6a] sm:$0xff]
        %v580 = vld [vmem:[%s276 + $0x72] sm:$0xff]
        %v581 = vld [vmem:[%s276 + $0xaa] sm:$0xff]
        %v582 = vld [vmem:[%s276 + $0xb2] sm:$0xff]
        %v583 = vld [vmem:[%s276 + $0xea] sm:$0xff]
        %v584 = vld [vmem:[%s276 + $0xf2] sm:$0xff]
        %v585 = vld [vmem:[%s276 + $0x12a] sm:$0xff]
        %v586 = vld [vmem:[%s276 + $0x132] sm:$0xff]
        %v587 = vld [vmem:[%s276 + $0x16a] sm:$0xff]
        %v588 = vld [vmem:[%s276 + $0x172] sm:$0xff]
        %v589 = vld [vmem:[%s276 + $0x1aa] sm:$0xff]
        %v590 = vld [vmem:[%s276 + $0x1b2] sm:$0xff]
        %v591 = vld [vmem:[%s276 + $0x1ea] sm:$0xff]
        %v592 = vld [vmem:[%s276 + $0x1f2] sm:$0xff]
        %s593 = sadd.s32 %s222, 42
        %s594 = smul.u32 %s593, 64
        %s595 = scalar_lea.vmem %s215, %s594
        %v596 = vld [vmem:[%s595 + $0x6] sm:$0xff]
        %v597 = vld [vmem:[%s595 + $0xe] sm:$0xff]
        %v598 = vld [vmem:[%s595 + $0x46] sm:$0xff]
        %v599 = vld [vmem:[%s595 + $0x4e] sm:$0xff]
        %v600 = vld [vmem:[%s595 + $0x86] sm:$0xff]
        %v601 = vld [vmem:[%s595 + $0x8e] sm:$0xff]
        %v602 = vld [vmem:[%s595 + $0xc6] sm:$0xff]
        %v603 = vld [vmem:[%s595 + $0xce] sm:$0xff]
        %v604 = vld [vmem:[%s595 + $0x106] sm:$0xff]
        %v605 = vld [vmem:[%s595 + $0x10e] sm:$0xff]
        %v606 = vld [vmem:[%s595 + $0x146] sm:$0xff]
        %v607 = vld [vmem:[%s595 + $0x14e] sm:$0xff]
        %v608 = vld [vmem:[%s595 + $0x186] sm:$0xff]
        %v609 = vld [vmem:[%s595 + $0x18e] sm:$0xff]
        %v610 = vld [vmem:[%s595 + $0x1c6] sm:$0xff]
        %v611 = vld [vmem:[%s595 + $0x1ce] sm:$0xff]
        %v612 = vld [vmem:[%s595 + $0x18] sm:$0xff]
        %v613 = vld [vmem:[%s595 + $0x20] sm:$0xff]
        %v614 = vld [vmem:[%s595 + $0x58] sm:$0xff]
        %v615 = vld [vmem:[%s595 + $0x60] sm:$0xff]
        %v616 = vld [vmem:[%s595 + $0x98] sm:$0xff]
        %v617 = vld [vmem:[%s595 + $0xa0] sm:$0xff]
        %v618 = vld [vmem:[%s595 + $0xd8] sm:$0xff]
        %v619 = vld [vmem:[%s595 + $0xe0] sm:$0xff]
        %v620 = vld [vmem:[%s595 + $0x118] sm:$0xff]
        %v621 = vld [vmem:[%s595 + $0x120] sm:$0xff]
        %v622 = vld [vmem:[%s595 + $0x158] sm:$0xff]
        %v623 = vld [vmem:[%s595 + $0x160] sm:$0xff]
        %v624 = vld [vmem:[%s595 + $0x198] sm:$0xff]
        %v625 = vld [vmem:[%s595 + $0x1a0] sm:$0xff]
        %v626 = vld [vmem:[%s595 + $0x1d8] sm:$0xff]
        %v627 = vld [vmem:[%s595 + $0x1e0] sm:$0xff]
        %v628 = vld [vmem:[%s595 + $0x2a] sm:$0xff]
        %v629 = vld [vmem:[%s595 + $0x32] sm:$0xff]
        %v630 = vld [vmem:[%s595 + $0x6a] sm:$0xff]
        %v631 = vld [vmem:[%s595 + $0x72] sm:$0xff]
        %v632 = vld [vmem:[%s595 + $0xaa] sm:$0xff]
        %v633 = vld [vmem:[%s595 + $0xb2] sm:$0xff]
        %v634 = vld [vmem:[%s595 + $0xea] sm:$0xff]
        %v635 = vld [vmem:[%s595 + $0xf2] sm:$0xff]
        %v636 = vld [vmem:[%s595 + $0x12a] sm:$0xff]
        %v637 = vld [vmem:[%s595 + $0x132] sm:$0xff]
        %v638 = vld [vmem:[%s595 + $0x16a] sm:$0xff]
        %v639 = vld [vmem:[%s595 + $0x172] sm:$0xff]
        %v640 = vld [vmem:[%s595 + $0x1aa] sm:$0xff]
        %v641 = vld [vmem:[%s595 + $0x1b2] sm:$0xff]
        %v642 = vld [vmem:[%s595 + $0x1ea] sm:$0xff]
        %v643 = vld [vmem:[%s595 + $0x1f2] sm:$0xff]
        %s644 = smul.u32 %s222, 64
        %s645 = scalar_lea.vmem %s215, %s644
        %v646 = vld [vmem:[%s645] sm:$0xff]
        %v647 = vld [vmem:[%s645 + $0x8] sm:$0xff]
        %v648 = vld [vmem:[%s645 + $0x40] sm:$0xff]
        %v649 = vld [vmem:[%s645 + $0x48] sm:$0xff]
        %v650 = vld [vmem:[%s645 + $0x80] sm:$0xff]
        %v651 = vld [vmem:[%s645 + $0x88] sm:$0xff]
        %v652 = vld [vmem:[%s645 + $0xc0] sm:$0xff]
        %v653 = vld [vmem:[%s645 + $0xc8] sm:$0xff]
        %v654 = vld [vmem:[%s645 + $0x100] sm:$0xff]
        %v655 = vld [vmem:[%s645 + $0x108] sm:$0xff]
        %v656 = vld [vmem:[%s645 + $0x140] sm:$0xff]
        %v657 = vld [vmem:[%s645 + $0x148] sm:$0xff]
        %v658 = vld [vmem:[%s645 + $0x180] sm:$0xff]
        %v659 = vld [vmem:[%s645 + $0x188] sm:$0xff]
        %v660 = vld [vmem:[%s645 + $0x1c0] sm:$0xff]
        %v661 = vld [vmem:[%s645 + $0x1c8] sm:$0xff]
        %v662 = vld [vmem:[%s645 + $0x18] sm:$0xff]
        %v663 = vld [vmem:[%s645 + $0x20] sm:$0xff]
        %v664 = vld [vmem:[%s645 + $0x58] sm:$0xff]
        %v665 = vld [vmem:[%s645 + $0x60] sm:$0xff]
        %v666 = vld [vmem:[%s645 + $0x98] sm:$0xff]
        %v667 = vld [vmem:[%s645 + $0xa0] sm:$0xff]
        %v668 = vld [vmem:[%s645 + $0xd8] sm:$0xff]
        %v669 = vld [vmem:[%s645 + $0xe0] sm:$0xff]
        %v670 = vld [vmem:[%s645 + $0x118] sm:$0xff]
        %v671 = vld [vmem:[%s645 + $0x120] sm:$0xff]
        %v672 = vld [vmem:[%s645 + $0x158] sm:$0xff]
        %v673 = vld [vmem:[%s645 + $0x160] sm:$0xff]
        %v674 = vld [vmem:[%s645 + $0x198] sm:$0xff]
        %v675 = vld [vmem:[%s645 + $0x1a0] sm:$0xff]
        %v676 = vld [vmem:[%s645 + $0x1d8] sm:$0xff]
        %v677 = vld [vmem:[%s645 + $0x1e0] sm:$0xff]
        %v678 = vld [vmem:[%s645 + $0x30] sm:$0xff]
        %v679 = vld [vmem:[%s645 + $0x38] sm:$0xff]
        %v680 = vld [vmem:[%s645 + $0x70] sm:$0xff]
        %v681 = vld [vmem:[%s645 + $0x78] sm:$0xff]
        %v682 = vld [vmem:[%s645 + $0xb0] sm:$0xff]
        %v683 = vld [vmem:[%s645 + $0xb8] sm:$0xff]
        %v684 = vld [vmem:[%s645 + $0xf0] sm:$0xff]
        %v685 = vld [vmem:[%s645 + $0xf8] sm:$0xff]
        %v686 = vld [vmem:[%s645 + $0x130] sm:$0xff]
        %v687 = vld [vmem:[%s645 + $0x138] sm:$0xff]
        %v688 = vld [vmem:[%s645 + $0x170] sm:$0xff]
        %v689 = vld [vmem:[%s645 + $0x178] sm:$0xff]
        %v690 = vld [vmem:[%s645 + $0x1b0] sm:$0xff]
        %v691 = vld [vmem:[%s645 + $0x1b8] sm:$0xff]
        %v692 = vld [vmem:[%s645 + $0x1f0] sm:$0xff]
        %v693 = vld [vmem:[%s645 + $0x1f8] sm:$0xff]
        %v694 = vld [vmem:[%s276] sm:$0xff]
        %v695 = vld [vmem:[%s276 + $0x8] sm:$0xff]
        %v696 = vld [vmem:[%s276 + $0x40] sm:$0xff]
        %v697 = vld [vmem:[%s276 + $0x48] sm:$0xff]
        %v698 = vld [vmem:[%s276 + $0x80] sm:$0xff]
        %v699 = vld [vmem:[%s276 + $0x88] sm:$0xff]
        %v700 = vld [vmem:[%s276 + $0xc0] sm:$0xff]
        %v701 = vld [vmem:[%s276 + $0xc8] sm:$0xff]
        %v702 = vld [vmem:[%s276 + $0x100] sm:$0xff]
        %v703 = vld [vmem:[%s276 + $0x108] sm:$0xff]
        %v704 = vld [vmem:[%s276 + $0x140] sm:$0xff]
        %v705 = vld [vmem:[%s276 + $0x148] sm:$0xff]
        %v706 = vld [vmem:[%s276 + $0x180] sm:$0xff]
        %v707 = vld [vmem:[%s276 + $0x188] sm:$0xff]
        %v708 = vld [vmem:[%s276 + $0x1c0] sm:$0xff]
        %v709 = vld [vmem:[%s276 + $0x1c8] sm:$0xff]
        %v710 = vld [vmem:[%s276 + $0x30] sm:$0xff]
        %v711 = vld [vmem:[%s276 + $0x38] sm:$0xff]
        %v712 = vld [vmem:[%s276 + $0x70] sm:$0xff]
        %v713 = vld [vmem:[%s276 + $0x78] sm:$0xff]
        %v714 = vld [vmem:[%s276 + $0xb0] sm:$0xff]
        %v715 = vld [vmem:[%s276 + $0xb8] sm:$0xff]
        %v716 = vld [vmem:[%s276 + $0xf0] sm:$0xff]
        %v717 = vld [vmem:[%s276 + $0xf8] sm:$0xff]
        %v718 = vld [vmem:[%s276 + $0x130] sm:$0xff]
        %v719 = vld [vmem:[%s276 + $0x138] sm:$0xff]
        %v720 = vld [vmem:[%s276 + $0x170] sm:$0xff]
        %v721 = vld [vmem:[%s276 + $0x178] sm:$0xff]
        %v722 = vld [vmem:[%s276 + $0x1b0] sm:$0xff]
        %v723 = vld [vmem:[%s276 + $0x1b8] sm:$0xff]
        %v724 = vld [vmem:[%s276 + $0x1f0] sm:$0xff]
        %v725 = vld [vmem:[%s276 + $0x1f8] sm:$0xff]
        %s726 = sadd.s32 %s222, 48
        %s727 = smul.u32 %s726, 64
        %s728 = scalar_lea.vmem %s215, %s727
        %v729 = vld [vmem:[%s728] sm:$0xff]
        %v730 = vld [vmem:[%s728 + $0x8] sm:$0xff]
        %v731 = vld [vmem:[%s728 + $0x40] sm:$0xff]
        %v732 = vld [vmem:[%s728 + $0x48] sm:$0xff]
        %v733 = vld [vmem:[%s728 + $0x80] sm:$0xff]
        %v734 = vld [vmem:[%s728 + $0x88] sm:$0xff]
        %v735 = vld [vmem:[%s728 + $0xc0] sm:$0xff]
        %v736 = vld [vmem:[%s728 + $0xc8] sm:$0xff]
        %v737 = vld [vmem:[%s728 + $0x100] sm:$0xff]
        %v738 = vld [vmem:[%s728 + $0x108] sm:$0xff]
        %v739 = vld [vmem:[%s728 + $0x140] sm:$0xff]
        %v740 = vld [vmem:[%s728 + $0x148] sm:$0xff]
        %v741 = vld [vmem:[%s728 + $0x180] sm:$0xff]
        %v742 = vld [vmem:[%s728 + $0x188] sm:$0xff]
        %v743 = vld [vmem:[%s728 + $0x1c0] sm:$0xff]
        %v744 = vld [vmem:[%s728 + $0x1c8] sm:$0xff]
        %v745 = vld [vmem:[%s728 + $0x18] sm:$0xff]
        %v746 = vld [vmem:[%s728 + $0x20] sm:$0xff]
        %v747 = vld [vmem:[%s728 + $0x58] sm:$0xff]
        %v748 = vld [vmem:[%s728 + $0x60] sm:$0xff]
        %v749 = vld [vmem:[%s728 + $0x98] sm:$0xff]
        %v750 = vld [vmem:[%s728 + $0xa0] sm:$0xff]
        %v751 = vld [vmem:[%s728 + $0xd8] sm:$0xff]
        %v752 = vld [vmem:[%s728 + $0xe0] sm:$0xff]
        %v753 = vld [vmem:[%s728 + $0x118] sm:$0xff]
        %v754 = vld [vmem:[%s728 + $0x120] sm:$0xff]
        %v755 = vld [vmem:[%s728 + $0x158] sm:$0xff]
        %v756 = vld [vmem:[%s728 + $0x160] sm:$0xff]
        %v757 = vld [vmem:[%s728 + $0x198] sm:$0xff]
        %v758 = vld [vmem:[%s728 + $0x1a0] sm:$0xff]
        %v759 = vld [vmem:[%s728 + $0x1d8] sm:$0xff]
        %v760 = vld [vmem:[%s728 + $0x1e0] sm:$0xff]
        %v761 = vld [vmem:[%s728 + $0x30] sm:$0xff]
        %v762 = vld [vmem:[%s728 + $0x38] sm:$0xff]
        %v763 = vld [vmem:[%s728 + $0x70] sm:$0xff]
        %v764 = vld [vmem:[%s728 + $0x78] sm:$0xff]
        %v765 = vld [vmem:[%s728 + $0xb0] sm:$0xff]
        %v766 = vld [vmem:[%s728 + $0xb8] sm:$0xff]
        %v767 = vld [vmem:[%s728 + $0xf0] sm:$0xff]
        %v768 = vld [vmem:[%s728 + $0xf8] sm:$0xff]
        %v769 = vld [vmem:[%s728 + $0x130] sm:$0xff]
        %v770 = vld [vmem:[%s728 + $0x138] sm:$0xff]
        %v771 = vld [vmem:[%s728 + $0x170] sm:$0xff]
        %v772 = vld [vmem:[%s728 + $0x178] sm:$0xff]
        %v773 = vld [vmem:[%s728 + $0x1b0] sm:$0xff]
        %v774 = vld [vmem:[%s728 + $0x1b8] sm:$0xff]
        %v775 = vld [vmem:[%s728 + $0x1f0] sm:$0xff]
        %v776 = vld [vmem:[%s728 + $0x1f8] sm:$0xff]
        %793 = vrot.lane.b32.xlu0 %v242, 8
        %v794 = vpop.permute.xlu0 %793
        %795 = vrot.lane.b32.xlu0 %v243, 8
        %v796 = vpop.permute.xlu0 %795
        %797 = vrot.lane.b32.xlu0 %v244, 8
        %v798 = vpop.permute.xlu0 %797
        %799 = vrot.lane.b32.xlu0 %v245, 8
        %v800 = vpop.permute.xlu0 %799
        %801 = vrot.lane.b32.xlu0 %v246, 8
        %v802 = vpop.permute.xlu0 %801
        %803 = vrot.lane.b32.xlu0 %v247, 8
        %v804 = vpop.permute.xlu0 %803
        %805 = vrot.lane.b32.xlu0 %v248, 8
        %v806 = vpop.permute.xlu0 %805
        %807 = vrot.lane.b32.xlu0 %v249, 8
        %v808 = vpop.permute.xlu0 %807
        %809 = vrot.lane.b32.xlu0 %v250, 8
        %v810 = vpop.permute.xlu0 %809
        %811 = vrot.lane.b32.xlu0 %v251, 8
        %v812 = vpop.permute.xlu0 %811
        %813 = vrot.lane.b32.xlu0 %v252, 8
        %v814 = vpop.permute.xlu0 %813
        %815 = vrot.lane.b32.xlu0 %v253, 8
        %v816 = vpop.permute.xlu0 %815
        %817 = vrot.lane.b32.xlu0 %v254, 8
        %v818 = vpop.permute.xlu0 %817
        %819 = vrot.lane.b32.xlu0 %v255, 8
        %v820 = vpop.permute.xlu0 %819
        %821 = vrot.lane.b32.xlu0 %v256, 8
        %v822 = vpop.permute.xlu0 %821
        %823 = vrot.lane.b32.xlu0 %v257, 8
        %v824 = vpop.permute.xlu0 %823
        %857 = vrot.lane.b32.xlu0 %v258, 16
        %v858 = vpop.permute.xlu0 %857
        %859 = vrot.lane.b32.xlu0 %v259, 16
        %v860 = vpop.permute.xlu0 %859
        %861 = vrot.lane.b32.xlu0 %v260, 16
        %v862 = vpop.permute.xlu0 %861
        %863 = vrot.lane.b32.xlu0 %v261, 16
        %v864 = vpop.permute.xlu0 %863
        %865 = vrot.lane.b32.xlu0 %v262, 16
        %v866 = vpop.permute.xlu0 %865
        %867 = vrot.lane.b32.xlu0 %v263, 16
        %v868 = vpop.permute.xlu0 %867
        %869 = vrot.lane.b32.xlu0 %v264, 16
        %v870 = vpop.permute.xlu0 %869
        %871 = vrot.lane.b32.xlu0 %v265, 16
        %v872 = vpop.permute.xlu0 %871
        %873 = vrot.lane.b32.xlu0 %v266, 16
        %v874 = vpop.permute.xlu0 %873
        %875 = vrot.lane.b32.xlu0 %v267, 16
        %v876 = vpop.permute.xlu0 %875
        %877 = vrot.lane.b32.xlu0 %v268, 16
        %v878 = vpop.permute.xlu0 %877
        %879 = vrot.lane.b32.xlu0 %v269, 16
        %v880 = vpop.permute.xlu0 %879
        %881 = vrot.lane.b32.xlu0 %v270, 16
        %v882 = vpop.permute.xlu0 %881
        %883 = vrot.lane.b32.xlu0 %v271, 16
        %v884 = vpop.permute.xlu0 %883
        %885 = vrot.lane.b32.xlu0 %v272, 16
        %v886 = vpop.permute.xlu0 %885
        %887 = vrot.lane.b32.xlu0 %v273, 16
        %v888 = vpop.permute.xlu0 %887
        %921 = vrot.lane.b32.xlu0 %v277, 24
        %v922 = vpop.permute.xlu0 %921
        %923 = vrot.lane.b32.xlu0 %v278, 24
        %v924 = vpop.permute.xlu0 %923
        %925 = vrot.lane.b32.xlu0 %v279, 24
        %v926 = vpop.permute.xlu0 %925
        %927 = vrot.lane.b32.xlu0 %v280, 24
        %v928 = vpop.permute.xlu0 %927
        %929 = vrot.lane.b32.xlu0 %v281, 24
        %v930 = vpop.permute.xlu0 %929
        %931 = vrot.lane.b32.xlu0 %v282, 24
        %v932 = vpop.permute.xlu0 %931
        %933 = vrot.lane.b32.xlu0 %v283, 24
        %v934 = vpop.permute.xlu0 %933
        %935 = vrot.lane.b32.xlu0 %v284, 24
        %v936 = vpop.permute.xlu0 %935
        %937 = vrot.lane.b32.xlu0 %v285, 24
        %v938 = vpop.permute.xlu0 %937
        %939 = vrot.lane.b32.xlu0 %v286, 24
        %v940 = vpop.permute.xlu0 %939
        %941 = vrot.lane.b32.xlu0 %v287, 24
        %v942 = vpop.permute.xlu0 %941
        %943 = vrot.lane.b32.xlu0 %v288, 24
        %v944 = vpop.permute.xlu0 %943
        %945 = vrot.lane.b32.xlu0 %v289, 24
        %v946 = vpop.permute.xlu0 %945
        %947 = vrot.lane.b32.xlu0 %v290, 24
        %v948 = vpop.permute.xlu0 %947
        %949 = vrot.lane.b32.xlu0 %v291, 24
        %v950 = vpop.permute.xlu0 %949
        %951 = vrot.lane.b32.xlu0 %v292, 24
        %v952 = vpop.permute.xlu0 %951
        %985 = vrot.lane.b32.xlu0 %v293, 32
        %v986 = vpop.permute.xlu0 %985
        %987 = vrot.lane.b32.xlu0 %v294, 32
        %v988 = vpop.permute.xlu0 %987
        %989 = vrot.lane.b32.xlu0 %v295, 32
        %v990 = vpop.permute.xlu0 %989
        %991 = vrot.lane.b32.xlu0 %v296, 32
        %v992 = vpop.permute.xlu0 %991
        %993 = vrot.lane.b32.xlu0 %v297, 32
        %v994 = vpop.permute.xlu0 %993
        %995 = vrot.lane.b32.xlu0 %v298, 32
        %v996 = vpop.permute.xlu0 %995
        %997 = vrot.lane.b32.xlu0 %v299, 32
        %v998 = vpop.permute.xlu0 %997
        %999 = vrot.lane.b32.xlu0 %v300, 32
        %v1000 = vpop.permute.xlu0 %999
        %1001 = vrot.lane.b32.xlu0 %v301, 32
        %v1002 = vpop.permute.xlu0 %1001
        %1003 = vrot.lane.b32.xlu0 %v302, 32
        %v1004 = vpop.permute.xlu0 %1003
        %1005 = vrot.lane.b32.xlu0 %v303, 32
        %v1006 = vpop.permute.xlu0 %1005
        %1007 = vrot.lane.b32.xlu0 %v304, 32
        %v1008 = vpop.permute.xlu0 %1007
        %1009 = vrot.lane.b32.xlu0 %v305, 32
        %v1010 = vpop.permute.xlu0 %1009
        %1011 = vrot.lane.b32.xlu0 %v306, 32
        %v1012 = vpop.permute.xlu0 %1011
        %1013 = vrot.lane.b32.xlu0 %v307, 32
        %v1014 = vpop.permute.xlu0 %1013
        %1015 = vrot.lane.b32.xlu0 %v308, 32
        %v1016 = vpop.permute.xlu0 %1015
        %1049 = vrot.lane.b32.xlu0 %v309, 40
        %v1050 = vpop.permute.xlu0 %1049
        %1051 = vrot.lane.b32.xlu0 %v310, 40
        %v1052 = vpop.permute.xlu0 %1051
        %1053 = vrot.lane.b32.xlu0 %v311, 40
        %v1054 = vpop.permute.xlu0 %1053
        %1055 = vrot.lane.b32.xlu0 %v312, 40
        %v1056 = vpop.permute.xlu0 %1055
        %1057 = vrot.lane.b32.xlu0 %v313, 40
        %v1058 = vpop.permute.xlu0 %1057
        %1059 = vrot.lane.b32.xlu0 %v314, 40
        %v1060 = vpop.permute.xlu0 %1059
        %1061 = vrot.lane.b32.xlu0 %v315, 40
        %v1062 = vpop.permute.xlu0 %1061
        %1063 = vrot.lane.b32.xlu0 %v316, 40
        %v1064 = vpop.permute.xlu0 %1063
        %1065 = vrot.lane.b32.xlu0 %v317, 40
        %v1066 = vpop.permute.xlu0 %1065
        %1067 = vrot.lane.b32.xlu0 %v318, 40
        %v1068 = vpop.permute.xlu0 %1067
        %1069 = vrot.lane.b32.xlu0 %v319, 40
        %v1070 = vpop.permute.xlu0 %1069
        %1071 = vrot.lane.b32.xlu0 %v320, 40
        %v1072 = vpop.permute.xlu0 %1071
        %1073 = vrot.lane.b32.xlu0 %v321, 40
        %v1074 = vpop.permute.xlu0 %1073
        %1075 = vrot.lane.b32.xlu0 %v322, 40
        %v1076 = vpop.permute.xlu0 %1075
        %1077 = vrot.lane.b32.xlu0 %v323, 40
        %v1078 = vpop.permute.xlu0 %1077
        %1079 = vrot.lane.b32.xlu0 %v324, 40
        %v1080 = vpop.permute.xlu0 %1079
        %1113 = vrot.lane.b32.xlu0 %v328, 48
        %v1114 = vpop.permute.xlu0 %1113
        %1115 = vrot.lane.b32.xlu0 %v329, 48
        %v1116 = vpop.permute.xlu0 %1115
        %1117 = vrot.lane.b32.xlu0 %v330, 48
        %v1118 = vpop.permute.xlu0 %1117
        %1119 = vrot.lane.b32.xlu0 %v331, 48
        %v1120 = vpop.permute.xlu0 %1119
        %1121 = vrot.lane.b32.xlu0 %v332, 48
        %v1122 = vpop.permute.xlu0 %1121
        %1123 = vrot.lane.b32.xlu0 %v333, 48
        %v1124 = vpop.permute.xlu0 %1123
        %1125 = vrot.lane.b32.xlu0 %v334, 48
        %v1126 = vpop.permute.xlu0 %1125
        %1127 = vrot.lane.b32.xlu0 %v335, 48
        %v1128 = vpop.permute.xlu0 %1127
        %1129 = vrot.lane.b32.xlu0 %v336, 48
        %v1130 = vpop.permute.xlu0 %1129
        %1131 = vrot.lane.b32.xlu0 %v337, 48
        %v1132 = vpop.permute.xlu0 %1131
        %1133 = vrot.lane.b32.xlu0 %v338, 48
        %v1134 = vpop.permute.xlu0 %1133
        %1135 = vrot.lane.b32.xlu0 %v339, 48
        %v1136 = vpop.permute.xlu0 %1135
        %1137 = vrot.lane.b32.xlu0 %v340, 48
        %v1138 = vpop.permute.xlu0 %1137
        %1139 = vrot.lane.b32.xlu0 %v341, 48
        %v1140 = vpop.permute.xlu0 %1139
        %1141 = vrot.lane.b32.xlu0 %v342, 48
        %v1142 = vpop.permute.xlu0 %1141
        %1143 = vrot.lane.b32.xlu0 %v343, 48
        %v1144 = vpop.permute.xlu0 %1143
        %1177 = vrot.lane.b32.xlu0 %v344, 56
        %v1178 = vpop.permute.xlu0 %1177
        %1179 = vrot.lane.b32.xlu0 %v345, 56
        %v1180 = vpop.permute.xlu0 %1179
        %1181 = vrot.lane.b32.xlu0 %v346, 56
        %v1182 = vpop.permute.xlu0 %1181
        %1183 = vrot.lane.b32.xlu0 %v347, 56
        %v1184 = vpop.permute.xlu0 %1183
        %1185 = vrot.lane.b32.xlu0 %v348, 56
        %v1186 = vpop.permute.xlu0 %1185
        %1187 = vrot.lane.b32.xlu0 %v349, 56
        %v1188 = vpop.permute.xlu0 %1187
        %1189 = vrot.lane.b32.xlu0 %v350, 56
        %v1190 = vpop.permute.xlu0 %1189
        %1191 = vrot.lane.b32.xlu0 %v351, 56
        %v1192 = vpop.permute.xlu0 %1191
        %1193 = vrot.lane.b32.xlu0 %v352, 56
        %v1194 = vpop.permute.xlu0 %1193
        %1195 = vrot.lane.b32.xlu0 %v353, 56
        %v1196 = vpop.permute.xlu0 %1195
        %1197 = vrot.lane.b32.xlu0 %v354, 56
        %v1198 = vpop.permute.xlu0 %1197
        %1199 = vrot.lane.b32.xlu0 %v355, 56
        %v1200 = vpop.permute.xlu0 %1199
        %1201 = vrot.lane.b32.xlu0 %v356, 56
        %v1202 = vpop.permute.xlu0 %1201
        %1203 = vrot.lane.b32.xlu0 %v357, 56
        %v1204 = vpop.permute.xlu0 %1203
        %1205 = vrot.lane.b32.xlu0 %v358, 56
        %v1206 = vpop.permute.xlu0 %1205
        %1207 = vrot.lane.b32.xlu0 %v359, 56
        %v1208 = vpop.permute.xlu0 %1207
        %1241 = vrot.lane.b32.xlu0 %v360, 64
        %v1242 = vpop.permute.xlu0 %1241
        %1243 = vrot.lane.b32.xlu0 %v361, 64
        %v1244 = vpop.permute.xlu0 %1243
        %1245 = vrot.lane.b32.xlu0 %v362, 64
        %v1246 = vpop.permute.xlu0 %1245
        %1247 = vrot.lane.b32.xlu0 %v363, 64
        %v1248 = vpop.permute.xlu0 %1247
        %1249 = vrot.lane.b32.xlu0 %v364, 64
        %v1250 = vpop.permute.xlu0 %1249
        %1251 = vrot.lane.b32.xlu0 %v365, 64
        %v1252 = vpop.permute.xlu0 %1251
        %1253 = vrot.lane.b32.xlu0 %v366, 64
        %v1254 = vpop.permute.xlu0 %1253
        %1255 = vrot.lane.b32.xlu0 %v367, 64
        %v1256 = vpop.permute.xlu0 %1255
        %1257 = vrot.lane.b32.xlu0 %v368, 64
        %v1258 = vpop.permute.xlu0 %1257
        %1259 = vrot.lane.b32.xlu0 %v369, 64
        %v1260 = vpop.permute.xlu0 %1259
        %1261 = vrot.lane.b32.xlu0 %v370, 64
        %v1262 = vpop.permute.xlu0 %1261
        %1263 = vrot.lane.b32.xlu0 %v371, 64
        %v1264 = vpop.permute.xlu0 %1263
        %1265 = vrot.lane.b32.xlu0 %v372, 64
        %v1266 = vpop.permute.xlu0 %1265
        %1267 = vrot.lane.b32.xlu0 %v373, 64
        %v1268 = vpop.permute.xlu0 %1267
        %1269 = vrot.lane.b32.xlu0 %v374, 64
        %v1270 = vpop.permute.xlu0 %1269
        %1271 = vrot.lane.b32.xlu0 %v375, 64
        %v1272 = vpop.permute.xlu0 %1271
        %1305 = vrot.lane.b32.xlu0 %v379, 72
        %v1306 = vpop.permute.xlu0 %1305
        %1307 = vrot.lane.b32.xlu0 %v380, 72
        %v1308 = vpop.permute.xlu0 %1307
        %1309 = vrot.lane.b32.xlu0 %v381, 72
        %v1310 = vpop.permute.xlu0 %1309
        %1311 = vrot.lane.b32.xlu0 %v382, 72
        %v1312 = vpop.permute.xlu0 %1311
        %1313 = vrot.lane.b32.xlu0 %v383, 72
        %v1314 = vpop.permute.xlu0 %1313
        %1315 = vrot.lane.b32.xlu0 %v384, 72
        %v1316 = vpop.permute.xlu0 %1315
        %1317 = vrot.lane.b32.xlu0 %v385, 72
        %v1318 = vpop.permute.xlu0 %1317
        %1319 = vrot.lane.b32.xlu0 %v386, 72
        %v1320 = vpop.permute.xlu0 %1319
        %1321 = vrot.lane.b32.xlu0 %v387, 72
        %v1322 = vpop.permute.xlu0 %1321
        %1323 = vrot.lane.b32.xlu0 %v388, 72
        %v1324 = vpop.permute.xlu0 %1323
        %1325 = vrot.lane.b32.xlu0 %v389, 72
        %v1326 = vpop.permute.xlu0 %1325
        %1327 = vrot.lane.b32.xlu0 %v390, 72
        %v1328 = vpop.permute.xlu0 %1327
        %1329 = vrot.lane.b32.xlu0 %v391, 72
        %v1330 = vpop.permute.xlu0 %1329
        %1331 = vrot.lane.b32.xlu0 %v392, 72
        %v1332 = vpop.permute.xlu0 %1331
        %1333 = vrot.lane.b32.xlu0 %v393, 72
        %v1334 = vpop.permute.xlu0 %1333
        %1335 = vrot.lane.b32.xlu0 %v394, 72
        %v1336 = vpop.permute.xlu0 %1335
        %1369 = vrot.lane.b32.xlu0 %v395, 80
        %v1370 = vpop.permute.xlu0 %1369
        %1371 = vrot.lane.b32.xlu0 %v396, 80
        %v1372 = vpop.permute.xlu0 %1371
        %1373 = vrot.lane.b32.xlu0 %v397, 80
        %v1374 = vpop.permute.xlu0 %1373
        %1375 = vrot.lane.b32.xlu0 %v398, 80
        %v1376 = vpop.permute.xlu0 %1375
        %1377 = vrot.lane.b32.xlu0 %v399, 80
        %v1378 = vpop.permute.xlu0 %1377
        %1379 = vrot.lane.b32.xlu0 %v400, 80
        %v1380 = vpop.permute.xlu0 %1379
        %1381 = vrot.lane.b32.xlu0 %v401, 80
        %v1382 = vpop.permute.xlu0 %1381
        %1383 = vrot.lane.b32.xlu0 %v402, 80
        %v1384 = vpop.permute.xlu0 %1383
        %1385 = vrot.lane.b32.xlu0 %v403, 80
        %v1386 = vpop.permute.xlu0 %1385
        %1387 = vrot.lane.b32.xlu0 %v404, 80
        %v1388 = vpop.permute.xlu0 %1387
        %1389 = vrot.lane.b32.xlu0 %v405, 80
        %v1390 = vpop.permute.xlu0 %1389
        %1391 = vrot.lane.b32.xlu0 %v406, 80
        %v1392 = vpop.permute.xlu0 %1391
        %1393 = vrot.lane.b32.xlu0 %v407, 80
        %v1394 = vpop.permute.xlu0 %1393
        %1395 = vrot.lane.b32.xlu0 %v408, 80
        %v1396 = vpop.permute.xlu0 %1395
        %1397 = vrot.lane.b32.xlu0 %v409, 80
        %v1398 = vpop.permute.xlu0 %1397
        %1399 = vrot.lane.b32.xlu0 %v410, 80
        %v1400 = vpop.permute.xlu0 %1399
        %1433 = vrot.lane.b32.xlu0 %v411, 88
        %v1434 = vpop.permute.xlu0 %1433
        %1435 = vrot.lane.b32.xlu0 %v412, 88
        %v1436 = vpop.permute.xlu0 %1435
        %1437 = vrot.lane.b32.xlu0 %v413, 88
        %v1438 = vpop.permute.xlu0 %1437
        %1439 = vrot.lane.b32.xlu0 %v414, 88
        %v1440 = vpop.permute.xlu0 %1439
        %1441 = vrot.lane.b32.xlu0 %v415, 88
        %v1442 = vpop.permute.xlu0 %1441
        %1443 = vrot.lane.b32.xlu0 %v416, 88
        %v1444 = vpop.permute.xlu0 %1443
        %1445 = vrot.lane.b32.xlu0 %v417, 88
        %v1446 = vpop.permute.xlu0 %1445
        %1447 = vrot.lane.b32.xlu0 %v418, 88
        %v1448 = vpop.permute.xlu0 %1447
        %1449 = vrot.lane.b32.xlu0 %v419, 88
        %v1450 = vpop.permute.xlu0 %1449
        %1451 = vrot.lane.b32.xlu0 %v420, 88
        %v1452 = vpop.permute.xlu0 %1451
        %1453 = vrot.lane.b32.xlu0 %v421, 88
        %v1454 = vpop.permute.xlu0 %1453
        %1455 = vrot.lane.b32.xlu0 %v422, 88
        %v1456 = vpop.permute.xlu0 %1455
        %1457 = vrot.lane.b32.xlu0 %v423, 88
        %v1458 = vpop.permute.xlu0 %1457
        %1459 = vrot.lane.b32.xlu0 %v424, 88
        %v1460 = vpop.permute.xlu0 %1459
        %1461 = vrot.lane.b32.xlu0 %v425, 88
        %v1462 = vpop.permute.xlu0 %1461
        %1463 = vrot.lane.b32.xlu0 %v426, 88
        %v1464 = vpop.permute.xlu0 %1463
        %1497 = vrot.lane.b32.xlu0 %v427, 96
        %v1498 = vpop.permute.xlu0 %1497
        %1499 = vrot.lane.b32.xlu0 %v428, 96
        %v1500 = vpop.permute.xlu0 %1499
        %1501 = vrot.lane.b32.xlu0 %v429, 96
        %v1502 = vpop.permute.xlu0 %1501
        %1503 = vrot.lane.b32.xlu0 %v430, 96
        %v1504 = vpop.permute.xlu0 %1503
        %1505 = vrot.lane.b32.xlu0 %v431, 96
        %v1506 = vpop.permute.xlu0 %1505
        %1507 = vrot.lane.b32.xlu0 %v432, 96
        %v1508 = vpop.permute.xlu0 %1507
        %1509 = vrot.lane.b32.xlu0 %v433, 96
        %v1510 = vpop.permute.xlu0 %1509
        %1511 = vrot.lane.b32.xlu0 %v434, 96
        %v1512 = vpop.permute.xlu0 %1511
        %1513 = vrot.lane.b32.xlu0 %v435, 96
        %v1514 = vpop.permute.xlu0 %1513
        %1515 = vrot.lane.b32.xlu0 %v436, 96
        %v1516 = vpop.permute.xlu0 %1515
        %1517 = vrot.lane.b32.xlu0 %v437, 96
        %v1518 = vpop.permute.xlu0 %1517
        %1519 = vrot.lane.b32.xlu0 %v438, 96
        %v1520 = vpop.permute.xlu0 %1519
        %1521 = vrot.lane.b32.xlu0 %v439, 96
        %v1522 = vpop.permute.xlu0 %1521
        %1523 = vrot.lane.b32.xlu0 %v440, 96
        %v1524 = vpop.permute.xlu0 %1523
        %1525 = vrot.lane.b32.xlu0 %v441, 96
        %v1526 = vpop.permute.xlu0 %1525
        %1527 = vrot.lane.b32.xlu0 %v442, 96
        %v1528 = vpop.permute.xlu0 %1527
        %1545 = vrot.lane.b32.xlu0 %v293, 104
        %v1546 = vpop.permute.xlu0 %1545
        %1547 = vrot.lane.b32.xlu0 %v294, 104
        %v1548 = vpop.permute.xlu0 %1547
        %1549 = vrot.lane.b32.xlu0 %v295, 104
        %v1550 = vpop.permute.xlu0 %1549
        %1551 = vrot.lane.b32.xlu0 %v296, 104
        %v1552 = vpop.permute.xlu0 %1551
        %1553 = vrot.lane.b32.xlu0 %v297, 104
        %v1554 = vpop.permute.xlu0 %1553
        %1555 = vrot.lane.b32.xlu0 %v298, 104
        %v1556 = vpop.permute.xlu0 %1555
        %1557 = vrot.lane.b32.xlu0 %v299, 104
        %v1558 = vpop.permute.xlu0 %1557
        %1559 = vrot.lane.b32.xlu0 %v300, 104
        %v1560 = vpop.permute.xlu0 %1559
        %1561 = vrot.lane.b32.xlu0 %v301, 104
        %v1562 = vpop.permute.xlu0 %1561
        %1563 = vrot.lane.b32.xlu0 %v302, 104
        %v1564 = vpop.permute.xlu0 %1563
        %1565 = vrot.lane.b32.xlu0 %v303, 104
        %v1566 = vpop.permute.xlu0 %1565
        %1567 = vrot.lane.b32.xlu0 %v304, 104
        %v1568 = vpop.permute.xlu0 %1567
        %1569 = vrot.lane.b32.xlu0 %v305, 104
        %v1570 = vpop.permute.xlu0 %1569
        %1571 = vrot.lane.b32.xlu0 %v306, 104
        %v1572 = vpop.permute.xlu0 %1571
        %1573 = vrot.lane.b32.xlu0 %v307, 104
        %v1574 = vpop.permute.xlu0 %1573
        %1575 = vrot.lane.b32.xlu0 %v308, 104
        %v1576 = vpop.permute.xlu0 %1575
        %1609 = vrot.lane.b32.xlu0 %v443, 112
        %v1610 = vpop.permute.xlu0 %1609
        %1611 = vrot.lane.b32.xlu0 %v444, 112
        %v1612 = vpop.permute.xlu0 %1611
        %1613 = vrot.lane.b32.xlu0 %v445, 112
        %v1614 = vpop.permute.xlu0 %1613
        %1615 = vrot.lane.b32.xlu0 %v446, 112
        %v1616 = vpop.permute.xlu0 %1615
        %1617 = vrot.lane.b32.xlu0 %v447, 112
        %v1618 = vpop.permute.xlu0 %1617
        %1619 = vrot.lane.b32.xlu0 %v448, 112
        %v1620 = vpop.permute.xlu0 %1619
        %1621 = vrot.lane.b32.xlu0 %v449, 112
        %v1622 = vpop.permute.xlu0 %1621
        %1623 = vrot.lane.b32.xlu0 %v450, 112
        %v1624 = vpop.permute.xlu0 %1623
        %1625 = vrot.lane.b32.xlu0 %v451, 112
        %v1626 = vpop.permute.xlu0 %1625
        %1627 = vrot.lane.b32.xlu0 %v452, 112
        %v1628 = vpop.permute.xlu0 %1627
        %1629 = vrot.lane.b32.xlu0 %v453, 112
        %v1630 = vpop.permute.xlu0 %1629
        %1631 = vrot.lane.b32.xlu0 %v454, 112
        %v1632 = vpop.permute.xlu0 %1631
        %1633 = vrot.lane.b32.xlu0 %v455, 112
        %v1634 = vpop.permute.xlu0 %1633
        %1635 = vrot.lane.b32.xlu0 %v456, 112
        %v1636 = vpop.permute.xlu0 %1635
        %1637 = vrot.lane.b32.xlu0 %v457, 112
        %v1638 = vpop.permute.xlu0 %1637
        %1639 = vrot.lane.b32.xlu0 %v458, 112
        %v1640 = vpop.permute.xlu0 %1639
        %1673 = vrot.lane.b32.xlu0 %v462, 120
        %v1674 = vpop.permute.xlu0 %1673
        %1675 = vrot.lane.b32.xlu0 %v463, 120
        %v1676 = vpop.permute.xlu0 %1675
        %1677 = vrot.lane.b32.xlu0 %v464, 120
        %v1678 = vpop.permute.xlu0 %1677
        %1679 = vrot.lane.b32.xlu0 %v465, 120
        %v1680 = vpop.permute.xlu0 %1679
        %1681 = vrot.lane.b32.xlu0 %v466, 120
        %v1682 = vpop.permute.xlu0 %1681
        %1683 = vrot.lane.b32.xlu0 %v467, 120
        %v1684 = vpop.permute.xlu0 %1683
        %1685 = vrot.lane.b32.xlu0 %v468, 120
        %v1686 = vpop.permute.xlu0 %1685
        %1687 = vrot.lane.b32.xlu0 %v469, 120
        %v1688 = vpop.permute.xlu0 %1687
        %1689 = vrot.lane.b32.xlu0 %v470, 120
        %v1690 = vpop.permute.xlu0 %1689
        %1691 = vrot.lane.b32.xlu0 %v471, 120
        %v1692 = vpop.permute.xlu0 %1691
        %1693 = vrot.lane.b32.xlu0 %v472, 120
        %v1694 = vpop.permute.xlu0 %1693
        %1695 = vrot.lane.b32.xlu0 %v473, 120
        %v1696 = vpop.permute.xlu0 %1695
        %1697 = vrot.lane.b32.xlu0 %v474, 120
        %v1698 = vpop.permute.xlu0 %1697
        %1699 = vrot.lane.b32.xlu0 %v475, 120
        %v1700 = vpop.permute.xlu0 %1699
        %1701 = vrot.lane.b32.xlu0 %v476, 120
        %v1702 = vpop.permute.xlu0 %1701
        %1703 = vrot.lane.b32.xlu0 %v477, 120
        %v1704 = vpop.permute.xlu0 %1703
        %vm1721 = vcmask 64512
        %v1722 = vsel %vm1721, %v226, %v794
        %v1723 = vsel %vm1721, %v227, %v796
        %v1724 = vsel %vm1721, %v228, %v798
        %v1725 = vsel %vm1721, %v229, %v800
        %v1726 = vsel %vm1721, %v230, %v802
        %v1727 = vsel %vm1721, %v231, %v804
        %v1728 = vsel %vm1721, %v232, %v806
        %v1729 = vsel %vm1721, %v233, %v808
        %v1730 = vsel %vm1721, %v234, %v810
        %v1731 = vsel %vm1721, %v235, %v812
        %v1732 = vsel %vm1721, %v236, %v814
        %v1733 = vsel %vm1721, %v237, %v816
        %v1734 = vsel %vm1721, %v238, %v818
        %v1735 = vsel %vm1721, %v239, %v820
        %v1736 = vsel %vm1721, %v240, %v822
        %v1737 = vsel %vm1721, %v241, %v824
        %vm1738 = vcmask 130048
        %v1739 = vsel %vm1738, %v1722, %v858
        %v1740 = vsel %vm1738, %v1723, %v860
        %v1741 = vsel %vm1738, %v1724, %v862
        %v1742 = vsel %vm1738, %v1725, %v864
        %v1743 = vsel %vm1738, %v1726, %v866
        %v1744 = vsel %vm1738, %v1727, %v868
        %v1745 = vsel %vm1738, %v1728, %v870
        %v1746 = vsel %vm1738, %v1729, %v872
        %v1747 = vsel %vm1738, %v1730, %v874
        %v1748 = vsel %vm1738, %v1731, %v876
        %v1749 = vsel %vm1738, %v1732, %v878
        %v1750 = vsel %vm1738, %v1733, %v880
        %v1751 = vsel %vm1738, %v1734, %v882
        %v1752 = vsel %vm1738, %v1735, %v884
        %v1753 = vsel %vm1738, %v1736, %v886
        %v1754 = vsel %vm1738, %v1737, %v888
        %vm1755 = vcmask 195584
        %v1756 = vsel %vm1755, %v1739, %v922
        %v1757 = vsel %vm1755, %v1740, %v924
        %v1758 = vsel %vm1755, %v1741, %v926
        %v1759 = vsel %vm1755, %v1742, %v928
        %v1760 = vsel %vm1755, %v1743, %v930
        %v1761 = vsel %vm1755, %v1744, %v932
        %v1762 = vsel %vm1755, %v1745, %v934
        %v1763 = vsel %vm1755, %v1746, %v936
        %v1764 = vsel %vm1755, %v1747, %v938
        %v1765 = vsel %vm1755, %v1748, %v940
        %v1766 = vsel %vm1755, %v1749, %v942
        %v1767 = vsel %vm1755, %v1750, %v944
        %v1768 = vsel %vm1755, %v1751, %v946
        %v1769 = vsel %vm1755, %v1752, %v948
        %v1770 = vsel %vm1755, %v1753, %v950
        %v1771 = vsel %vm1755, %v1754, %v952
        %vm1772 = vcmask 261120
        %v1773 = vsel %vm1772, %v1756, %v986
        %v1774 = vsel %vm1772, %v1757, %v988
        %v1775 = vsel %vm1772, %v1758, %v990
        %v1776 = vsel %vm1772, %v1759, %v992
        %v1777 = vsel %vm1772, %v1760, %v994
        %v1778 = vsel %vm1772, %v1761, %v996
        %v1779 = vsel %vm1772, %v1762, %v998
        %v1780 = vsel %vm1772, %v1763, %v1000
        %v1781 = vsel %vm1772, %v1764, %v1002
        %v1782 = vsel %vm1772, %v1765, %v1004
        %v1783 = vsel %vm1772, %v1766, %v1006
        %v1784 = vsel %vm1772, %v1767, %v1008
        %v1785 = vsel %vm1772, %v1768, %v1010
        %v1786 = vsel %vm1772, %v1769, %v1012
        %v1787 = vsel %vm1772, %v1770, %v1014
        %v1788 = vsel %vm1772, %v1771, %v1016
        %vm1789 = vcmask 326656
        %v1790 = vsel %vm1789, %v1773, %v1050
        %v1791 = vsel %vm1789, %v1774, %v1052
        %v1792 = vsel %vm1789, %v1775, %v1054
        %v1793 = vsel %vm1789, %v1776, %v1056
        %v1794 = vsel %vm1789, %v1777, %v1058
        %v1795 = vsel %vm1789, %v1778, %v1060
        %v1796 = vsel %vm1789, %v1779, %v1062
        %v1797 = vsel %vm1789, %v1780, %v1064
        %v1798 = vsel %vm1789, %v1781, %v1066
        %v1799 = vsel %vm1789, %v1782, %v1068
        %v1800 = vsel %vm1789, %v1783, %v1070
        %v1801 = vsel %vm1789, %v1784, %v1072
        %v1802 = vsel %vm1789, %v1785, %v1074
        %v1803 = vsel %vm1789, %v1786, %v1076
        %v1804 = vsel %vm1789, %v1787, %v1078
        %v1805 = vsel %vm1789, %v1788, %v1080
        %vm1806 = vcmask 392192
        %v1807 = vsel %vm1806, %v1790, %v1114
        %v1808 = vsel %vm1806, %v1791, %v1116
        %v1809 = vsel %vm1806, %v1792, %v1118
        %v1810 = vsel %vm1806, %v1793, %v1120
        %v1811 = vsel %vm1806, %v1794, %v1122
        %v1812 = vsel %vm1806, %v1795, %v1124
        %v1813 = vsel %vm1806, %v1796, %v1126
        %v1814 = vsel %vm1806, %v1797, %v1128
        %v1815 = vsel %vm1806, %v1798, %v1130
        %v1816 = vsel %vm1806, %v1799, %v1132
        %v1817 = vsel %vm1806, %v1800, %v1134
        %v1818 = vsel %vm1806, %v1801, %v1136
        %v1819 = vsel %vm1806, %v1802, %v1138
        %v1820 = vsel %vm1806, %v1803, %v1140
        %v1821 = vsel %vm1806, %v1804, %v1142
        %v1822 = vsel %vm1806, %v1805, %v1144
        %vm1823 = vcmask 457728
        %v1824 = vsel %vm1823, %v1807, %v1178
        %v1825 = vsel %vm1823, %v1808, %v1180
        %v1826 = vsel %vm1823, %v1809, %v1182
        %v1827 = vsel %vm1823, %v1810, %v1184
        %v1828 = vsel %vm1823, %v1811, %v1186
        %v1829 = vsel %vm1823, %v1812, %v1188
        %v1830 = vsel %vm1823, %v1813, %v1190
        %v1831 = vsel %vm1823, %v1814, %v1192
        %v1832 = vsel %vm1823, %v1815, %v1194
        %v1833 = vsel %vm1823, %v1816, %v1196
        %v1834 = vsel %vm1823, %v1817, %v1198
        %v1835 = vsel %vm1823, %v1818, %v1200
        %v1836 = vsel %vm1823, %v1819, %v1202
        %v1837 = vsel %vm1823, %v1820, %v1204
        %v1838 = vsel %vm1823, %v1821, %v1206
        %v1839 = vsel %vm1823, %v1822, %v1208
        %vm1840 = vcmask 523264
        %v1841 = vsel %vm1840, %v1824, %v1242
        %v1842 = vsel %vm1840, %v1825, %v1244
        %v1843 = vsel %vm1840, %v1826, %v1246
        %v1844 = vsel %vm1840, %v1827, %v1248
        %v1845 = vsel %vm1840, %v1828, %v1250
        %v1846 = vsel %vm1840, %v1829, %v1252
        %v1847 = vsel %vm1840, %v1830, %v1254
        %v1848 = vsel %vm1840, %v1831, %v1256
        %v1849 = vsel %vm1840, %v1832, %v1258
        %v1850 = vsel %vm1840, %v1833, %v1260
        %v1851 = vsel %vm1840, %v1834, %v1262
        %v1852 = vsel %vm1840, %v1835, %v1264
        %v1853 = vsel %vm1840, %v1836, %v1266
        %v1854 = vsel %vm1840, %v1837, %v1268
        %v1855 = vsel %vm1840, %v1838, %v1270
        %v1856 = vsel %vm1840, %v1839, %v1272
        %vm1857 = vcmask 588800
        %v1858 = vsel %vm1857, %v1841, %v1306
        %v1859 = vsel %vm1857, %v1842, %v1308
        %v1860 = vsel %vm1857, %v1843, %v1310
        %v1861 = vsel %vm1857, %v1844, %v1312
        %v1862 = vsel %vm1857, %v1845, %v1314
        %v1863 = vsel %vm1857, %v1846, %v1316
        %v1864 = vsel %vm1857, %v1847, %v1318
        %v1865 = vsel %vm1857, %v1848, %v1320
        %v1866 = vsel %vm1857, %v1849, %v1322
        %v1867 = vsel %vm1857, %v1850, %v1324
        %v1868 = vsel %vm1857, %v1851, %v1326
        %v1869 = vsel %vm1857, %v1852, %v1328
        %v1870 = vsel %vm1857, %v1853, %v1330
        %v1871 = vsel %vm1857, %v1854, %v1332
        %v1872 = vsel %vm1857, %v1855, %v1334
        %v1873 = vsel %vm1857, %v1856, %v1336
        %vm1874 = vcmask 654336
        %v1875 = vsel %vm1874, %v1858, %v1370
        %v1876 = vsel %vm1874, %v1859, %v1372
        %v1877 = vsel %vm1874, %v1860, %v1374
        %v1878 = vsel %vm1874, %v1861, %v1376
        %v1879 = vsel %vm1874, %v1862, %v1378
        %v1880 = vsel %vm1874, %v1863, %v1380
        %v1881 = vsel %vm1874, %v1864, %v1382
        %v1882 = vsel %vm1874, %v1865, %v1384
        %v1883 = vsel %vm1874, %v1866, %v1386
        %v1884 = vsel %vm1874, %v1867, %v1388
        %v1885 = vsel %vm1874, %v1868, %v1390
        %v1886 = vsel %vm1874, %v1869, %v1392
        %v1887 = vsel %vm1874, %v1870, %v1394
        %v1888 = vsel %vm1874, %v1871, %v1396
        %v1889 = vsel %vm1874, %v1872, %v1398
        %v1890 = vsel %vm1874, %v1873, %v1400
        %vm1891 = vcmask 719872
        %v1892 = vsel %vm1891, %v1875, %v1434
        %v1893 = vsel %vm1891, %v1876, %v1436
        %v1894 = vsel %vm1891, %v1877, %v1438
        %v1895 = vsel %vm1891, %v1878, %v1440
        %v1896 = vsel %vm1891, %v1879, %v1442
        %v1897 = vsel %vm1891, %v1880, %v1444
        %v1898 = vsel %vm1891, %v1881, %v1446
        %v1899 = vsel %vm1891, %v1882, %v1448
        %v1900 = vsel %vm1891, %v1883, %v1450
        %v1901 = vsel %vm1891, %v1884, %v1452
        %v1902 = vsel %vm1891, %v1885, %v1454
        %v1903 = vsel %vm1891, %v1886, %v1456
        %v1904 = vsel %vm1891, %v1887, %v1458
        %v1905 = vsel %vm1891, %v1888, %v1460
        %v1906 = vsel %vm1891, %v1889, %v1462
        %v1907 = vsel %vm1891, %v1890, %v1464
        %vm1908 = vcmask 785408
        %v1909 = vsel %vm1908, %v1892, %v1498
        %v1910 = vsel %vm1908, %v1893, %v1500
        %v1911 = vsel %vm1908, %v1894, %v1502
        %v1912 = vsel %vm1908, %v1895, %v1504
        %v1913 = vsel %vm1908, %v1896, %v1506
        %v1914 = vsel %vm1908, %v1897, %v1508
        %v1915 = vsel %vm1908, %v1898, %v1510
        %v1916 = vsel %vm1908, %v1899, %v1512
        %v1917 = vsel %vm1908, %v1900, %v1514
        %v1918 = vsel %vm1908, %v1901, %v1516
        %v1919 = vsel %vm1908, %v1902, %v1518
        %v1920 = vsel %vm1908, %v1903, %v1520
        %v1921 = vsel %vm1908, %v1904, %v1522
        %v1922 = vsel %vm1908, %v1905, %v1524
        %v1923 = vsel %vm1908, %v1906, %v1526
        %v1924 = vsel %vm1908, %v1907, %v1528
        %vm1925 = vcmask 850944
        %v1926 = vsel %vm1925, %v1909, %v1546
        %v1927 = vsel %vm1925, %v1910, %v1548
        %v1928 = vsel %vm1925, %v1911, %v1550
        %v1929 = vsel %vm1925, %v1912, %v1552
        %v1930 = vsel %vm1925, %v1913, %v1554
        %v1931 = vsel %vm1925, %v1914, %v1556
        %v1932 = vsel %vm1925, %v1915, %v1558
        %v1933 = vsel %vm1925, %v1916, %v1560
        %v1934 = vsel %vm1925, %v1917, %v1562
        %v1935 = vsel %vm1925, %v1918, %v1564
        %v1936 = vsel %vm1925, %v1919, %v1566
        %v1937 = vsel %vm1925, %v1920, %v1568
        %v1938 = vsel %vm1925, %v1921, %v1570
        %v1939 = vsel %vm1925, %v1922, %v1572
        %v1940 = vsel %vm1925, %v1923, %v1574
        %v1941 = vsel %vm1925, %v1924, %v1576
        %vm1942 = vcmask 916480
        %v1943 = vsel %vm1942, %v1926, %v1610
        %v1944 = vsel %vm1942, %v1927, %v1612
        %v1945 = vsel %vm1942, %v1928, %v1614
        %v1946 = vsel %vm1942, %v1929, %v1616
        %v1947 = vsel %vm1942, %v1930, %v1618
        %v1948 = vsel %vm1942, %v1931, %v1620
        %v1949 = vsel %vm1942, %v1932, %v1622
        %v1950 = vsel %vm1942, %v1933, %v1624
        %v1951 = vsel %vm1942, %v1934, %v1626
        %v1952 = vsel %vm1942, %v1935, %v1628
        %v1953 = vsel %vm1942, %v1936, %v1630
        %v1954 = vsel %vm1942, %v1937, %v1632
        %v1955 = vsel %vm1942, %v1938, %v1634
        %v1956 = vsel %vm1942, %v1939, %v1636
        %v1957 = vsel %vm1942, %v1940, %v1638
        %v1958 = vsel %vm1942, %v1941, %v1640
        %vm1959 = vcmask 982016
        %v1960 = vsel %vm1959, %v1943, %v1674
        %v1961 = vsel %vm1959, %v1944, %v1676
        %v1962 = vsel %vm1959, %v1945, %v1678
        %v1963 = vsel %vm1959, %v1946, %v1680
        %v1964 = vsel %vm1959, %v1947, %v1682
        %v1965 = vsel %vm1959, %v1948, %v1684
        %v1966 = vsel %vm1959, %v1949, %v1686
        %v1967 = vsel %vm1959, %v1950, %v1688
        %v1968 = vsel %vm1959, %v1951, %v1690
        %v1969 = vsel %vm1959, %v1952, %v1692
        %v1970 = vsel %vm1959, %v1953, %v1694
        %v1971 = vsel %vm1959, %v1954, %v1696
        %v1972 = vsel %vm1959, %v1955, %v1698
        %v1973 = vsel %vm1959, %v1956, %v1700
        %v1974 = vsel %vm1959, %v1957, %v1702
        %v1975 = vsel %vm1959, %v1958, %v1704
        %1992 = vrot.lane.b32.xlu0 %v494, 8
        %v1993 = vpop.permute.xlu0 %1992
        %1994 = vrot.lane.b32.xlu0 %v495, 8
        %v1995 = vpop.permute.xlu0 %1994
        %1996 = vrot.lane.b32.xlu0 %v496, 8
        %v1997 = vpop.permute.xlu0 %1996
        %1998 = vrot.lane.b32.xlu0 %v497, 8
        %v1999 = vpop.permute.xlu0 %1998
        %2000 = vrot.lane.b32.xlu0 %v498, 8
        %v2001 = vpop.permute.xlu0 %2000
        %2002 = vrot.lane.b32.xlu0 %v499, 8
        %v2003 = vpop.permute.xlu0 %2002
        %2004 = vrot.lane.b32.xlu0 %v500, 8
        %v2005 = vpop.permute.xlu0 %2004
        %2006 = vrot.lane.b32.xlu0 %v501, 8
        %v2007 = vpop.permute.xlu0 %2006
        %2008 = vrot.lane.b32.xlu0 %v502, 8
        %v2009 = vpop.permute.xlu0 %2008
        %2010 = vrot.lane.b32.xlu0 %v503, 8
        %v2011 = vpop.permute.xlu0 %2010
        %2012 = vrot.lane.b32.xlu0 %v504, 8
        %v2013 = vpop.permute.xlu0 %2012
        %2014 = vrot.lane.b32.xlu0 %v505, 8
        %v2015 = vpop.permute.xlu0 %2014
        %2016 = vrot.lane.b32.xlu0 %v506, 8
        %v2017 = vpop.permute.xlu0 %2016
        %2018 = vrot.lane.b32.xlu0 %v507, 8
        %v2019 = vpop.permute.xlu0 %2018
        %2020 = vrot.lane.b32.xlu0 %v508, 8
        %v2021 = vpop.permute.xlu0 %2020
        %2022 = vrot.lane.b32.xlu0 %v509, 8
        %v2023 = vpop.permute.xlu0 %2022
        %2056 = vrot.lane.b32.xlu0 %v513, 16
        %v2057 = vpop.permute.xlu0 %2056
        %2058 = vrot.lane.b32.xlu0 %v514, 16
        %v2059 = vpop.permute.xlu0 %2058
        %2060 = vrot.lane.b32.xlu0 %v515, 16
        %v2061 = vpop.permute.xlu0 %2060
        %2062 = vrot.lane.b32.xlu0 %v516, 16
        %v2063 = vpop.permute.xlu0 %2062
        %2064 = vrot.lane.b32.xlu0 %v517, 16
        %v2065 = vpop.permute.xlu0 %2064
        %2066 = vrot.lane.b32.xlu0 %v518, 16
        %v2067 = vpop.permute.xlu0 %2066
        %2068 = vrot.lane.b32.xlu0 %v519, 16
        %v2069 = vpop.permute.xlu0 %2068
        %2070 = vrot.lane.b32.xlu0 %v520, 16
        %v2071 = vpop.permute.xlu0 %2070
        %2072 = vrot.lane.b32.xlu0 %v521, 16
        %v2073 = vpop.permute.xlu0 %2072
        %2074 = vrot.lane.b32.xlu0 %v522, 16
        %v2075 = vpop.permute.xlu0 %2074
        %2076 = vrot.lane.b32.xlu0 %v523, 16
        %v2077 = vpop.permute.xlu0 %2076
        %2078 = vrot.lane.b32.xlu0 %v524, 16
        %v2079 = vpop.permute.xlu0 %2078
        %2080 = vrot.lane.b32.xlu0 %v525, 16
        %v2081 = vpop.permute.xlu0 %2080
        %2082 = vrot.lane.b32.xlu0 %v526, 16
        %v2083 = vpop.permute.xlu0 %2082
        %2084 = vrot.lane.b32.xlu0 %v527, 16
        %v2085 = vpop.permute.xlu0 %2084
        %2086 = vrot.lane.b32.xlu0 %v528, 16
        %v2087 = vpop.permute.xlu0 %2086
        %2120 = vrot.lane.b32.xlu0 %v529, 24
        %v2121 = vpop.permute.xlu0 %2120
        %2122 = vrot.lane.b32.xlu0 %v530, 24
        %v2123 = vpop.permute.xlu0 %2122
        %2124 = vrot.lane.b32.xlu0 %v531, 24
        %v2125 = vpop.permute.xlu0 %2124
        %2126 = vrot.lane.b32.xlu0 %v532, 24
        %v2127 = vpop.permute.xlu0 %2126
        %2128 = vrot.lane.b32.xlu0 %v533, 24
        %v2129 = vpop.permute.xlu0 %2128
        %2130 = vrot.lane.b32.xlu0 %v534, 24
        %v2131 = vpop.permute.xlu0 %2130
        %2132 = vrot.lane.b32.xlu0 %v535, 24
        %v2133 = vpop.permute.xlu0 %2132
        %2134 = vrot.lane.b32.xlu0 %v536, 24
        %v2135 = vpop.permute.xlu0 %2134
        %2136 = vrot.lane.b32.xlu0 %v537, 24
        %v2137 = vpop.permute.xlu0 %2136
        %2138 = vrot.lane.b32.xlu0 %v538, 24
        %v2139 = vpop.permute.xlu0 %2138
        %2140 = vrot.lane.b32.xlu0 %v539, 24
        %v2141 = vpop.permute.xlu0 %2140
        %2142 = vrot.lane.b32.xlu0 %v540, 24
        %v2143 = vpop.permute.xlu0 %2142
        %2144 = vrot.lane.b32.xlu0 %v541, 24
        %v2145 = vpop.permute.xlu0 %2144
        %2146 = vrot.lane.b32.xlu0 %v542, 24
        %v2147 = vpop.permute.xlu0 %2146
        %2148 = vrot.lane.b32.xlu0 %v543, 24
        %v2149 = vpop.permute.xlu0 %2148
        %2150 = vrot.lane.b32.xlu0 %v544, 24
        %v2151 = vpop.permute.xlu0 %2150
        %2184 = vrot.lane.b32.xlu0 %v545, 32
        %v2185 = vpop.permute.xlu0 %2184
        %2186 = vrot.lane.b32.xlu0 %v546, 32
        %v2187 = vpop.permute.xlu0 %2186
        %2188 = vrot.lane.b32.xlu0 %v547, 32
        %v2189 = vpop.permute.xlu0 %2188
        %2190 = vrot.lane.b32.xlu0 %v548, 32
        %v2191 = vpop.permute.xlu0 %2190
        %2192 = vrot.lane.b32.xlu0 %v549, 32
        %v2193 = vpop.permute.xlu0 %2192
        %2194 = vrot.lane.b32.xlu0 %v550, 32
        %v2195 = vpop.permute.xlu0 %2194
        %2196 = vrot.lane.b32.xlu0 %v551, 32
        %v2197 = vpop.permute.xlu0 %2196
        %2198 = vrot.lane.b32.xlu0 %v552, 32
        %v2199 = vpop.permute.xlu0 %2198
        %2200 = vrot.lane.b32.xlu0 %v553, 32
        %v2201 = vpop.permute.xlu0 %2200
        %2202 = vrot.lane.b32.xlu0 %v554, 32
        %v2203 = vpop.permute.xlu0 %2202
        %2204 = vrot.lane.b32.xlu0 %v555, 32
        %v2205 = vpop.permute.xlu0 %2204
        %2206 = vrot.lane.b32.xlu0 %v556, 32
        %v2207 = vpop.permute.xlu0 %2206
        %2208 = vrot.lane.b32.xlu0 %v557, 32
        %v2209 = vpop.permute.xlu0 %2208
        %2210 = vrot.lane.b32.xlu0 %v558, 32
        %v2211 = vpop.permute.xlu0 %2210
        %2212 = vrot.lane.b32.xlu0 %v559, 32
        %v2213 = vpop.permute.xlu0 %2212
        %2214 = vrot.lane.b32.xlu0 %v560, 32
        %v2215 = vpop.permute.xlu0 %2214
        %2248 = vrot.lane.b32.xlu0 %v561, 40
        %v2249 = vpop.permute.xlu0 %2248
        %2250 = vrot.lane.b32.xlu0 %v562, 40
        %v2251 = vpop.permute.xlu0 %2250
        %2252 = vrot.lane.b32.xlu0 %v563, 40
        %v2253 = vpop.permute.xlu0 %2252
        %2254 = vrot.lane.b32.xlu0 %v564, 40
        %v2255 = vpop.permute.xlu0 %2254
        %2256 = vrot.lane.b32.xlu0 %v565, 40
        %v2257 = vpop.permute.xlu0 %2256
        %2258 = vrot.lane.b32.xlu0 %v566, 40
        %v2259 = vpop.permute.xlu0 %2258
        %2260 = vrot.lane.b32.xlu0 %v567, 40
        %v2261 = vpop.permute.xlu0 %2260
        %2262 = vrot.lane.b32.xlu0 %v568, 40
        %v2263 = vpop.permute.xlu0 %2262
        %2264 = vrot.lane.b32.xlu0 %v569, 40
        %v2265 = vpop.permute.xlu0 %2264
        %2266 = vrot.lane.b32.xlu0 %v570, 40
        %v2267 = vpop.permute.xlu0 %2266
        %2268 = vrot.lane.b32.xlu0 %v571, 40
        %v2269 = vpop.permute.xlu0 %2268
        %2270 = vrot.lane.b32.xlu0 %v572, 40
        %v2271 = vpop.permute.xlu0 %2270
        %2272 = vrot.lane.b32.xlu0 %v573, 40
        %v2273 = vpop.permute.xlu0 %2272
        %2274 = vrot.lane.b32.xlu0 %v574, 40
        %v2275 = vpop.permute.xlu0 %2274
        %2276 = vrot.lane.b32.xlu0 %v575, 40
        %v2277 = vpop.permute.xlu0 %2276
        %2278 = vrot.lane.b32.xlu0 %v576, 40
        %v2279 = vpop.permute.xlu0 %2278
        %2296 = vrot.lane.b32.xlu0 %v293, 48
        %v2297 = vpop.permute.xlu0 %2296
        %2298 = vrot.lane.b32.xlu0 %v294, 48
        %v2299 = vpop.permute.xlu0 %2298
        %2300 = vrot.lane.b32.xlu0 %v295, 48
        %v2301 = vpop.permute.xlu0 %2300
        %2302 = vrot.lane.b32.xlu0 %v296, 48
        %v2303 = vpop.permute.xlu0 %2302
        %2304 = vrot.lane.b32.xlu0 %v297, 48
        %v2305 = vpop.permute.xlu0 %2304
        %2306 = vrot.lane.b32.xlu0 %v298, 48
        %v2307 = vpop.permute.xlu0 %2306
        %2308 = vrot.lane.b32.xlu0 %v299, 48
        %v2309 = vpop.permute.xlu0 %2308
        %2310 = vrot.lane.b32.xlu0 %v300, 48
        %v2311 = vpop.permute.xlu0 %2310
        %2312 = vrot.lane.b32.xlu0 %v301, 48
        %v2313 = vpop.permute.xlu0 %2312
        %2314 = vrot.lane.b32.xlu0 %v302, 48
        %v2315 = vpop.permute.xlu0 %2314
        %2316 = vrot.lane.b32.xlu0 %v303, 48
        %v2317 = vpop.permute.xlu0 %2316
        %2318 = vrot.lane.b32.xlu0 %v304, 48
        %v2319 = vpop.permute.xlu0 %2318
        %2320 = vrot.lane.b32.xlu0 %v305, 48
        %v2321 = vpop.permute.xlu0 %2320
        %2322 = vrot.lane.b32.xlu0 %v306, 48
        %v2323 = vpop.permute.xlu0 %2322
        %2324 = vrot.lane.b32.xlu0 %v307, 48
        %v2325 = vpop.permute.xlu0 %2324
        %2326 = vrot.lane.b32.xlu0 %v308, 48
        %v2327 = vpop.permute.xlu0 %2326
        %2360 = vrot.lane.b32.xlu0 %v577, 56
        %v2361 = vpop.permute.xlu0 %2360
        %2362 = vrot.lane.b32.xlu0 %v578, 56
        %v2363 = vpop.permute.xlu0 %2362
        %2364 = vrot.lane.b32.xlu0 %v579, 56
        %v2365 = vpop.permute.xlu0 %2364
        %2366 = vrot.lane.b32.xlu0 %v580, 56
        %v2367 = vpop.permute.xlu0 %2366
        %2368 = vrot.lane.b32.xlu0 %v581, 56
        %v2369 = vpop.permute.xlu0 %2368
        %2370 = vrot.lane.b32.xlu0 %v582, 56
        %v2371 = vpop.permute.xlu0 %2370
        %2372 = vrot.lane.b32.xlu0 %v583, 56
        %v2373 = vpop.permute.xlu0 %2372
        %2374 = vrot.lane.b32.xlu0 %v584, 56
        %v2375 = vpop.permute.xlu0 %2374
        %2376 = vrot.lane.b32.xlu0 %v585, 56
        %v2377 = vpop.permute.xlu0 %2376
        %2378 = vrot.lane.b32.xlu0 %v586, 56
        %v2379 = vpop.permute.xlu0 %2378
        %2380 = vrot.lane.b32.xlu0 %v587, 56
        %v2381 = vpop.permute.xlu0 %2380
        %2382 = vrot.lane.b32.xlu0 %v588, 56
        %v2383 = vpop.permute.xlu0 %2382
        %2384 = vrot.lane.b32.xlu0 %v589, 56
        %v2385 = vpop.permute.xlu0 %2384
        %2386 = vrot.lane.b32.xlu0 %v590, 56
        %v2387 = vpop.permute.xlu0 %2386
        %2388 = vrot.lane.b32.xlu0 %v591, 56
        %v2389 = vpop.permute.xlu0 %2388
        %2390 = vrot.lane.b32.xlu0 %v592, 56
        %v2391 = vpop.permute.xlu0 %2390
        %2424 = vrot.lane.b32.xlu0 %v596, 64
        %v2425 = vpop.permute.xlu0 %2424
        %2426 = vrot.lane.b32.xlu0 %v597, 64
        %v2427 = vpop.permute.xlu0 %2426
        %2428 = vrot.lane.b32.xlu0 %v598, 64
        %v2429 = vpop.permute.xlu0 %2428
        %2430 = vrot.lane.b32.xlu0 %v599, 64
        %v2431 = vpop.permute.xlu0 %2430
        %2432 = vrot.lane.b32.xlu0 %v600, 64
        %v2433 = vpop.permute.xlu0 %2432
        %2434 = vrot.lane.b32.xlu0 %v601, 64
        %v2435 = vpop.permute.xlu0 %2434
        %2436 = vrot.lane.b32.xlu0 %v602, 64
        %v2437 = vpop.permute.xlu0 %2436
        %2438 = vrot.lane.b32.xlu0 %v603, 64
        %v2439 = vpop.permute.xlu0 %2438
        %2440 = vrot.lane.b32.xlu0 %v604, 64
        %v2441 = vpop.permute.xlu0 %2440
        %2442 = vrot.lane.b32.xlu0 %v605, 64
        %v2443 = vpop.permute.xlu0 %2442
        %2444 = vrot.lane.b32.xlu0 %v606, 64
        %v2445 = vpop.permute.xlu0 %2444
        %2446 = vrot.lane.b32.xlu0 %v607, 64
        %v2447 = vpop.permute.xlu0 %2446
        %2448 = vrot.lane.b32.xlu0 %v608, 64
        %v2449 = vpop.permute.xlu0 %2448
        %2450 = vrot.lane.b32.xlu0 %v609, 64
        %v2451 = vpop.permute.xlu0 %2450
        %2452 = vrot.lane.b32.xlu0 %v610, 64
        %v2453 = vpop.permute.xlu0 %2452
        %2454 = vrot.lane.b32.xlu0 %v611, 64
        %v2455 = vpop.permute.xlu0 %2454
        %2488 = vrot.lane.b32.xlu0 %v612, 72
        %v2489 = vpop.permute.xlu0 %2488
        %2490 = vrot.lane.b32.xlu0 %v613, 72
        %v2491 = vpop.permute.xlu0 %2490
        %2492 = vrot.lane.b32.xlu0 %v614, 72
        %v2493 = vpop.permute.xlu0 %2492
        %2494 = vrot.lane.b32.xlu0 %v615, 72
        %v2495 = vpop.permute.xlu0 %2494
        %2496 = vrot.lane.b32.xlu0 %v616, 72
        %v2497 = vpop.permute.xlu0 %2496
        %2498 = vrot.lane.b32.xlu0 %v617, 72
        %v2499 = vpop.permute.xlu0 %2498
        %2500 = vrot.lane.b32.xlu0 %v618, 72
        %v2501 = vpop.permute.xlu0 %2500
        %2502 = vrot.lane.b32.xlu0 %v619, 72
        %v2503 = vpop.permute.xlu0 %2502
        %2504 = vrot.lane.b32.xlu0 %v620, 72
        %v2505 = vpop.permute.xlu0 %2504
        %2506 = vrot.lane.b32.xlu0 %v621, 72
        %v2507 = vpop.permute.xlu0 %2506
        %2508 = vrot.lane.b32.xlu0 %v622, 72
        %v2509 = vpop.permute.xlu0 %2508
        %2510 = vrot.lane.b32.xlu0 %v623, 72
        %v2511 = vpop.permute.xlu0 %2510
        %2512 = vrot.lane.b32.xlu0 %v624, 72
        %v2513 = vpop.permute.xlu0 %2512
        %2514 = vrot.lane.b32.xlu0 %v625, 72
        %v2515 = vpop.permute.xlu0 %2514
        %2516 = vrot.lane.b32.xlu0 %v626, 72
        %v2517 = vpop.permute.xlu0 %2516
        %2518 = vrot.lane.b32.xlu0 %v627, 72
        %v2519 = vpop.permute.xlu0 %2518
        %2552 = vrot.lane.b32.xlu0 %v628, 80
        %v2553 = vpop.permute.xlu0 %2552
        %2554 = vrot.lane.b32.xlu0 %v629, 80
        %v2555 = vpop.permute.xlu0 %2554
        %2556 = vrot.lane.b32.xlu0 %v630, 80
        %v2557 = vpop.permute.xlu0 %2556
        %2558 = vrot.lane.b32.xlu0 %v631, 80
        %v2559 = vpop.permute.xlu0 %2558
        %2560 = vrot.lane.b32.xlu0 %v632, 80
        %v2561 = vpop.permute.xlu0 %2560
        %2562 = vrot.lane.b32.xlu0 %v633, 80
        %v2563 = vpop.permute.xlu0 %2562
        %2564 = vrot.lane.b32.xlu0 %v634, 80
        %v2565 = vpop.permute.xlu0 %2564
        %2566 = vrot.lane.b32.xlu0 %v635, 80
        %v2567 = vpop.permute.xlu0 %2566
        %2568 = vrot.lane.b32.xlu0 %v636, 80
        %v2569 = vpop.permute.xlu0 %2568
        %2570 = vrot.lane.b32.xlu0 %v637, 80
        %v2571 = vpop.permute.xlu0 %2570
        %2572 = vrot.lane.b32.xlu0 %v638, 80
        %v2573 = vpop.permute.xlu0 %2572
        %2574 = vrot.lane.b32.xlu0 %v639, 80
        %v2575 = vpop.permute.xlu0 %2574
        %2576 = vrot.lane.b32.xlu0 %v640, 80
        %v2577 = vpop.permute.xlu0 %2576
        %2578 = vrot.lane.b32.xlu0 %v641, 80
        %v2579 = vpop.permute.xlu0 %2578
        %2580 = vrot.lane.b32.xlu0 %v642, 80
        %v2581 = vpop.permute.xlu0 %2580
        %2582 = vrot.lane.b32.xlu0 %v643, 80
        %v2583 = vpop.permute.xlu0 %2582
        %2616 = vrot.lane.b32.xlu0 %v646, 88
        %v2617 = vpop.permute.xlu0 %2616
        %2618 = vrot.lane.b32.xlu0 %v647, 88
        %v2619 = vpop.permute.xlu0 %2618
        %2620 = vrot.lane.b32.xlu0 %v648, 88
        %v2621 = vpop.permute.xlu0 %2620
        %2622 = vrot.lane.b32.xlu0 %v649, 88
        %v2623 = vpop.permute.xlu0 %2622
        %2624 = vrot.lane.b32.xlu0 %v650, 88
        %v2625 = vpop.permute.xlu0 %2624
        %2626 = vrot.lane.b32.xlu0 %v651, 88
        %v2627 = vpop.permute.xlu0 %2626
        %2628 = vrot.lane.b32.xlu0 %v652, 88
        %v2629 = vpop.permute.xlu0 %2628
        %2630 = vrot.lane.b32.xlu0 %v653, 88
        %v2631 = vpop.permute.xlu0 %2630
        %2632 = vrot.lane.b32.xlu0 %v654, 88
        %v2633 = vpop.permute.xlu0 %2632
        %2634 = vrot.lane.b32.xlu0 %v655, 88
        %v2635 = vpop.permute.xlu0 %2634
        %2636 = vrot.lane.b32.xlu0 %v656, 88
        %v2637 = vpop.permute.xlu0 %2636
        %2638 = vrot.lane.b32.xlu0 %v657, 88
        %v2639 = vpop.permute.xlu0 %2638
        %2640 = vrot.lane.b32.xlu0 %v658, 88
        %v2641 = vpop.permute.xlu0 %2640
        %2642 = vrot.lane.b32.xlu0 %v659, 88
        %v2643 = vpop.permute.xlu0 %2642
        %2644 = vrot.lane.b32.xlu0 %v660, 88
        %v2645 = vpop.permute.xlu0 %2644
        %2646 = vrot.lane.b32.xlu0 %v661, 88
        %v2647 = vpop.permute.xlu0 %2646
        %2680 = vrot.lane.b32.xlu0 %v662, 96
        %v2681 = vpop.permute.xlu0 %2680
        %2682 = vrot.lane.b32.xlu0 %v663, 96
        %v2683 = vpop.permute.xlu0 %2682
        %2684 = vrot.lane.b32.xlu0 %v664, 96
        %v2685 = vpop.permute.xlu0 %2684
        %2686 = vrot.lane.b32.xlu0 %v665, 96
        %v2687 = vpop.permute.xlu0 %2686
        %2688 = vrot.lane.b32.xlu0 %v666, 96
        %v2689 = vpop.permute.xlu0 %2688
        %2690 = vrot.lane.b32.xlu0 %v667, 96
        %v2691 = vpop.permute.xlu0 %2690
        %2692 = vrot.lane.b32.xlu0 %v668, 96
        %v2693 = vpop.permute.xlu0 %2692
        %2694 = vrot.lane.b32.xlu0 %v669, 96
        %v2695 = vpop.permute.xlu0 %2694
        %2696 = vrot.lane.b32.xlu0 %v670, 96
        %v2697 = vpop.permute.xlu0 %2696
        %2698 = vrot.lane.b32.xlu0 %v671, 96
        %v2699 = vpop.permute.xlu0 %2698
        %2700 = vrot.lane.b32.xlu0 %v672, 96
        %v2701 = vpop.permute.xlu0 %2700
        %2702 = vrot.lane.b32.xlu0 %v673, 96
        %v2703 = vpop.permute.xlu0 %2702
        %2704 = vrot.lane.b32.xlu0 %v674, 96
        %v2705 = vpop.permute.xlu0 %2704
        %2706 = vrot.lane.b32.xlu0 %v675, 96
        %v2707 = vpop.permute.xlu0 %2706
        %2708 = vrot.lane.b32.xlu0 %v676, 96
        %v2709 = vpop.permute.xlu0 %2708
        %2710 = vrot.lane.b32.xlu0 %v677, 96
        %v2711 = vpop.permute.xlu0 %2710
        %2744 = vrot.lane.b32.xlu0 %v678, 104
        %v2745 = vpop.permute.xlu0 %2744
        %2746 = vrot.lane.b32.xlu0 %v679, 104
        %v2747 = vpop.permute.xlu0 %2746
        %2748 = vrot.lane.b32.xlu0 %v680, 104
        %v2749 = vpop.permute.xlu0 %2748
        %2750 = vrot.lane.b32.xlu0 %v681, 104
        %v2751 = vpop.permute.xlu0 %2750
        %2752 = vrot.lane.b32.xlu0 %v682, 104
        %v2753 = vpop.permute.xlu0 %2752
        %2754 = vrot.lane.b32.xlu0 %v683, 104
        %v2755 = vpop.permute.xlu0 %2754
        %2756 = vrot.lane.b32.xlu0 %v684, 104
        %v2757 = vpop.permute.xlu0 %2756
        %2758 = vrot.lane.b32.xlu0 %v685, 104
        %v2759 = vpop.permute.xlu0 %2758
        %2760 = vrot.lane.b32.xlu0 %v686, 104
        %v2761 = vpop.permute.xlu0 %2760
        %2762 = vrot.lane.b32.xlu0 %v687, 104
        %v2763 = vpop.permute.xlu0 %2762
        %2764 = vrot.lane.b32.xlu0 %v688, 104
        %v2765 = vpop.permute.xlu0 %2764
        %2766 = vrot.lane.b32.xlu0 %v689, 104
        %v2767 = vpop.permute.xlu0 %2766
        %2768 = vrot.lane.b32.xlu0 %v690, 104
        %v2769 = vpop.permute.xlu0 %2768
        %2770 = vrot.lane.b32.xlu0 %v691, 104
        %v2771 = vpop.permute.xlu0 %2770
        %2772 = vrot.lane.b32.xlu0 %v692, 104
        %v2773 = vpop.permute.xlu0 %2772
        %2774 = vrot.lane.b32.xlu0 %v693, 104
        %v2775 = vpop.permute.xlu0 %2774
        %2808 = vrot.lane.b32.xlu0 %v694, 112
        %v2809 = vpop.permute.xlu0 %2808
        %2810 = vrot.lane.b32.xlu0 %v695, 112
        %v2811 = vpop.permute.xlu0 %2810
        %2812 = vrot.lane.b32.xlu0 %v696, 112
        %v2813 = vpop.permute.xlu0 %2812
        %2814 = vrot.lane.b32.xlu0 %v697, 112
        %v2815 = vpop.permute.xlu0 %2814
        %2816 = vrot.lane.b32.xlu0 %v698, 112
        %v2817 = vpop.permute.xlu0 %2816
        %2818 = vrot.lane.b32.xlu0 %v699, 112
        %v2819 = vpop.permute.xlu0 %2818
        %2820 = vrot.lane.b32.xlu0 %v700, 112
        %v2821 = vpop.permute.xlu0 %2820
        %2822 = vrot.lane.b32.xlu0 %v701, 112
        %v2823 = vpop.permute.xlu0 %2822
        %2824 = vrot.lane.b32.xlu0 %v702, 112
        %v2825 = vpop.permute.xlu0 %2824
        %2826 = vrot.lane.b32.xlu0 %v703, 112
        %v2827 = vpop.permute.xlu0 %2826
        %2828 = vrot.lane.b32.xlu0 %v704, 112
        %v2829 = vpop.permute.xlu0 %2828
        %2830 = vrot.lane.b32.xlu0 %v705, 112
        %v2831 = vpop.permute.xlu0 %2830
        %2832 = vrot.lane.b32.xlu0 %v706, 112
        %v2833 = vpop.permute.xlu0 %2832
        %2834 = vrot.lane.b32.xlu0 %v707, 112
        %v2835 = vpop.permute.xlu0 %2834
        %2836 = vrot.lane.b32.xlu0 %v708, 112
        %v2837 = vpop.permute.xlu0 %2836
        %2838 = vrot.lane.b32.xlu0 %v709, 112
        %v2839 = vpop.permute.xlu0 %2838
        %2856 = vrot.lane.b32.xlu0 %v293, 120
        %v2857 = vpop.permute.xlu0 %2856
        %2858 = vrot.lane.b32.xlu0 %v294, 120
        %v2859 = vpop.permute.xlu0 %2858
        %2860 = vrot.lane.b32.xlu0 %v295, 120
        %v2861 = vpop.permute.xlu0 %2860
        %2862 = vrot.lane.b32.xlu0 %v296, 120
        %v2863 = vpop.permute.xlu0 %2862
        %2864 = vrot.lane.b32.xlu0 %v297, 120
        %v2865 = vpop.permute.xlu0 %2864
        %2866 = vrot.lane.b32.xlu0 %v298, 120
        %v2867 = vpop.permute.xlu0 %2866
        %2868 = vrot.lane.b32.xlu0 %v299, 120
        %v2869 = vpop.permute.xlu0 %2868
        %2870 = vrot.lane.b32.xlu0 %v300, 120
        %v2871 = vpop.permute.xlu0 %2870
        %2872 = vrot.lane.b32.xlu0 %v301, 120
        %v2873 = vpop.permute.xlu0 %2872
        %2874 = vrot.lane.b32.xlu0 %v302, 120
        %v2875 = vpop.permute.xlu0 %2874
        %2876 = vrot.lane.b32.xlu0 %v303, 120
        %v2877 = vpop.permute.xlu0 %2876
        %2878 = vrot.lane.b32.xlu0 %v304, 120
        %v2879 = vpop.permute.xlu0 %2878
        %2880 = vrot.lane.b32.xlu0 %v305, 120
        %v2881 = vpop.permute.xlu0 %2880
        %2882 = vrot.lane.b32.xlu0 %v306, 120
        %v2883 = vpop.permute.xlu0 %2882
        %2884 = vrot.lane.b32.xlu0 %v307, 120
        %v2885 = vpop.permute.xlu0 %2884
        %2886 = vrot.lane.b32.xlu0 %v308, 120
        %v2887 = vpop.permute.xlu0 %2886
        %v2904 = vsel %vm1721, %v478, %v1993
        %v2905 = vsel %vm1721, %v479, %v1995
        %v2906 = vsel %vm1721, %v480, %v1997
        %v2907 = vsel %vm1721, %v481, %v1999
        %v2908 = vsel %vm1721, %v482, %v2001
        %v2909 = vsel %vm1721, %v483, %v2003
        %v2910 = vsel %vm1721, %v484, %v2005
        %v2911 = vsel %vm1721, %v485, %v2007
        %v2912 = vsel %vm1721, %v486, %v2009
        %v2913 = vsel %vm1721, %v487, %v2011
        %v2914 = vsel %vm1721, %v488, %v2013
        %v2915 = vsel %vm1721, %v489, %v2015
        %v2916 = vsel %vm1721, %v490, %v2017
        %v2917 = vsel %vm1721, %v491, %v2019
        %v2918 = vsel %vm1721, %v492, %v2021
        %v2919 = vsel %vm1721, %v493, %v2023
        %v2920 = vsel %vm1738, %v2904, %v2057
        %v2921 = vsel %vm1738, %v2905, %v2059
        %v2922 = vsel %vm1738, %v2906, %v2061
        %v2923 = vsel %vm1738, %v2907, %v2063
        %v2924 = vsel %vm1738, %v2908, %v2065
        %v2925 = vsel %vm1738, %v2909, %v2067
        %v2926 = vsel %vm1738, %v2910, %v2069
        %v2927 = vsel %vm1738, %v2911, %v2071
        %v2928 = vsel %vm1738, %v2912, %v2073
        %v2929 = vsel %vm1738, %v2913, %v2075
        %v2930 = vsel %vm1738, %v2914, %v2077
        %v2931 = vsel %vm1738, %v2915, %v2079
        %v2932 = vsel %vm1738, %v2916, %v2081
        %v2933 = vsel %vm1738, %v2917, %v2083
        %v2934 = vsel %vm1738, %v2918, %v2085
        %v2935 = vsel %vm1738, %v2919, %v2087
        %v2936 = vsel %vm1755, %v2920, %v2121
        %v2937 = vsel %vm1755, %v2921, %v2123
        %v2938 = vsel %vm1755, %v2922, %v2125
        %v2939 = vsel %vm1755, %v2923, %v2127
        %v2940 = vsel %vm1755, %v2924, %v2129
        %v2941 = vsel %vm1755, %v2925, %v2131
        %v2942 = vsel %vm1755, %v2926, %v2133
        %v2943 = vsel %vm1755, %v2927, %v2135
        %v2944 = vsel %vm1755, %v2928, %v2137
        %v2945 = vsel %vm1755, %v2929, %v2139
        %v2946 = vsel %vm1755, %v2930, %v2141
        %v2947 = vsel %vm1755, %v2931, %v2143
        %v2948 = vsel %vm1755, %v2932, %v2145
        %v2949 = vsel %vm1755, %v2933, %v2147
        %v2950 = vsel %vm1755, %v2934, %v2149
        %v2951 = vsel %vm1755, %v2935, %v2151
        %v2952 = vsel %vm1772, %v2936, %v2185
        %v2953 = vsel %vm1772, %v2937, %v2187
        %v2954 = vsel %vm1772, %v2938, %v2189
        %v2955 = vsel %vm1772, %v2939, %v2191
        %v2956 = vsel %vm1772, %v2940, %v2193
        %v2957 = vsel %vm1772, %v2941, %v2195
        %v2958 = vsel %vm1772, %v2942, %v2197
        %v2959 = vsel %vm1772, %v2943, %v2199
        %v2960 = vsel %vm1772, %v2944, %v2201
        %v2961 = vsel %vm1772, %v2945, %v2203
        %v2962 = vsel %vm1772, %v2946, %v2205
        %v2963 = vsel %vm1772, %v2947, %v2207
        %v2964 = vsel %vm1772, %v2948, %v2209
        %v2965 = vsel %vm1772, %v2949, %v2211
        %v2966 = vsel %vm1772, %v2950, %v2213
        %v2967 = vsel %vm1772, %v2951, %v2215
        %v2968 = vsel %vm1789, %v2952, %v2249
        %v2969 = vsel %vm1789, %v2953, %v2251
        %v2970 = vsel %vm1789, %v2954, %v2253
        %v2971 = vsel %vm1789, %v2955, %v2255
        %v2972 = vsel %vm1789, %v2956, %v2257
        %v2973 = vsel %vm1789, %v2957, %v2259
        %v2974 = vsel %vm1789, %v2958, %v2261
        %v2975 = vsel %vm1789, %v2959, %v2263
        %v2976 = vsel %vm1789, %v2960, %v2265
        %v2977 = vsel %vm1789, %v2961, %v2267
        %v2978 = vsel %vm1789, %v2962, %v2269
        %v2979 = vsel %vm1789, %v2963, %v2271
        %v2980 = vsel %vm1789, %v2964, %v2273
        %v2981 = vsel %vm1789, %v2965, %v2275
        %v2982 = vsel %vm1789, %v2966, %v2277
        %v2983 = vsel %vm1789, %v2967, %v2279
        %v2984 = vsel %vm1806, %v2968, %v2297
        %v2985 = vsel %vm1806, %v2969, %v2299
        %v2986 = vsel %vm1806, %v2970, %v2301
        %v2987 = vsel %vm1806, %v2971, %v2303
        %v2988 = vsel %vm1806, %v2972, %v2305
        %v2989 = vsel %vm1806, %v2973, %v2307
        %v2990 = vsel %vm1806, %v2974, %v2309
        %v2991 = vsel %vm1806, %v2975, %v2311
        %v2992 = vsel %vm1806, %v2976, %v2313
        %v2993 = vsel %vm1806, %v2977, %v2315
        %v2994 = vsel %vm1806, %v2978, %v2317
        %v2995 = vsel %vm1806, %v2979, %v2319
        %v2996 = vsel %vm1806, %v2980, %v2321
        %v2997 = vsel %vm1806, %v2981, %v2323
        %v2998 = vsel %vm1806, %v2982, %v2325
        %v2999 = vsel %vm1806, %v2983, %v2327
        %v3000 = vsel %vm1823, %v2984, %v2361
        %v3001 = vsel %vm1823, %v2985, %v2363
        %v3002 = vsel %vm1823, %v2986, %v2365
        %v3003 = vsel %vm1823, %v2987, %v2367
        %v3004 = vsel %vm1823, %v2988, %v2369
        %v3005 = vsel %vm1823, %v2989, %v2371
        %v3006 = vsel %vm1823, %v2990, %v2373
        %v3007 = vsel %vm1823, %v2991, %v2375
        %v3008 = vsel %vm1823, %v2992, %v2377
        %v3009 = vsel %vm1823, %v2993, %v2379
        %v3010 = vsel %vm1823, %v2994, %v2381
        %v3011 = vsel %vm1823, %v2995, %v2383
        %v3012 = vsel %vm1823, %v2996, %v2385
        %v3013 = vsel %vm1823, %v2997, %v2387
        %v3014 = vsel %vm1823, %v2998, %v2389
        %v3015 = vsel %vm1823, %v2999, %v2391
        %v3016 = vsel %vm1840, %v3000, %v2425
        %v3017 = vsel %vm1840, %v3001, %v2427
        %v3018 = vsel %vm1840, %v3002, %v2429
        %v3019 = vsel %vm1840, %v3003, %v2431
        %v3020 = vsel %vm1840, %v3004, %v2433
        %v3021 = vsel %vm1840, %v3005, %v2435
        %v3022 = vsel %vm1840, %v3006, %v2437
        %v3023 = vsel %vm1840, %v3007, %v2439
        %v3024 = vsel %vm1840, %v3008, %v2441
        %v3025 = vsel %vm1840, %v3009, %v2443
        %v3026 = vsel %vm1840, %v3010, %v2445
        %v3027 = vsel %vm1840, %v3011, %v2447
        %v3028 = vsel %vm1840, %v3012, %v2449
        %v3029 = vsel %vm1840, %v3013, %v2451
        %v3030 = vsel %vm1840, %v3014, %v2453
        %v3031 = vsel %vm1840, %v3015, %v2455
        %v3032 = vsel %vm1857, %v3016, %v2489
        %v3033 = vsel %vm1857, %v3017, %v2491
        %v3034 = vsel %vm1857, %v3018, %v2493
        %v3035 = vsel %vm1857, %v3019, %v2495
        %v3036 = vsel %vm1857, %v3020, %v2497
        %v3037 = vsel %vm1857, %v3021, %v2499
        %v3038 = vsel %vm1857, %v3022, %v2501
        %v3039 = vsel %vm1857, %v3023, %v2503
        %v3040 = vsel %vm1857, %v3024, %v2505
        %v3041 = vsel %vm1857, %v3025, %v2507
        %v3042 = vsel %vm1857, %v3026, %v2509
        %v3043 = vsel %vm1857, %v3027, %v2511
        %v3044 = vsel %vm1857, %v3028, %v2513
        %v3045 = vsel %vm1857, %v3029, %v2515
        %v3046 = vsel %vm1857, %v3030, %v2517
        %v3047 = vsel %vm1857, %v3031, %v2519
        %v3048 = vsel %vm1874, %v3032, %v2553
        %v3049 = vsel %vm1874, %v3033, %v2555
        %v3050 = vsel %vm1874, %v3034, %v2557
        %v3051 = vsel %vm1874, %v3035, %v2559
        %v3052 = vsel %vm1874, %v3036, %v2561
        %v3053 = vsel %vm1874, %v3037, %v2563
        %v3054 = vsel %vm1874, %v3038, %v2565
        %v3055 = vsel %vm1874, %v3039, %v2567
        %v3056 = vsel %vm1874, %v3040, %v2569
        %v3057 = vsel %vm1874, %v3041, %v2571
        %v3058 = vsel %vm1874, %v3042, %v2573
        %v3059 = vsel %vm1874, %v3043, %v2575
        %v3060 = vsel %vm1874, %v3044, %v2577
        %v3061 = vsel %vm1874, %v3045, %v2579
        %v3062 = vsel %vm1874, %v3046, %v2581
        %v3063 = vsel %vm1874, %v3047, %v2583
        %v3064 = vsel %vm1891, %v3048, %v2617
        %v3065 = vsel %vm1891, %v3049, %v2619
        %v3066 = vsel %vm1891, %v3050, %v2621
        %v3067 = vsel %vm1891, %v3051, %v2623
        %v3068 = vsel %vm1891, %v3052, %v2625
        %v3069 = vsel %vm1891, %v3053, %v2627
        %v3070 = vsel %vm1891, %v3054, %v2629
        %v3071 = vsel %vm1891, %v3055, %v2631
        %v3072 = vsel %vm1891, %v3056, %v2633
        %v3073 = vsel %vm1891, %v3057, %v2635
        %v3074 = vsel %vm1891, %v3058, %v2637
        %v3075 = vsel %vm1891, %v3059, %v2639
        %v3076 = vsel %vm1891, %v3060, %v2641
        %v3077 = vsel %vm1891, %v3061, %v2643
        %v3078 = vsel %vm1891, %v3062, %v2645
        %v3079 = vsel %vm1891, %v3063, %v2647
        %v3080 = vsel %vm1908, %v3064, %v2681
        %v3081 = vsel %vm1908, %v3065, %v2683
        %v3082 = vsel %vm1908, %v3066, %v2685
        %v3083 = vsel %vm1908, %v3067, %v2687
        %v3084 = vsel %vm1908, %v3068, %v2689
        %v3085 = vsel %vm1908, %v3069, %v2691
        %v3086 = vsel %vm1908, %v3070, %v2693
        %v3087 = vsel %vm1908, %v3071, %v2695
        %v3088 = vsel %vm1908, %v3072, %v2697
        %v3089 = vsel %vm1908, %v3073, %v2699
        %v3090 = vsel %vm1908, %v3074, %v2701
        %v3091 = vsel %vm1908, %v3075, %v2703
        %v3092 = vsel %vm1908, %v3076, %v2705
        %v3093 = vsel %vm1908, %v3077, %v2707
        %v3094 = vsel %vm1908, %v3078, %v2709
        %v3095 = vsel %vm1908, %v3079, %v2711
        %v3096 = vsel %vm1925, %v3080, %v2745
        %v3097 = vsel %vm1925, %v3081, %v2747
        %v3098 = vsel %vm1925, %v3082, %v2749
        %v3099 = vsel %vm1925, %v3083, %v2751
        %v3100 = vsel %vm1925, %v3084, %v2753
        %v3101 = vsel %vm1925, %v3085, %v2755
        %v3102 = vsel %vm1925, %v3086, %v2757
        %v3103 = vsel %vm1925, %v3087, %v2759
        %v3104 = vsel %vm1925, %v3088, %v2761
        %v3105 = vsel %vm1925, %v3089, %v2763
        %v3106 = vsel %vm1925, %v3090, %v2765
        %v3107 = vsel %vm1925, %v3091, %v2767
        %v3108 = vsel %vm1925, %v3092, %v2769
        %v3109 = vsel %vm1925, %v3093, %v2771
        %v3110 = vsel %vm1925, %v3094, %v2773
        %v3111 = vsel %vm1925, %v3095, %v2775
        %v3112 = vsel %vm1942, %v3096, %v2809
        %v3113 = vsel %vm1942, %v3097, %v2811
        %v3114 = vsel %vm1942, %v3098, %v2813
        %v3115 = vsel %vm1942, %v3099, %v2815
        %v3116 = vsel %vm1942, %v3100, %v2817
        %v3117 = vsel %vm1942, %v3101, %v2819
        %v3118 = vsel %vm1942, %v3102, %v2821
        %v3119 = vsel %vm1942, %v3103, %v2823
        %v3120 = vsel %vm1942, %v3104, %v2825
        %v3121 = vsel %vm1942, %v3105, %v2827
        %v3122 = vsel %vm1942, %v3106, %v2829
        %v3123 = vsel %vm1942, %v3107, %v2831
        %v3124 = vsel %vm1942, %v3108, %v2833
        %v3125 = vsel %vm1942, %v3109, %v2835
        %v3126 = vsel %vm1942, %v3110, %v2837
        %v3127 = vsel %vm1942, %v3111, %v2839
        %v3128 = vsel %vm1959, %v3112, %v2857
        %v3129 = vsel %vm1959, %v3113, %v2859
        %v3130 = vsel %vm1959, %v3114, %v2861
        %v3131 = vsel %vm1959, %v3115, %v2863
        %v3132 = vsel %vm1959, %v3116, %v2865
        %v3133 = vsel %vm1959, %v3117, %v2867
        %v3134 = vsel %vm1959, %v3118, %v2869
        %v3135 = vsel %vm1959, %v3119, %v2871
        %v3136 = vsel %vm1959, %v3120, %v2873
        %v3137 = vsel %vm1959, %v3121, %v2875
        %v3138 = vsel %vm1959, %v3122, %v2877
        %v3139 = vsel %vm1959, %v3123, %v2879
        %v3140 = vsel %vm1959, %v3124, %v2881
        %v3141 = vsel %vm1959, %v3125, %v2883
        %v3142 = vsel %vm1959, %v3126, %v2885
        %v3143 = vsel %vm1959, %v3127, %v2887
        %3160 = vrot.lane.b32.xlu0 %v729, 8
        %v3161 = vpop.permute.xlu0 %3160
        %3162 = vrot.lane.b32.xlu0 %v730, 8
        %v3163 = vpop.permute.xlu0 %3162
        %3164 = vrot.lane.b32.xlu0 %v731, 8
        %v3165 = vpop.permute.xlu0 %3164
        %3166 = vrot.lane.b32.xlu0 %v732, 8
        %v3167 = vpop.permute.xlu0 %3166
        %3168 = vrot.lane.b32.xlu0 %v733, 8
        %v3169 = vpop.permute.xlu0 %3168
        %3170 = vrot.lane.b32.xlu0 %v734, 8
        %v3171 = vpop.permute.xlu0 %3170
        %3172 = vrot.lane.b32.xlu0 %v735, 8
        %v3173 = vpop.permute.xlu0 %3172
        %3174 = vrot.lane.b32.xlu0 %v736, 8
        %v3175 = vpop.permute.xlu0 %3174
        %3176 = vrot.lane.b32.xlu0 %v737, 8
        %v3177 = vpop.permute.xlu0 %3176
        %3178 = vrot.lane.b32.xlu0 %v738, 8
        %v3179 = vpop.permute.xlu0 %3178
        %3180 = vrot.lane.b32.xlu0 %v739, 8
        %v3181 = vpop.permute.xlu0 %3180
        %3182 = vrot.lane.b32.xlu0 %v740, 8
        %v3183 = vpop.permute.xlu0 %3182
        %3184 = vrot.lane.b32.xlu0 %v741, 8
        %v3185 = vpop.permute.xlu0 %3184
        %3186 = vrot.lane.b32.xlu0 %v742, 8
        %v3187 = vpop.permute.xlu0 %3186
        %3188 = vrot.lane.b32.xlu0 %v743, 8
        %v3189 = vpop.permute.xlu0 %3188
        %3190 = vrot.lane.b32.xlu0 %v744, 8
        %v3191 = vpop.permute.xlu0 %3190
        %3224 = vrot.lane.b32.xlu0 %v745, 16
        %v3225 = vpop.permute.xlu0 %3224
        %3226 = vrot.lane.b32.xlu0 %v746, 16
        %v3227 = vpop.permute.xlu0 %3226
        %3228 = vrot.lane.b32.xlu0 %v747, 16
        %v3229 = vpop.permute.xlu0 %3228
        %3230 = vrot.lane.b32.xlu0 %v748, 16
        %v3231 = vpop.permute.xlu0 %3230
        %3232 = vrot.lane.b32.xlu0 %v749, 16
        %v3233 = vpop.permute.xlu0 %3232
        %3234 = vrot.lane.b32.xlu0 %v750, 16
        %v3235 = vpop.permute.xlu0 %3234
        %3236 = vrot.lane.b32.xlu0 %v751, 16
        %v3237 = vpop.permute.xlu0 %3236
        %3238 = vrot.lane.b32.xlu0 %v752, 16
        %v3239 = vpop.permute.xlu0 %3238
        %3240 = vrot.lane.b32.xlu0 %v753, 16
        %v3241 = vpop.permute.xlu0 %3240
        %3242 = vrot.lane.b32.xlu0 %v754, 16
        %v3243 = vpop.permute.xlu0 %3242
        %3244 = vrot.lane.b32.xlu0 %v755, 16
        %v3245 = vpop.permute.xlu0 %3244
        %3246 = vrot.lane.b32.xlu0 %v756, 16
        %v3247 = vpop.permute.xlu0 %3246
        %3248 = vrot.lane.b32.xlu0 %v757, 16
        %v3249 = vpop.permute.xlu0 %3248
        %3250 = vrot.lane.b32.xlu0 %v758, 16
        %v3251 = vpop.permute.xlu0 %3250
        %3252 = vrot.lane.b32.xlu0 %v759, 16
        %v3253 = vpop.permute.xlu0 %3252
        %3254 = vrot.lane.b32.xlu0 %v760, 16
        %v3255 = vpop.permute.xlu0 %3254
        %3288 = vrot.lane.b32.xlu0 %v761, 24
        %v3289 = vpop.permute.xlu0 %3288
        %3290 = vrot.lane.b32.xlu0 %v762, 24
        %v3291 = vpop.permute.xlu0 %3290
        %3292 = vrot.lane.b32.xlu0 %v763, 24
        %v3293 = vpop.permute.xlu0 %3292
        %3294 = vrot.lane.b32.xlu0 %v764, 24
        %v3295 = vpop.permute.xlu0 %3294
        %3296 = vrot.lane.b32.xlu0 %v765, 24
        %v3297 = vpop.permute.xlu0 %3296
        %3298 = vrot.lane.b32.xlu0 %v766, 24
        %v3299 = vpop.permute.xlu0 %3298
        %3300 = vrot.lane.b32.xlu0 %v767, 24
        %v3301 = vpop.permute.xlu0 %3300
        %3302 = vrot.lane.b32.xlu0 %v768, 24
        %v3303 = vpop.permute.xlu0 %3302
        %3304 = vrot.lane.b32.xlu0 %v769, 24
        %v3305 = vpop.permute.xlu0 %3304
        %3306 = vrot.lane.b32.xlu0 %v770, 24
        %v3307 = vpop.permute.xlu0 %3306
        %3308 = vrot.lane.b32.xlu0 %v771, 24
        %v3309 = vpop.permute.xlu0 %3308
        %3310 = vrot.lane.b32.xlu0 %v772, 24
        %v3311 = vpop.permute.xlu0 %3310
        %3312 = vrot.lane.b32.xlu0 %v773, 24
        %v3313 = vpop.permute.xlu0 %3312
        %3314 = vrot.lane.b32.xlu0 %v774, 24
        %v3315 = vpop.permute.xlu0 %3314
        %3316 = vrot.lane.b32.xlu0 %v775, 24
        %v3317 = vpop.permute.xlu0 %3316
        %3318 = vrot.lane.b32.xlu0 %v776, 24
        %v3319 = vpop.permute.xlu0 %3318
        %v3336 = vsel %vm1721, %v710, %v3161
        %v3337 = vsel %vm1721, %v711, %v3163
        %v3338 = vsel %vm1721, %v712, %v3165
        %v3339 = vsel %vm1721, %v713, %v3167
        %v3340 = vsel %vm1721, %v714, %v3169
        %v3341 = vsel %vm1721, %v715, %v3171
        %v3342 = vsel %vm1721, %v716, %v3173
        %v3343 = vsel %vm1721, %v717, %v3175
        %v3344 = vsel %vm1721, %v718, %v3177
        %v3345 = vsel %vm1721, %v719, %v3179
        %v3346 = vsel %vm1721, %v720, %v3181
        %v3347 = vsel %vm1721, %v721, %v3183
        %v3348 = vsel %vm1721, %v722, %v3185
        %v3349 = vsel %vm1721, %v723, %v3187
        %v3350 = vsel %vm1721, %v724, %v3189
        %v3351 = vsel %vm1721, %v725, %v3191
        %v3352 = vsel %vm1738, %v3336, %v3225
        %v3353 = vsel %vm1738, %v3337, %v3227
        %v3354 = vsel %vm1738, %v3338, %v3229
        %v3355 = vsel %vm1738, %v3339, %v3231
        %v3356 = vsel %vm1738, %v3340, %v3233
        %v3357 = vsel %vm1738, %v3341, %v3235
        %v3358 = vsel %vm1738, %v3342, %v3237
        %v3359 = vsel %vm1738, %v3343, %v3239
        %v3360 = vsel %vm1738, %v3344, %v3241
        %v3361 = vsel %vm1738, %v3345, %v3243
        %v3362 = vsel %vm1738, %v3346, %v3245
        %v3363 = vsel %vm1738, %v3347, %v3247
        %v3364 = vsel %vm1738, %v3348, %v3249
        %v3365 = vsel %vm1738, %v3349, %v3251
        %v3366 = vsel %vm1738, %v3350, %v3253
        %v3367 = vsel %vm1738, %v3351, %v3255
        %v3368 = vsel %vm1755, %v3352, %v3289
        %v3369 = vsel %vm1755, %v3353, %v3291
        %v3370 = vsel %vm1755, %v3354, %v3293
        %v3371 = vsel %vm1755, %v3355, %v3295
        %v3372 = vsel %vm1755, %v3356, %v3297
        %v3373 = vsel %vm1755, %v3357, %v3299
        %v3374 = vsel %vm1755, %v3358, %v3301
        %v3375 = vsel %vm1755, %v3359, %v3303
        %v3376 = vsel %vm1755, %v3360, %v3305
        %v3377 = vsel %vm1755, %v3361, %v3307
        %v3378 = vsel %vm1755, %v3362, %v3309
        %v3379 = vsel %vm1755, %v3363, %v3311
        %v3380 = vsel %vm1755, %v3364, %v3313
        %v3381 = vsel %vm1755, %v3365, %v3315
        %v3382 = vsel %vm1755, %v3366, %v3317
        %v3383 = vsel %vm1755, %v3367, %v3319
        %v3384 = vld [vmem:[%s220] sm:$0xff]
        %v3385 = vld [vmem:[%s220 + $0x8] sm:$0xff]
        %v3386 = vld [vmem:[%s220 + $0x10] sm:$0xff]
        %v3387 = vld [vmem:[%s220 + $0x18] sm:$0xff]
        %v3388 = vld [vmem:[%s220 + $0x20] sm:$0xff]
        %v3389 = vld [vmem:[%s220 + $0x28] sm:$0xff]
        %v3390 = vld [vmem:[%s220 + $0x30] sm:$0xff]
        %v3391 = vld [vmem:[%s220 + $0x38] sm:$0xff]
        %v3392 = vld [vmem:[%s220 + $0x40] sm:$0xff]
        %v3393 = vld [vmem:[%s220 + $0x48] sm:$0xff]
        %v3394 = vld [vmem:[%s220 + $0x50] sm:$0xff]
        %v3395 = vld [vmem:[%s220 + $0x58] sm:$0xff]
        %v3396 = vld [vmem:[%s220 + $0x60] sm:$0xff]
        %v3397 = vld [vmem:[%s220 + $0x68] sm:$0xff]
        %v3398 = vld [vmem:[%s220 + $0x70] sm:$0xff]
        %v3399 = vld [vmem:[%s220 + $0x78] sm:$0xff]
        %v3400 = vld [vmem:[%s220 + $0x80] sm:$0xff]
        %v3401 = vld [vmem:[%s220 + $0x88] sm:$0xff]
        %v3402 = vld [vmem:[%s220 + $0x90] sm:$0xff]
        %v3403 = vld [vmem:[%s220 + $0x98] sm:$0xff]
        %v3404 = vld [vmem:[%s220 + $0xa0] sm:$0xff]
        %v3405 = vld [vmem:[%s220 + $0xa8] sm:$0xff]
        %v3406 = vld [vmem:[%s220 + $0xb0] sm:$0xff]
        %v3407 = vld [vmem:[%s220 + $0xb8] sm:$0xff]
        %v3408 = vld [vmem:[%s220 + $0xc0] sm:$0xff]
        %v3409 = vld [vmem:[%s220 + $0xc8] sm:$0xff]
        %v3410 = vld [vmem:[%s220 + $0xd0] sm:$0xff]
        %v3411 = vld [vmem:[%s220 + $0xd8] sm:$0xff]
        %v3412 = vld [vmem:[%s220 + $0xe0] sm:$0xff]
        %v3413 = vld [vmem:[%s220 + $0xe8] sm:$0xff]
        %v3414 = vld [vmem:[%s220 + $0xf0] sm:$0xff]
        %v3415 = vld [vmem:[%s220 + $0xf8] sm:$0xff]
        %v3416 = vld [vmem:[%s220 + $0x100] sm:$0xff]
        %v3417 = vld [vmem:[%s220 + $0x108] sm:$0xff]
        %v3418 = vld [vmem:[%s220 + $0x110] sm:$0xff]
        %v3419 = vld [vmem:[%s220 + $0x118] sm:$0xff]
        %v3421 = vsel %vm1772, %v3368, 0
        %v3424 = vsel %vm1772, %v3369, 0
        %v3427 = vsel %vm1772, %v3370, 0
        %v3430 = vsel %vm1772, %v3371, 0
        %v3433 = vsel %vm1772, %v3372, 0
        %v3436 = vsel %vm1772, %v3373, 0
        %v3439 = vsel %vm1772, %v3374, 0
        %v3442 = vsel %vm1772, %v3375, 0
        %v3445 = vsel %vm1772, %v3376, 0
        %v3448 = vsel %vm1772, %v3377, 0
        %v3451 = vsel %vm1772, %v3378, 0
        %v3454 = vsel %vm1772, %v3379, 0
        %v3457 = vsel %vm1772, %v3380, 0
        %v3460 = vsel %vm1772, %v3381, 0
        %v3463 = vsel %vm1772, %v3382, 0
        %v3466 = vsel %vm1772, %v3383, 0
        %3468 = vmatprep.subr.mxu0 0.0
        %3469 = vmatpush1.msra.mxu0 %v3399
        %3470 = vmatprep.subr.mxu0 0.0
        %3471 = vmatpush1.msra.mxu0 %v3398
        %3472 = vmatprep.subr.mxu0 0.0
        %3473 = vmatpush1.msra.mxu0 %v3397
        %3474 = vmatprep.subr.mxu0 0.0
        %3475 = vmatpush1.msra.mxu0 %v3396
        %3476 = vmatprep.subr.mxu0 0.0
        %3477 = vmatpush1.msra.mxu0 %v3395
        %3478 = vmatprep.subr.mxu0 0.0
        %3479 = vmatpush1.msra.mxu0 %v3394
        %3480 = vmatprep.subr.mxu0 0.0
        %3481 = vmatpush1.msra.mxu0 %v3393
        %3482 = vmatprep.subr.mxu0 0.0
        %3483 = vmatpush1.msra.mxu0 %v3392
        %3484 = vmatprep.subr.mxu0 0.0
        %3485 = vmatpush1.msra.mxu0 %v3391
        %3486 = vmatprep.subr.mxu0 0.0
        %3487 = vmatpush1.msra.mxu0 %v3390
        %3488 = vmatprep.subr.mxu0 0.0
        %3489 = vmatpush1.msra.mxu0 %v3389
        %3490 = vmatprep.subr.mxu0 0.0
        %3491 = vmatpush1.msra.mxu0 %v3388
        %3492 = vmatprep.subr.mxu0 0.0
        %3493 = vmatpush1.msra.mxu0 %v3387
        %3494 = vmatprep.subr.mxu0 0.0
        %3495 = vmatpush1.msra.mxu0 %v3386
        %3496 = vmatprep.subr.mxu0 0.0
        %3497 = vmatpush1.msra.mxu0 %v3385
        %3498 = vmatprep.subr.mxu0 0.0
        %3499 = vmatpush1.msra.mxu0 %v3384
        %3500 = vmatprep.subr.mxu0 0.0
        %3501 = vmatpush2.msra.mxu0 %v3415
        %3502 = vmatprep.subr.mxu0 0.0
        %3503 = vmatpush2.msra.mxu0 %v3414
        %3504 = vmatprep.subr.mxu0 0.0
        %3505 = vmatpush2.msra.mxu0 %v3413
        %3506 = vmatprep.subr.mxu0 0.0
        %3507 = vmatpush2.msra.mxu0 %v3412
        %3508 = vmatprep.subr.mxu0 0.0
        %3509 = vmatpush2.msra.mxu0 %v3411
        %3510 = vmatprep.subr.mxu0 0.0
        %3511 = vmatpush2.msra.mxu0 %v3410
        %3512 = vmatprep.subr.mxu0 0.0
        %3513 = vmatpush2.msra.mxu0 %v3409
        %3514 = vmatprep.subr.mxu0 0.0
        %3515 = vmatpush2.msra.mxu0 %v3408
        %3516 = vmatprep.subr.mxu0 0.0
        %3517 = vmatpush2.msra.mxu0 %v3407
        %3518 = vmatprep.subr.mxu0 0.0
        %3519 = vmatpush2.msra.mxu0 %v3406
        %3520 = vmatprep.subr.mxu0 0.0
        %3521 = vmatpush2.msra.mxu0 %v3405
        %3522 = vmatprep.subr.mxu0 0.0
        %3523 = vmatpush2.msra.mxu0 %v3404
        %3524 = vmatprep.subr.mxu0 0.0
        %3525 = vmatpush2.msra.mxu0 %v3403
        %3526 = vmatprep.subr.mxu0 0.0
        %3527 = vmatpush2.msra.mxu0 %v3402
        %3528 = vmatprep.subr.mxu0 0.0
        %3529 = vmatpush2.msra.mxu0 %v3401
        %3530 = vmatprep.subr.mxu0 0.0
        %3531 = vmatpush2.msra.mxu0 %v3400
        %3532 = vmatprep.mubr.f32.mxu0 %v3128
        %3533 = vmatmul.mubr.f32.gmra.mxu0 %v1960
        %v3534 = vpop.f32.mrf.mxu0
        %v3535 = vadd.f32 0.0, %v3534
        %v3536 = vpop.f32.mrf.mxu0
        %3537 = vmatprep.mubr.f32.mxu0 %v3129
        %3538 = vmatmul.mubr.f32.gmra.mxu0 %v1961
        %v3539 = vpop.f32.mrf.mxu0
        %v3540 = vadd.f32 0.0, %v3539
        %v3541 = vpop.f32.mrf.mxu0
        %3542 = vmatprep.mubr.f32.mxu0 %v3130
        %3543 = vmatmul.mubr.f32.gmra.mxu0 %v1962
        %v3544 = vpop.f32.mrf.mxu0
        %v3545 = vadd.f32 0.0, %v3544
        %v3546 = vpop.f32.mrf.mxu0
        %3547 = vmatprep.mubr.f32.mxu0 %v3131
        %3548 = vmatmul.mubr.f32.gmra.mxu0 %v1963
        %v3549 = vpop.f32.mrf.mxu0
        %v3550 = vadd.f32 0.0, %v3549
        %v3551 = vpop.f32.mrf.mxu0
        %3552 = vmatprep.mubr.f32.mxu0 %v3132
        %3553 = vmatmul.mubr.f32.gmra.mxu0 %v1964
        %v3554 = vpop.f32.mrf.mxu0
        %v3555 = vadd.f32 0.0, %v3554
        %v3556 = vpop.f32.mrf.mxu0
        %3557 = vmatprep.mubr.f32.mxu0 %v3133
        %3558 = vmatmul.mubr.f32.gmra.mxu0 %v1965
        %v3559 = vpop.f32.mrf.mxu0
        %v3560 = vadd.f32 0.0, %v3559
        %v3561 = vpop.f32.mrf.mxu0
        %3562 = vmatprep.mubr.f32.mxu0 %v3134
        %3563 = vmatmul.mubr.f32.gmra.mxu0 %v1966
        %v3564 = vpop.f32.mrf.mxu0
        %v3565 = vadd.f32 0.0, %v3564
        %v3566 = vpop.f32.mrf.mxu0
        %3567 = vmatprep.mubr.f32.mxu0 %v3135
        %3568 = vmatmul.mubr.f32.gmra.mxu0 %v1967
        %v3569 = vpop.f32.mrf.mxu0
        %v3570 = vadd.f32 0.0, %v3569
        %v3571 = vpop.f32.mrf.mxu0
        %3572 = vmatprep.mubr.f32.mxu0 %v3136
        %3573 = vmatmul.mubr.f32.gmra.mxu0 %v1968
        %v3574 = vpop.f32.mrf.mxu0
        %v3575 = vadd.f32 0.0, %v3574
        %v3576 = vpop.f32.mrf.mxu0
        %3577 = vmatprep.mubr.f32.mxu0 %v3137
        %3578 = vmatmul.mubr.f32.gmra.mxu0 %v1969
        %v3579 = vpop.f32.mrf.mxu0
        %v3580 = vadd.f32 0.0, %v3579
        %v3581 = vpop.f32.mrf.mxu0
        %3582 = vmatprep.mubr.f32.mxu0 %v3138
        %3583 = vmatmul.mubr.f32.gmra.mxu0 %v1970
        %v3584 = vpop.f32.mrf.mxu0
        %v3585 = vadd.f32 0.0, %v3584
        %v3586 = vpop.f32.mrf.mxu0
        %3587 = vmatprep.mubr.f32.mxu0 %v3139
        %3588 = vmatmul.mubr.f32.gmra.mxu0 %v1971
        %v3589 = vpop.f32.mrf.mxu0
        %v3590 = vadd.f32 0.0, %v3589
        %v3591 = vpop.f32.mrf.mxu0
        %3592 = vmatprep.mubr.f32.mxu0 %v3140
        %3593 = vmatmul.mubr.f32.gmra.mxu0 %v1972
        %v3594 = vpop.f32.mrf.mxu0
        %v3595 = vadd.f32 0.0, %v3594
        %v3596 = vpop.f32.mrf.mxu0
        %3597 = vmatprep.mubr.f32.mxu0 %v3141
        %3598 = vmatmul.mubr.f32.gmra.mxu0 %v1973
        %v3599 = vpop.f32.mrf.mxu0
        %v3600 = vadd.f32 0.0, %v3599
        %v3601 = vpop.f32.mrf.mxu0
        %3602 = vmatprep.mubr.f32.mxu0 %v3142
        %3603 = vmatmul.mubr.f32.gmra.mxu0 %v1974
        %v3604 = vpop.f32.mrf.mxu0
        %v3605 = vadd.f32 0.0, %v3604
        %v3606 = vpop.f32.mrf.mxu0
        %3607 = vmatprep.mubr.f32.mxu0 %v3143
        %3608 = vmatmul.mubr.f32.gmra.mxu0 %v1975
        %v3609 = vpop.f32.mrf.mxu0
        %v3610 = vadd.f32 0.0, %v3609
        %v3611 = vpop.f32.mrf.mxu0
        %3612 = vdwg.mxu0
        %3613 = vmatprep.subr.mxu0 0.0
        %3614 = vmatpush1.msra.mxu0 0.0
        %3615 = vmatprep.subr.mxu0 0.0
        %3616 = vmatpush1.msra.mxu0 0.0
        %3617 = vmatprep.subr.mxu0 0.0
        %3618 = vmatpush1.msra.mxu0 0.0
        %3619 = vmatprep.subr.mxu0 0.0
        %3620 = vmatpush1.msra.mxu0 0.0
        %3621 = vmatprep.subr.mxu0 0.0
        %3622 = vmatpush1.msra.mxu0 0.0
        %3623 = vmatprep.subr.mxu0 0.0
        %3624 = vmatpush1.msra.mxu0 0.0
        %3625 = vmatprep.subr.mxu0 0.0
        %3626 = vmatpush1.msra.mxu0 0.0
        %3627 = vmatprep.subr.mxu0 0.0
        %3628 = vmatpush1.msra.mxu0 0.0
        %3629 = vmatprep.subr.mxu0 0.0
        %3630 = vmatpush1.msra.mxu0 0.0
        %3631 = vmatprep.subr.mxu0 0.0
        %3632 = vmatpush1.msra.mxu0 0.0
        %3633 = vmatprep.subr.mxu0 0.0
        %3634 = vmatpush1.msra.mxu0 0.0
        %3635 = vmatprep.subr.mxu0 0.0
        %3636 = vmatpush1.msra.mxu0 0.0
        %3637 = vmatprep.subr.mxu0 0.0
        %3638 = vmatpush1.msra.mxu0 %v3419
        %3639 = vmatprep.subr.mxu0 0.0
        %3640 = vmatpush1.msra.mxu0 %v3418
        %3641 = vmatprep.subr.mxu0 0.0
        %3642 = vmatpush1.msra.mxu0 %v3417
        %3643 = vmatprep.subr.mxu0 0.0
        %3644 = vmatpush1.msra.mxu0 %v3416
        %3645 = vmatprep.subr.mxu0 0.0
        %3646 = vmatpush2.msra.mxu0 0.0
        %3647 = vmatprep.subr.mxu0 0.0
        %3648 = vmatpush2.msra.mxu0 0.0
        %3649 = vmatprep.subr.mxu0 0.0
        %3650 = vmatpush2.msra.mxu0 0.0
        %3651 = vmatprep.subr.mxu0 0.0
        %3652 = vmatpush2.msra.mxu0 0.0
        %3653 = vmatprep.subr.mxu0 0.0
        %3654 = vmatpush2.msra.mxu0 0.0
        %3655 = vmatprep.subr.mxu0 0.0
        %3656 = vmatpush2.msra.mxu0 0.0
        %3657 = vmatprep.subr.mxu0 0.0
        %3658 = vmatpush2.msra.mxu0 0.0
        %3659 = vmatprep.subr.mxu0 0.0
        %3660 = vmatpush2.msra.mxu0 0.0
        %3661 = vmatprep.subr.mxu0 0.0
        %3662 = vmatpush2.msra.mxu0 0.0
        %3663 = vmatprep.subr.mxu0 0.0
        %3664 = vmatpush2.msra.mxu0 0.0
        %3665 = vmatprep.subr.mxu0 0.0
        %3666 = vmatpush2.msra.mxu0 0.0
        %3667 = vmatprep.subr.mxu0 0.0
        %3668 = vmatpush2.msra.mxu0 0.0
        %3669 = vmatprep.subr.mxu0 0.0
        %3670 = vmatpush2.msra.mxu0 0.0
        %3671 = vmatprep.subr.mxu0 0.0
        %3672 = vmatpush2.msra.mxu0 0.0
        %3673 = vmatprep.subr.mxu0 0.0
        %3674 = vmatpush2.msra.mxu0 0.0
        %3675 = vmatprep.subr.mxu0 0.0
        %3676 = vmatpush2.msra.mxu0 0.0
        %3677 = vmatprep.mubr.f32.mxu0 0.0
        %3678 = vmatmul.mubr.f32.gmra.mxu0 %v3421
        %v3679 = vpop.f32.mrf.mxu0
        %v3680 = vadd.f32 %v3535, %v3679
        %v3681 = vpop.f32.mrf.mxu0
        %3682 = vmatprep.mubr.f32.mxu0 0.0
        %3683 = vmatmul.mubr.f32.gmra.mxu0 %v3424
        %v3684 = vpop.f32.mrf.mxu0
        %v3685 = vadd.f32 %v3540, %v3684
        %v3686 = vpop.f32.mrf.mxu0
        %3687 = vmatprep.mubr.f32.mxu0 0.0
        %3688 = vmatmul.mubr.f32.gmra.mxu0 %v3427
        %v3689 = vpop.f32.mrf.mxu0
        %v3690 = vadd.f32 %v3545, %v3689
        %v3691 = vpop.f32.mrf.mxu0
        %3692 = vmatprep.mubr.f32.mxu0 0.0
        %3693 = vmatmul.mubr.f32.gmra.mxu0 %v3430
        %v3694 = vpop.f32.mrf.mxu0
        %v3695 = vadd.f32 %v3550, %v3694
        %v3696 = vpop.f32.mrf.mxu0
        %3697 = vmatprep.mubr.f32.mxu0 0.0
        %3698 = vmatmul.mubr.f32.gmra.mxu0 %v3433
        %v3699 = vpop.f32.mrf.mxu0
        %v3700 = vadd.f32 %v3555, %v3699
        %v3701 = vpop.f32.mrf.mxu0
        %3702 = vmatprep.mubr.f32.mxu0 0.0
        %3703 = vmatmul.mubr.f32.gmra.mxu0 %v3436
        %v3704 = vpop.f32.mrf.mxu0
        %v3705 = vadd.f32 %v3560, %v3704
        %v3706 = vpop.f32.mrf.mxu0
        %3707 = vmatprep.mubr.f32.mxu0 0.0
        %3708 = vmatmul.mubr.f32.gmra.mxu0 %v3439
        %v3709 = vpop.f32.mrf.mxu0
        %v3710 = vadd.f32 %v3565, %v3709
        %v3711 = vpop.f32.mrf.mxu0
        %3712 = vmatprep.mubr.f32.mxu0 0.0
        %3713 = vmatmul.mubr.f32.gmra.mxu0 %v3442
        %v3714 = vpop.f32.mrf.mxu0
        %v3715 = vadd.f32 %v3570, %v3714
        %v3716 = vpop.f32.mrf.mxu0
        %3717 = vmatprep.mubr.f32.mxu0 0.0
        %3718 = vmatmul.mubr.f32.gmra.mxu0 %v3445
        %v3719 = vpop.f32.mrf.mxu0
        %v3720 = vadd.f32 %v3575, %v3719
        %v3721 = vpop.f32.mrf.mxu0
        %3722 = vmatprep.mubr.f32.mxu0 0.0
        %3723 = vmatmul.mubr.f32.gmra.mxu0 %v3448
        %v3724 = vpop.f32.mrf.mxu0
        %v3725 = vadd.f32 %v3580, %v3724
        %v3726 = vpop.f32.mrf.mxu0
        %3727 = vmatprep.mubr.f32.mxu0 0.0
        %3728 = vmatmul.mubr.f32.gmra.mxu0 %v3451
        %v3729 = vpop.f32.mrf.mxu0
        %v3730 = vadd.f32 %v3585, %v3729
        %v3731 = vpop.f32.mrf.mxu0
        %3732 = vmatprep.mubr.f32.mxu0 0.0
        %3733 = vmatmul.mubr.f32.gmra.mxu0 %v3454
        %v3734 = vpop.f32.mrf.mxu0
        %v3735 = vadd.f32 %v3590, %v3734
        %v3736 = vpop.f32.mrf.mxu0
        %3737 = vmatprep.mubr.f32.mxu0 0.0
        %3738 = vmatmul.mubr.f32.gmra.mxu0 %v3457
        %v3739 = vpop.f32.mrf.mxu0
        %v3740 = vadd.f32 %v3595, %v3739
        %v3741 = vpop.f32.mrf.mxu0
        %3742 = vmatprep.mubr.f32.mxu0 0.0
        %3743 = vmatmul.mubr.f32.gmra.mxu0 %v3460
        %v3744 = vpop.f32.mrf.mxu0
        %v3745 = vadd.f32 %v3600, %v3744
        %v3746 = vpop.f32.mrf.mxu0
        %3747 = vmatprep.mubr.f32.mxu0 0.0
        %3748 = vmatmul.mubr.f32.gmra.mxu0 %v3463
        %v3749 = vpop.f32.mrf.mxu0
        %v3750 = vadd.f32 %v3605, %v3749
        %v3751 = vpop.f32.mrf.mxu0
        %3752 = vmatprep.mubr.f32.mxu0 0.0
        %3753 = vmatmul.mubr.f32.gmra.mxu0 %v3466
        %v3754 = vpop.f32.mrf.mxu0
        %v3755 = vadd.f32 %v3610, %v3754
        %v3756 = vpop.f32.mrf.mxu0
        %3757 = vdwg.mxu0
        %p3758 = scmp.eq.s32.totalorder %s24, 0
        // Predicated region
        $region33: #{tpu_custom_call.1} parent=31 // pred_check
          %p3759 = pneg %p3758
        $region34: #{tpu_custom_call.1} parent=31 // pred_check_branch
          %3761 = sbr.rel (%p3759) target = $region36
        $region35: #{tpu_custom_call.1} parent=31 // pred_region
          %v3762 = vld [vmem:[%s2] sm:$0x1]
          %v3764 = vlaneseq
          %v3765 = vshrl.u32 %v3764, 7
          %v3766 = vsub.s32 0, %v3765
          %v3767 = vrot.slane %v3762, %v3766
          %v3769 = vadd.f32 %v3680, %v3767
          %v3770 = vadd.f32 %v3685, %v3767
          %v3771 = vadd.f32 %v3690, %v3767
          %v3772 = vadd.f32 %v3695, %v3767
          %v3773 = vadd.f32 %v3700, %v3767
          %v3774 = vadd.f32 %v3705, %v3767
          %v3775 = vadd.f32 %v3710, %v3767
          %v3776 = vadd.f32 %v3715, %v3767
          %v3777 = vadd.f32 %v3720, %v3767
          %v3778 = vadd.f32 %v3725, %v3767
          %v3779 = vadd.f32 %v3730, %v3767
          %v3780 = vadd.f32 %v3735, %v3767
          %v3781 = vadd.f32 %v3740, %v3767
          %v3782 = vadd.f32 %v3745, %v3767
          %v3783 = vadd.f32 %v3750, %v3767
          %v3784 = vadd.f32 %v3755, %v3767
          %3785 = vst [vmem:[#allocation2] sm:$0xff] %v3769
          %3786 = vst [vmem:[#allocation2 + $0x8] sm:$0xff] %v3770
          %3787 = vst [vmem:[#allocation2 + $0x10] sm:$0xff] %v3771
          %3788 = vst [vmem:[#allocation2 + $0x18] sm:$0xff] %v3772
          %3789 = vst [vmem:[#allocation2 + $0x20] sm:$0xff] %v3773
          %3790 = vst [vmem:[#allocation2 + $0x28] sm:$0xff] %v3774
          %3791 = vst [vmem:[#allocation2 + $0x30] sm:$0xff] %v3775
          %3792 = vst [vmem:[#allocation2 + $0x38] sm:$0xff] %v3776
          %3793 = vst [vmem:[#allocation2 + $0x40] sm:$0xff] %v3777
          %3794 = vst [vmem:[#allocation2 + $0x48] sm:$0xff] %v3778
          %3795 = vst [vmem:[#allocation2 + $0x50] sm:$0xff] %v3779
          %3796 = vst [vmem:[#allocation2 + $0x58] sm:$0xff] %v3780
          %3797 = vst [vmem:[#allocation2 + $0x60] sm:$0xff] %v3781
          %3798 = vst [vmem:[#allocation2 + $0x68] sm:$0xff] %v3782
          %3799 = vst [vmem:[#allocation2 + $0x70] sm:$0xff] %v3783
          %3800 = vst [vmem:[#allocation2 + $0x78] sm:$0xff] %v3784
        $region36: #{tpu_custom_call.1} parent=31 // pred_fallthru
          _
        %p3801 = scmp.gt.s32.totalorder %s24, 0
        // Predicated region
        $region37: #{tpu_custom_call.1} parent=31 // pred_check
          %p3802 = pneg %p3801
        $region38: #{tpu_custom_call.1} parent=31 // pred_check_branch
          %3804 = sbr.rel (%p3802) target = $region40
        $region39: #{tpu_custom_call.1} parent=31 // pred_region
          %v3805 = vld [vmem:[#allocation2] sm:$0xff]
          %v3806 = vld [vmem:[#allocation2 + $0x8] sm:$0xff]
          %v3807 = vld [vmem:[#allocation2 + $0x10] sm:$0xff]
          %v3808 = vld [vmem:[#allocation2 + $0x18] sm:$0xff]
          %v3809 = vld [vmem:[#allocation2 + $0x20] sm:$0xff]
          %v3810 = vld [vmem:[#allocation2 + $0x28] sm:$0xff]
          %v3811 = vld [vmem:[#allocation2 + $0x30] sm:$0xff]
          %v3812 = vld [vmem:[#allocation2 + $0x38] sm:$0xff]
          %v3813 = vld [vmem:[#allocation2 + $0x40] sm:$0xff]
          %v3814 = vld [vmem:[#allocation2 + $0x48] sm:$0xff]
          %v3815 = vld [vmem:[#allocation2 + $0x50] sm:$0xff]
          %v3816 = vld [vmem:[#allocation2 + $0x58] sm:$0xff]
          %v3817 = vld [vmem:[#allocation2 + $0x60] sm:$0xff]
          %v3818 = vld [vmem:[#allocation2 + $0x68] sm:$0xff]
          %v3819 = vld [vmem:[#allocation2 + $0x70] sm:$0xff]
          %v3820 = vld [vmem:[#allocation2 + $0x78] sm:$0xff]
          %v3821 = vadd.f32 %v3805, %v3680
          %v3822 = vadd.f32 %v3806, %v3685
          %v3823 = vadd.f32 %v3807, %v3690
          %v3824 = vadd.f32 %v3808, %v3695
          %v3825 = vadd.f32 %v3809, %v3700
          %v3826 = vadd.f32 %v3810, %v3705
          %v3827 = vadd.f32 %v3811, %v3710
          %v3828 = vadd.f32 %v3812, %v3715
          %v3829 = vadd.f32 %v3813, %v3720
          %v3830 = vadd.f32 %v3814, %v3725
          %v3831 = vadd.f32 %v3815, %v3730
          %v3832 = vadd.f32 %v3816, %v3735
          %v3833 = vadd.f32 %v3817, %v3740
          %v3834 = vadd.f32 %v3818, %v3745
          %v3835 = vadd.f32 %v3819, %v3750
          %v3836 = vadd.f32 %v3820, %v3755
          %3837 = vst [vmem:[#allocation2] sm:$0xff] %v3821
          %3838 = vst [vmem:[#allocation2 + $0x8] sm:$0xff] %v3822
          %3839 = vst [vmem:[#allocation2 + $0x10] sm:$0xff] %v3823
          %3840 = vst [vmem:[#allocation2 + $0x18] sm:$0xff] %v3824
          %3841 = vst [vmem:[#allocation2 + $0x20] sm:$0xff] %v3825
          %3842 = vst [vmem:[#allocation2 + $0x28] sm:$0xff] %v3826
          %3843 = vst [vmem:[#allocation2 + $0x30] sm:$0xff] %v3827
          %3844 = vst [vmem:[#allocation2 + $0x38] sm:$0xff] %v3828
          %3845 = vst [vmem:[#allocation2 + $0x40] sm:$0xff] %v3829
          %3846 = vst [vmem:[#allocation2 + $0x48] sm:$0xff] %v3830
          %3847 = vst [vmem:[#allocation2 + $0x50] sm:$0xff] %v3831
          %3848 = vst [vmem:[#allocation2 + $0x58] sm:$0xff] %v3832
          %3849 = vst [vmem:[#allocation2 + $0x60] sm:$0xff] %v3833
          %3850 = vst [vmem:[#allocation2 + $0x68] sm:$0xff] %v3834
          %3851 = vst [vmem:[#allocation2 + $0x70] sm:$0xff] %v3835
          %3852 = vst [vmem:[#allocation2 + $0x78] sm:$0xff] %v3836
        $region40: #{tpu_custom_call.1} parent=31 // pred_fallthru
          _
        // Predicated region
        $region41: #{tpu_custom_call.1} parent=31 // pred_check
          %p3853 = pneg %p3758
        $region42: #{tpu_custom_call.1} parent=31 // pred_check_branch
          %3855 = sbr.rel (%p3853) target = $region44
        $region43: #{tpu_custom_call.1} parent=31 // pred_region
          %v3856 = vld [vmem:[#allocation2] sm:$0xff]
          %v3857 = vld [vmem:[#allocation2 + $0x8] sm:$0xff]
          %v3858 = vld [vmem:[#allocation2 + $0x10] sm:$0xff]
          %v3859 = vld [vmem:[#allocation2 + $0x18] sm:$0xff]
          %v3860 = vld [vmem:[#allocation2 + $0x20] sm:$0xff]
          %v3861 = vld [vmem:[#allocation2 + $0x28] sm:$0xff]
          %v3862 = vld [vmem:[#allocation2 + $0x30] sm:$0xff]
          %v3863 = vld [vmem:[#allocation2 + $0x38] sm:$0xff]
          %v3864 = vld [vmem:[#allocation2 + $0x40] sm:$0xff]
          %v3865 = vld [vmem:[#allocation2 + $0x48] sm:$0xff]
          %v3866 = vld [vmem:[#allocation2 + $0x50] sm:$0xff]
          %v3867 = vld [vmem:[#allocation2 + $0x58] sm:$0xff]
          %v3868 = vld [vmem:[#allocation2 + $0x60] sm:$0xff]
          %v3869 = vld [vmem:[#allocation2 + $0x68] sm:$0xff]
          %v3870 = vld [vmem:[#allocation2 + $0x70] sm:$0xff]
          %v3871 = vld [vmem:[#allocation2 + $0x78] sm:$0xff]
          %3872 = vst [vmem:[%s207] sm:$0xff] %v3856
          %3873 = vst [vmem:[%s207 + $0x8] sm:$0xff] %v3857
          %3874 = vst [vmem:[%s207 + $0x10] sm:$0xff] %v3858
          %3875 = vst [vmem:[%s207 + $0x18] sm:$0xff] %v3859
          %3876 = vst [vmem:[%s207 + $0x20] sm:$0xff] %v3860
          %3877 = vst [vmem:[%s207 + $0x28] sm:$0xff] %v3861
          %3878 = vst [vmem:[%s207 + $0x30] sm:$0xff] %v3862
          %3879 = vst [vmem:[%s207 + $0x38] sm:$0xff] %v3863
          %3880 = vst [vmem:[%s207 + $0x40] sm:$0xff] %v3864
          %3881 = vst [vmem:[%s207 + $0x48] sm:$0xff] %v3865
          %3882 = vst [vmem:[%s207 + $0x50] sm:$0xff] %v3866
          %3883 = vst [vmem:[%s207 + $0x58] sm:$0xff] %v3867
          %3884 = vst [vmem:[%s207 + $0x60] sm:$0xff] %v3868
          %3885 = vst [vmem:[%s207 + $0x68] sm:$0xff] %v3869
          %3886 = vst [vmem:[%s207 + $0x70] sm:$0xff] %v3870
          %3887 = vst [vmem:[%s207 + $0x78] sm:$0xff] %v3871
        $region44: #{tpu_custom_call.1} parent=31 // pred_fallthru
          _
        %s3888 = sand.u32 %s121, 1
        %s3889 = scalar_lea.sflag [#allocation4], %s3888
        %s3890 = sand.u32 %s121, 1
        %s3891 = smul.addr %s3890, 128
        %s3892 = scalar_lea.vmem [#allocation3], %s3891
        // Predicated region
        $region45: #{tpu_custom_call.1} parent=31 // pred_check
          %p3893 = pneg %p131
        $region46: #{tpu_custom_call.1} parent=31 // pred_check_branch
          %3895 = sbr.rel (%p3893) target = $region48
        $region47: #{tpu_custom_call.1} parent=31 // pred_region
          %s3896 = smul.u32 8, %s23
          %s3898 = ssub.s32 2048, 2048
          %3899 = vsyncadd %s3889, %s3898
          %s3900 = smul.addr %s3896, 2
          %s3901 = smul.addr %s22, 32
          %s3902 = sadd.s32 %s3900, %s3901
          %s3903 = smul.addr %s3902, 128
          %s3904 = scalar_lea.hbm %s3, %s3903
          %s3905 = sshll.u32 %s3892, 4
          %s3906 = int_to_ptr.vmem [resolvable:$true] %s3905
          %3911 = dma.vmem_to_hbm [thread:$0]  %s3906, 2048, %s3904, %s3889, 128, 128, 8
        $region48: #{tpu_custom_call.1} parent=31 // pred_fallthru
          _
      $region32: #{tpu_custom_call.1} parent=5 // pred_fallthru
        _
      %p3912 = scmp.le.s32.totalorder 2, %s12
      // Predicated region
      $region49: #{tpu_custom_call.1} parent=5 // pred_check
        %p3913 = pneg %p3912
      $region50: #{tpu_custom_call.1} parent=5 // pred_check_branch
        %3915 = sbr.rel (%p3913) target = $region52
      $region51: #{tpu_custom_call.1} parent=5 // pred_region
        %s3916 = ssub.s32 %s12, 2
        // Predicated region
        $region53: #{tpu_custom_call.1} parent=51 // pred_check
          %p3917 = pneg %p137
        $region54: #{tpu_custom_call.1} parent=51 // pred_check_branch
          %3919 = sbr.rel (%p3917) target = $region56
        $region55: #{tpu_custom_call.1} parent=51 // pred_region
          %s3920 = sand.u32 %s122, 1
          %s3921 = scalar_lea.sflag [#allocation4], %s3920
          %s3922 = sand.u32 %s122, 1
          %s3923 = smul.addr %s3922, 128
          %s3924 = scalar_lea.vmem [#allocation3], %s3923
          %3925 = dma.done %s3921, 2048
        $region56: #{tpu_custom_call.1} parent=51 // pred_fallthru
          _
      $region52: #{tpu_custom_call.1} parent=5 // pred_fallthru
        _
    $region6: #{tpu_custom_call.1} parent=1 // loop_footer
      %s16 = sadd.s32 1, %s12
    $region7: #{tpu_custom_call.1} parent=1 // loop_footer_branch
      %11 = sbr.rel target = $region3
    $region8: #{tpu_custom_call.1} parent=1 // loop_exit
      _
    %3926 = vsyncpa [#allocation4], 1
    %s3927 = scalar_lea.sflag [#allocation4], 1
    %3928 = vsyncpa %s3927, 1

</llo_original>
